<compile_context>
chip_gen: v7x
topology: tpu7x:2x2x1
jax: 0.10.0
libtpu: 0.0.40
codegen_flags: <defaults>
</compile_context>

<pallas_src>
import functools

import jax
import jax.numpy as jnp
import numpy as np
from jax.experimental import pallas as pl
from jax.experimental.pallas import tpu as pltpu

KS = 5      # conv kernel size
C1 = 16     # conv1 out channels
C2 = 32     # conv2 out channels
F1 = 256    # fc1 out features
F2 = 2      # fc2 out features


# ------------------------------ fused kernel ------------------------------- #

def _cnn1_kernel(x_ref, m1_ref, b1_ref, r1_ref, s1_ref, m2_ref, b2_ref,
                 r2_ref, s2_ref, wf1_ref, bf1_ref, wf2_ref, bf2_ref,
                 out_ref, *, L):
    H2, H3 = L // 2, L // 4

    xp = x_ref[0]                                       # (L+4, L) f32, rows pre-padded

    # ---- conv1 + bias + ReLU: 5 row-tap matmuls (width taps + Cout in M1) ---
    acc1 = jnp.dot(xp[0:L, :], m1_ref[0], preferred_element_type=jnp.float32)
    for kh in range(1, KS):
        acc1 += jnp.dot(xp[kh:kh + L, :], m1_ref[kh],
                        preferred_element_type=jnp.float32)
    a1 = jnp.maximum(acc1 + b1_ref[...], 0.0)           # (L, L*C1), lane = w*C1+c

    # ---- pool1 (row-pair max then channel-block max); r1 also emits the two
    # ---- zero padding rows conv2 needs at top/bottom ------------------------
    rmax = jnp.maximum(
        jnp.dot(r1_ref[0], a1, preferred_element_type=jnp.float32),
        jnp.dot(r1_ref[1], a1, preferred_element_type=jnp.float32))
    p1p = jnp.maximum(
        jnp.dot(rmax, s1_ref[0], preferred_element_type=jnp.float32),
        jnp.dot(rmax, s1_ref[1], preferred_element_type=jnp.float32))
    p1p = p1p.astype(jnp.bfloat16)                      # (H2+4, H2*C1), rows 0,1,-2,-1 = 0

    # ---- conv2 + bias + ReLU: 5 row-tap bf16 MXU matmuls --------------------
    acc2 = jnp.dot(p1p[0:H2, :], m2_ref[0], preferred_element_type=jnp.float32)
    for kh in range(1, KS):
        acc2 += jnp.dot(p1p[kh:kh + H2, :], m2_ref[kh],
                        preferred_element_type=jnp.float32)
    a2 = jnp.maximum(acc2 + b2_ref[...], 0.0)           # (H2, H2*C2), lane = w*C2+c2

    # ---- pool2 --------------------------------------------------------------
    rmax2 = jnp.maximum(
        jnp.dot(r2_ref[0], a2, preferred_element_type=jnp.float32),
        jnp.dot(r2_ref[1], a2, preferred_element_type=jnp.float32))
    p2 = jnp.maximum(
        jnp.dot(rmax2, s2_ref[0], preferred_element_type=jnp.float32),
        jnp.dot(rmax2, s2_ref[1], preferred_element_type=jnp.float32))
    p2 = p2.astype(jnp.bfloat16)                        # (H3, H3*C2) flattened features

    # ---- fc1 + ReLU (dropout1 = identity / eval)  (bf16 MXU) ----------------
    accf = jnp.dot(p2[0:1, :], wf1_ref[0], preferred_element_type=jnp.float32)
    for hq in range(1, H3):
        accf += jnp.dot(p2[hq:hq + 1, :], wf1_ref[hq],
                        preferred_element_type=jnp.float32)
    h = jnp.maximum(accf + bf1_ref[...], 0.0)           # (1, F1)

    # ---- fc2 (dropout2 = identity / eval)  (f32) ----------------------------
    out_ref[0] = jnp.dot(h, wf2_ref[...],
                         preferred_element_type=jnp.float32) + bf2_ref[...]


# ------------------------------ host wrapper -------------------------------- #

def cnn1_forward(x_nchw, kp):
    """x_nchw: (N, 1, L, L) float32 (PyTorch layout).  Returns (N, 2) logits."""
    N, _, L, _ = x_nchw.shape
    assert L % 4 == 0, "L must be a multiple of 4"
    H2, H3 = L // 2, L // 4

    # Only input-side XLA glue: squeeze Cin=1 and zero-pad the HEIGHT by 2
    # (width padding is folded into the structured conv weights).
    x = x_nchw.astype(jnp.float32).reshape(N, L, L)
    xp = jnp.pad(x, ((0, 0), (2, 2), (0, 0)))           # (N, L+4, L)

    out = pl.pallas_call(
        functools.partial(_cnn1_kernel, L=L),
        out_shape=jax.ShapeDtypeStruct((N, 1, F2), jnp.float32),
        grid=(N,),
        in_specs=[
            pl.BlockSpec((1, L + 4, L), lambda n: (n, 0, 0)),
            pl.BlockSpec((KS, L, L * C1), lambda n: (0, 0, 0)),
            pl.BlockSpec((1, L * C1), lambda n: (0, 0)),
            pl.BlockSpec((2, H2 + 4, L), lambda n: (0, 0, 0)),
            pl.BlockSpec((2, L * C1, H2 * C1), lambda n: (0, 0, 0)),
            pl.BlockSpec((KS, H2 * C1, H2 * C2), lambda n: (0, 0, 0)),
            pl.BlockSpec((1, H2 * C2), lambda n: (0, 0)),
            pl.BlockSpec((2, H3, H2), lambda n: (0, 0, 0)),
            pl.BlockSpec((2, H2 * C2, H3 * C2), lambda n: (0, 0, 0)),
            pl.BlockSpec((H3, H3 * C2, F1), lambda n: (0, 0, 0)),
            pl.BlockSpec((1, F1), lambda n: (0, 0)),
            pl.BlockSpec((F1, F2), lambda n: (0, 0)),
            pl.BlockSpec((1, F2), lambda n: (0, 0)),
        ],
        out_specs=pl.BlockSpec((1, 1, F2), lambda n: (n, 0, 0)),
        compiler_params=pltpu.CompilerParams(
            dimension_semantics=("parallel",)),
    )(xp, kp["m1"], kp["b1"], kp["r1"], kp["s1"], kp["m2"], kp["b2"],
      kp["r2"], kp["s2"], kp["wf1"], kp["bf1"], kp["wf2"], kp["bf2"])
    return out.reshape(N, F2)


# --------------------------- parameter preparation -------------------------- #

def _col_sel(w_in, C):
    """0/1 matrices selecting the even / odd channel-block columns of a 2x2 pool."""
    w_out = w_in // 2
    sel = np.zeros((2, w_in * C, w_out * C), np.float32)
    for p in range(2):
        for wo in range(w_out):
            rows = (2 * wo + p) * C + np.arange(C)
            cols = wo * C + np.arange(C)
            sel[p, rows, cols] = 1.0
    return sel


def prepare_params(params, L):
    """One-time re-layout of PyTorch-style parameters into kernel layout."""
    H2, H3 = L // 2, L // 4
    w1 = np.asarray(params["w1"], np.float32)            # (C1, 1, KS, KS)
    w2 = np.asarray(params["w2"], np.float32)            # (C2, C1, KS, KS)

    # conv1: M1[kh, j, w*C1 + c] = w1[c, 0, kh, j - w + 2]   (width pad folded in)
    m1 = np.zeros((KS, L, L * C1), np.float32)
    for kh in range(KS):
        for w in range(L):
            for kw in range(KS):
                j = w + kw - 2
                if 0 <= j < L:
                    m1[kh, j, w * C1:(w + 1) * C1] = w1[:, 0, kh, kw]

    # conv2: M2[kh, j*C1 + c1, w*C2 + c2] = w2[c2, c1, kh, j - w + 2]
    m2 = np.zeros((KS, H2 * C1, H2 * C2), np.float32)
    for kh in range(KS):
        for w in range(H2):
            for kw in range(KS):
                j = w + kw - 2
                if 0 <= j < H2:
                    m2[kh, j * C1:(j + 1) * C1, w * C2:(w + 1) * C2] = \
                        w2[:, :, kh, kw].T

    # pool1 row selector also provides conv2's 2 zero padding rows top/bottom.
    r1 = np.zeros((2, H2 + 4, L), np.float32)
    for p in range(2):
        for ho in range(H2):
            r1[p, ho + 2, 2 * ho + p] = 1.0
    r2 = np.zeros((2, H3, H2), np.float32)
    for p in range(2):
        for ho in range(H3):
            r2[p, ho, 2 * ho + p] = 1.0

    # fc1 weight: torch flatten index c2*H3*H3 + hq*H3 + wq -> (hq, wq*C2 + c2, out)
    wf1 = np.asarray(params["wfc1"], np.float32).reshape(F1, C2, H3, H3)
    wf1 = wf1.transpose(2, 3, 1, 0).reshape(H3, H3 * C2, F1)

    b1 = np.asarray(params["b1"], np.float32)
    b2 = np.asarray(params["b2"], np.float32)

    return {
        "m1": jnp.asarray(m1),
        "b1": jnp.asarray(np.tile(b1, L).reshape(1, L * C1)),
        "r1": jnp.asarray(r1),
        "s1": jnp.asarray(_col_sel(L, C1)),
        "m2": jnp.asarray(m2, dtype=jnp.bfloat16),
        "b2": jnp.asarray(np.tile(b2, H2).reshape(1, H2 * C2)),
        "r2": jnp.asarray(r2),
        "s2": jnp.asarray(_col_sel(H2, C2)),
        "wf1": jnp.asarray(wf1, dtype=jnp.bfloat16),
        "bf1": jnp.asarray(params["bfc1"], jnp.float32).reshape(1, F1),
        "wf2": jnp.asarray(params["wfc2"], jnp.float32).T,
        "bf2": jnp.asarray(params["bfc2"], jnp.float32).reshape(1, F2),
    }


def init_params(L, key):
    """Deterministic init matching PyTorch defaults (uniform +/- 1/sqrt(fan_in))."""
    ks = jax.random.split(key, 8)

    def u(k, shape, fan_in):
        bound = 1.0 / jnp.sqrt(float(fan_in))
        return jax.random.uniform(k, shape, jnp.float32, -bound, bound)

    feat = C2 * (L // 4) * (L // 4)
    return {
        "w1": u(ks[0], (C1, 1, KS, KS), 1 * KS * KS),
        "b1": u(ks[1], (C1,), 1 * KS * KS),
        "w2": u(ks[2], (C2, C1, KS, KS), C1 * KS * KS),
        "b2": u(ks[3], (C2,), C1 * KS * KS),
        "wfc1": u(ks[4], (F1, feat), feat),
        "bfc1": u(ks[5], (F1,), feat),
        "wfc2": u(ks[6], (F2, F1), F1),
        "bfc2": u(ks[7], (F2,), F1),
    }


if __name__ == "__main__":
    L = 16          # spatial size (L/4 must be integral)
    N = 2           # batch
    key = jax.random.PRNGKey(0)
    k_x, k_p = jax.random.split(key)

    x = jax.random.normal(k_x, (N, 1, L, L), dtype=jnp.float32)   # NCHW, Cin=1
    params = init_params(L, k_p)
    kparams = prepare_params(params, L)                           # one-time layout

    out = jax.jit(cnn1_forward)(x, kparams)
    out = jax.block_until_ready(out)
    assert out.shape == (N, F2) and out.dtype == jnp.float32
    print("KERNEL_OK")
</pallas_src>

<mosaic_0001>
module attributes {stable_mosaic.version = 11 : i64} {
  func.func @_cnn1_kernel(%arg0: i32, %arg1: memref<1x20x16xf32, #tpu.memory_space<vmem>>, %arg2: memref<5x16x256xf32, #tpu.memory_space<vmem>>, %arg3: memref<1x256xf32, #tpu.memory_space<vmem>>, %arg4: memref<2x12x16xf32, #tpu.memory_space<vmem>>, %arg5: memref<2x256x128xf32, #tpu.memory_space<vmem>>, %arg6: memref<5x128x256xbf16, #tpu.memory_space<vmem>>, %arg7: memref<1x256xf32, #tpu.memory_space<vmem>>, %arg8: memref<2x4x8xf32, #tpu.memory_space<vmem>>, %arg9: memref<2x256x128xf32, #tpu.memory_space<vmem>>, %arg10: memref<4x128x256xbf16, #tpu.memory_space<vmem>>, %arg11: memref<1x256xf32, #tpu.memory_space<vmem>>, %arg12: memref<256x2xf32, #tpu.memory_space<vmem>>, %arg13: memref<1x2xf32, #tpu.memory_space<vmem>>, %arg14: memref<1x1x2xf32, #tpu.memory_space<vmem>>) attributes {dimension_semantics = [#tpu.dimension_semantics<parallel>], iteration_bounds = array<i64: 2>, scalar_prefetch = 0 : i64, scratch_operands = 0 : i64, tpu.core_type = #tpu.core_type<tc>, window_params = [{transform_indices = @transform_0, window_bounds = array<i64: 1, 20, 16>}, {pipeline_mode = #tpu.pipeline_mode<synchronous>, transform_indices = @transform_1, window_bounds = array<i64: 5, 16, 256>}, {pipeline_mode = #tpu.pipeline_mode<synchronous>, transform_indices = @transform_2, window_bounds = array<i64: 1, 256>}, {pipeline_mode = #tpu.pipeline_mode<synchronous>, transform_indices = @transform_3, window_bounds = array<i64: 2, 12, 16>}, {pipeline_mode = #tpu.pipeline_mode<synchronous>, transform_indices = @transform_4, window_bounds = array<i64: 2, 256, 128>}, {pipeline_mode = #tpu.pipeline_mode<synchronous>, transform_indices = @transform_5, window_bounds = array<i64: 5, 128, 256>}, {pipeline_mode = #tpu.pipeline_mode<synchronous>, transform_indices = @transform_6, window_bounds = array<i64: 1, 256>}, {pipeline_mode = #tpu.pipeline_mode<synchronous>, transform_indices = @transform_7, window_bounds = array<i64: 2, 4, 8>}, {pipeline_mode = #tpu.pipeline_mode<synchronous>, transform_indices = @transform_8, window_bounds = array<i64: 2, 256, 128>}, {pipeline_mode = #tpu.pipeline_mode<synchronous>, transform_indices = @transform_9, window_bounds = array<i64: 4, 128, 256>}, {pipeline_mode = #tpu.pipeline_mode<synchronous>, transform_indices = @transform_10, window_bounds = array<i64: 1, 256>}, {pipeline_mode = #tpu.pipeline_mode<synchronous>, transform_indices = @transform_11, window_bounds = array<i64: 256, 2>}, {pipeline_mode = #tpu.pipeline_mode<synchronous>, transform_indices = @transform_12, window_bounds = array<i64: 1, 2>}, {transform_indices = @transform_13, window_bounds = array<i64: 1, 1, 2>}]} {
    %c0 = arith.constant 0 : index
    %c0_0 = arith.constant 0 : index
    %c0_1 = arith.constant 0 : index
    %0 = vector.load %arg1[%c0, %c0_0, %c0_1] : memref<1x20x16xf32, #tpu.memory_space<vmem>>, vector<1x20x16xf32>
    %1 = vector.shape_cast %0 : vector<1x20x16xf32> to vector<20x16xf32>
    %2 = vector.extract_strided_slice %1 {offsets = [0, 0], sizes = [16, 16], strides = [1, 1]} : vector<20x16xf32> to vector<16x16xf32>
    %c0_2 = arith.constant 0 : index
    %c0_3 = arith.constant 0 : index
    %c0_4 = arith.constant 0 : index
    %3 = vector.load %arg2[%c0_2, %c0_3, %c0_4] : memref<5x16x256xf32, #tpu.memory_space<vmem>>, vector<1x16x256xf32>
    %4 = vector.shape_cast %3 : vector<1x16x256xf32> to vector<16x256xf32>
    %cst = arith.constant dense<0.000000e+00> : vector<16x256xf32>
    %5 = tpu.matmul %2, %4, %cst {dimension_numbers = #tpu.dot_dimension_numbers<[1], [0], [0], [1], [0, 0, 1, 1], [], []>} : vector<16x16xf32>, vector<16x256xf32>, vector<16x256xf32> -> vector<16x256xf32>
    %6 = vector.extract_strided_slice %1 {offsets = [1, 0], sizes = [16, 16], strides = [1, 1]} : vector<20x16xf32> to vector<16x16xf32>
    %c1 = arith.constant 1 : index
    %c0_5 = arith.constant 0 : index
    %c0_6 = arith.constant 0 : index
    %7 = vector.load %arg2[%c1, %c0_5, %c0_6] : memref<5x16x256xf32, #tpu.memory_space<vmem>>, vector<1x16x256xf32>
    %8 = vector.shape_cast %7 : vector<1x16x256xf32> to vector<16x256xf32>
    %cst_7 = arith.constant dense<0.000000e+00> : vector<16x256xf32>
    %9 = tpu.matmul %6, %8, %cst_7 {dimension_numbers = #tpu.dot_dimension_numbers<[1], [0], [0], [1], [0, 0, 1, 1], [], []>} : vector<16x16xf32>, vector<16x256xf32>, vector<16x256xf32> -> vector<16x256xf32>
    %10 = arith.addf %5, %9 : vector<16x256xf32>
    %11 = vector.extract_strided_slice %1 {offsets = [2, 0], sizes = [16, 16], strides = [1, 1]} : vector<20x16xf32> to vector<16x16xf32>
    %c2 = arith.constant 2 : index
    %c0_8 = arith.constant 0 : index
    %c0_9 = arith.constant 0 : index
    %12 = vector.load %arg2[%c2, %c0_8, %c0_9] : memref<5x16x256xf32, #tpu.memory_space<vmem>>, vector<1x16x256xf32>
    %13 = vector.shape_cast %12 : vector<1x16x256xf32> to vector<16x256xf32>
    %cst_10 = arith.constant dense<0.000000e+00> : vector<16x256xf32>
    %14 = tpu.matmul %11, %13, %cst_10 {dimension_numbers = #tpu.dot_dimension_numbers<[1], [0], [0], [1], [0, 0, 1, 1], [], []>} : vector<16x16xf32>, vector<16x256xf32>, vector<16x256xf32> -> vector<16x256xf32>
    %15 = arith.addf %10, %14 : vector<16x256xf32>
    %16 = vector.extract_strided_slice %1 {offsets = [3, 0], sizes = [16, 16], strides = [1, 1]} : vector<20x16xf32> to vector<16x16xf32>
    %c3 = arith.constant 3 : index
    %c0_11 = arith.constant 0 : index
    %c0_12 = arith.constant 0 : index
    %17 = vector.load %arg2[%c3, %c0_11, %c0_12] : memref<5x16x256xf32, #tpu.memory_space<vmem>>, vector<1x16x256xf32>
    %18 = vector.shape_cast %17 : vector<1x16x256xf32> to vector<16x256xf32>
    %cst_13 = arith.constant dense<0.000000e+00> : vector<16x256xf32>
    %19 = tpu.matmul %16, %18, %cst_13 {dimension_numbers = #tpu.dot_dimension_numbers<[1], [0], [0], [1], [0, 0, 1, 1], [], []>} : vector<16x16xf32>, vector<16x256xf32>, vector<16x256xf32> -> vector<16x256xf32>
    %20 = arith.addf %15, %19 : vector<16x256xf32>
    %21 = vector.extract_strided_slice %1 {offsets = [4, 0], sizes = [16, 16], strides = [1, 1]} : vector<20x16xf32> to vector<16x16xf32>
    %c4 = arith.constant 4 : index
    %c0_14 = arith.constant 0 : index
    %c0_15 = arith.constant 0 : index
    %22 = vector.load %arg2[%c4, %c0_14, %c0_15] : memref<5x16x256xf32, #tpu.memory_space<vmem>>, vector<1x16x256xf32>
    %23 = vector.shape_cast %22 : vector<1x16x256xf32> to vector<16x256xf32>
    %cst_16 = arith.constant dense<0.000000e+00> : vector<16x256xf32>
    %24 = tpu.matmul %21, %23, %cst_16 {dimension_numbers = #tpu.dot_dimension_numbers<[1], [0], [0], [1], [0, 0, 1, 1], [], []>} : vector<16x16xf32>, vector<16x256xf32>, vector<16x256xf32> -> vector<16x256xf32>
    %25 = arith.addf %20, %24 : vector<16x256xf32>
    %c0_17 = arith.constant 0 : index
    %c0_18 = arith.constant 0 : index
    %26 = vector.load %arg3[%c0_17, %c0_18] : memref<1x256xf32, #tpu.memory_space<vmem>>, vector<1x256xf32>
    %27 = vector.broadcast %26 : vector<1x256xf32> to vector<16x256xf32>
    %28 = arith.addf %25, %27 : vector<16x256xf32>
    %cst_19 = arith.constant 0.000000e+00 : f32
    %29 = vector.broadcast %cst_19 : f32 to vector<16x256xf32>
    %30 = arith.maximumf %28, %29 : vector<16x256xf32>
    %c0_20 = arith.constant 0 : index
    %c0_21 = arith.constant 0 : index
    %c0_22 = arith.constant 0 : index
    %31 = vector.load %arg4[%c0_20, %c0_21, %c0_22] : memref<2x12x16xf32, #tpu.memory_space<vmem>>, vector<1x12x16xf32>
    %32 = vector.shape_cast %31 : vector<1x12x16xf32> to vector<12x16xf32>
    %cst_23 = arith.constant dense<0.000000e+00> : vector<12x256xf32>
    %33 = tpu.matmul %32, %30, %cst_23 {dimension_numbers = #tpu.dot_dimension_numbers<[1], [0], [0], [1], [0, 0, 1, 1], [], []>} : vector<12x16xf32>, vector<16x256xf32>, vector<12x256xf32> -> vector<12x256xf32>
    %c1_24 = arith.constant 1 : index
    %c0_25 = arith.constant 0 : index
    %c0_26 = arith.constant 0 : index
    %34 = vector.load %arg4[%c1_24, %c0_25, %c0_26] : memref<2x12x16xf32, #tpu.memory_space<vmem>>, vector<1x12x16xf32>
    %35 = vector.shape_cast %34 : vector<1x12x16xf32> to vector<12x16xf32>
    %cst_27 = arith.constant dense<0.000000e+00> : vector<12x256xf32>
    %36 = tpu.matmul %35, %30, %cst_27 {dimension_numbers = #tpu.dot_dimension_numbers<[1], [0], [0], [1], [0, 0, 1, 1], [], []>} : vector<12x16xf32>, vector<16x256xf32>, vector<12x256xf32> -> vector<12x256xf32>
    %37 = arith.maximumf %33, %36 : vector<12x256xf32>
    %c0_28 = arith.constant 0 : index
    %c0_29 = arith.constant 0 : index
    %c0_30 = arith.constant 0 : index
    %38 = vector.load %arg5[%c0_28, %c0_29, %c0_30] : memref<2x256x128xf32, #tpu.memory_space<vmem>>, vector<1x256x128xf32>
    %39 = vector.shape_cast %38 : vector<1x256x128xf32> to vector<256x128xf32>
    %cst_31 = arith.constant dense<0.000000e+00> : vector<12x128xf32>
    %40 = tpu.matmul %37, %39, %cst_31 {dimension_numbers = #tpu.dot_dimension_numbers<[1], [0], [0], [1], [0, 0, 1, 1], [], []>} : vector<12x256xf32>, vector<256x128xf32>, vector<12x128xf32> -> vector<12x128xf32>
    %c1_32 = arith.constant 1 : index
    %c0_33 = arith.constant 0 : index
    %c0_34 = arith.constant 0 : index
    %41 = vector.load %arg5[%c1_32, %c0_33, %c0_34] : memref<2x256x128xf32, #tpu.memory_space<vmem>>, vector<1x256x128xf32>
    %42 = vector.shape_cast %41 : vector<1x256x128xf32> to vector<256x128xf32>
    %cst_35 = arith.constant dense<0.000000e+00> : vector<12x128xf32>
    %43 = tpu.matmul %37, %42, %cst_35 {dimension_numbers = #tpu.dot_dimension_numbers<[1], [0], [0], [1], [0, 0, 1, 1], [], []>} : vector<12x256xf32>, vector<256x128xf32>, vector<12x128xf32> -> vector<12x128xf32>
    %44 = arith.maximumf %40, %43 : vector<12x128xf32>
    %45 = arith.truncf %44 : vector<12x128xf32> to vector<12x128xbf16>
    %46 = vector.extract_strided_slice %45 {offsets = [0, 0], sizes = [8, 128], strides = [1, 1]} : vector<12x128xbf16> to vector<8x128xbf16>
    %c0_36 = arith.constant 0 : index
    %c0_37 = arith.constant 0 : index
    %c0_38 = arith.constant 0 : index
    %47 = vector.load %arg6[%c0_36, %c0_37, %c0_38] : memref<5x128x256xbf16, #tpu.memory_space<vmem>>, vector<1x128x256xbf16>
    %48 = vector.shape_cast %47 : vector<1x128x256xbf16> to vector<128x256xbf16>
    %cst_39 = arith.constant dense<0.000000e+00> : vector<8x256xf32>
    %49 = tpu.matmul %46, %48, %cst_39 {dimension_numbers = #tpu.dot_dimension_numbers<[1], [0], [0], [1], [0, 0, 1, 1], [], []>} : vector<8x128xbf16>, vector<128x256xbf16>, vector<8x256xf32> -> vector<8x256xf32>
    %50 = vector.extract_strided_slice %45 {offsets = [1, 0], sizes = [8, 128], strides = [1, 1]} : vector<12x128xbf16> to vector<8x128xbf16>
    %c1_40 = arith.constant 1 : index
    %c0_41 = arith.constant 0 : index
    %c0_42 = arith.constant 0 : index
    %51 = vector.load %arg6[%c1_40, %c0_41, %c0_42] : memref<5x128x256xbf16, #tpu.memory_space<vmem>>, vector<1x128x256xbf16>
    %52 = vector.shape_cast %51 : vector<1x128x256xbf16> to vector<128x256xbf16>
    %cst_43 = arith.constant dense<0.000000e+00> : vector<8x256xf32>
    %53 = tpu.matmul %50, %52, %cst_43 {dimension_numbers = #tpu.dot_dimension_numbers<[1], [0], [0], [1], [0, 0, 1, 1], [], []>} : vector<8x128xbf16>, vector<128x256xbf16>, vector<8x256xf32> -> vector<8x256xf32>
    %54 = arith.addf %49, %53 : vector<8x256xf32>
    %55 = vector.extract_strided_slice %45 {offsets = [2, 0], sizes = [8, 128], strides = [1, 1]} : vector<12x128xbf16> to vector<8x128xbf16>
    %c2_44 = arith.constant 2 : index
    %c0_45 = arith.constant 0 : index
    %c0_46 = arith.constant 0 : index
    %56 = vector.load %arg6[%c2_44, %c0_45, %c0_46] : memref<5x128x256xbf16, #tpu.memory_space<vmem>>, vector<1x128x256xbf16>
    %57 = vector.shape_cast %56 : vector<1x128x256xbf16> to vector<128x256xbf16>
    %cst_47 = arith.constant dense<0.000000e+00> : vector<8x256xf32>
    %58 = tpu.matmul %55, %57, %cst_47 {dimension_numbers = #tpu.dot_dimension_numbers<[1], [0], [0], [1], [0, 0, 1, 1], [], []>} : vector<8x128xbf16>, vector<128x256xbf16>, vector<8x256xf32> -> vector<8x256xf32>
    %59 = arith.addf %54, %58 : vector<8x256xf32>
    %60 = vector.extract_strided_slice %45 {offsets = [3, 0], sizes = [8, 128], strides = [1, 1]} : vector<12x128xbf16> to vector<8x128xbf16>
    %c3_48 = arith.constant 3 : index
    %c0_49 = arith.constant 0 : index
    %c0_50 = arith.constant 0 : index
    %61 = vector.load %arg6[%c3_48, %c0_49, %c0_50] : memref<5x128x256xbf16, #tpu.memory_space<vmem>>, vector<1x128x256xbf16>
    %62 = vector.shape_cast %61 : vector<1x128x256xbf16> to vector<128x256xbf16>
    %cst_51 = arith.constant dense<0.000000e+00> : vector<8x256xf32>
    %63 = tpu.matmul %60, %62, %cst_51 {dimension_numbers = #tpu.dot_dimension_numbers<[1], [0], [0], [1], [0, 0, 1, 1], [], []>} : vector<8x128xbf16>, vector<128x256xbf16>, vector<8x256xf32> -> vector<8x256xf32>
    %64 = arith.addf %59, %63 : vector<8x256xf32>
    %65 = vector.extract_strided_slice %45 {offsets = [4, 0], sizes = [8, 128], strides = [1, 1]} : vector<12x128xbf16> to vector<8x128xbf16>
    %c4_52 = arith.constant 4 : index
    %c0_53 = arith.constant 0 : index
    %c0_54 = arith.constant 0 : index
    %66 = vector.load %arg6[%c4_52, %c0_53, %c0_54] : memref<5x128x256xbf16, #tpu.memory_space<vmem>>, vector<1x128x256xbf16>
    %67 = vector.shape_cast %66 : vector<1x128x256xbf16> to vector<128x256xbf16>
    %cst_55 = arith.constant dense<0.000000e+00> : vector<8x256xf32>
    %68 = tpu.matmul %65, %67, %cst_55 {dimension_numbers = #tpu.dot_dimension_numbers<[1], [0], [0], [1], [0, 0, 1, 1], [], []>} : vector<8x128xbf16>, vector<128x256xbf16>, vector<8x256xf32> -> vector<8x256xf32>
    %69 = arith.addf %64, %68 : vector<8x256xf32>
    %c0_56 = arith.constant 0 : index
    %c0_57 = arith.constant 0 : index
    %70 = vector.load %arg7[%c0_56, %c0_57] : memref<1x256xf32, #tpu.memory_space<vmem>>, vector<1x256xf32>
    %71 = vector.broadcast %70 : vector<1x256xf32> to vector<8x256xf32>
    %72 = arith.addf %69, %71 : vector<8x256xf32>
    %cst_58 = arith.constant 0.000000e+00 : f32
    %73 = vector.broadcast %cst_58 : f32 to vector<8x256xf32>
    %74 = arith.maximumf %72, %73 : vector<8x256xf32>
    %c0_59 = arith.constant 0 : index
    %c0_60 = arith.constant 0 : index
    %c0_61 = arith.constant 0 : index
    %75 = vector.load %arg8[%c0_59, %c0_60, %c0_61] : memref<2x4x8xf32, #tpu.memory_space<vmem>>, vector<1x4x8xf32>
    %76 = vector.shape_cast %75 : vector<1x4x8xf32> to vector<4x8xf32>
    %cst_62 = arith.constant dense<0.000000e+00> : vector<4x256xf32>
    %77 = tpu.matmul %76, %74, %cst_62 {dimension_numbers = #tpu.dot_dimension_numbers<[1], [0], [0], [1], [0, 0, 1, 1], [], []>} : vector<4x8xf32>, vector<8x256xf32>, vector<4x256xf32> -> vector<4x256xf32>
    %c1_63 = arith.constant 1 : index
    %c0_64 = arith.constant 0 : index
    %c0_65 = arith.constant 0 : index
    %78 = vector.load %arg8[%c1_63, %c0_64, %c0_65] : memref<2x4x8xf32, #tpu.memory_space<vmem>>, vector<1x4x8xf32>
    %79 = vector.shape_cast %78 : vector<1x4x8xf32> to vector<4x8xf32>
    %cst_66 = arith.constant dense<0.000000e+00> : vector<4x256xf32>
    %80 = tpu.matmul %79, %74, %cst_66 {dimension_numbers = #tpu.dot_dimension_numbers<[1], [0], [0], [1], [0, 0, 1, 1], [], []>} : vector<4x8xf32>, vector<8x256xf32>, vector<4x256xf32> -> vector<4x256xf32>
    %81 = arith.maximumf %77, %80 : vector<4x256xf32>
    %c0_67 = arith.constant 0 : index
    %c0_68 = arith.constant 0 : index
    %c0_69 = arith.constant 0 : index
    %82 = vector.load %arg9[%c0_67, %c0_68, %c0_69] : memref<2x256x128xf32, #tpu.memory_space<vmem>>, vector<1x256x128xf32>
    %83 = vector.shape_cast %82 : vector<1x256x128xf32> to vector<256x128xf32>
    %cst_70 = arith.constant dense<0.000000e+00> : vector<4x128xf32>
    %84 = tpu.matmul %81, %83, %cst_70 {dimension_numbers = #tpu.dot_dimension_numbers<[1], [0], [0], [1], [0, 0, 1, 1], [], []>} : vector<4x256xf32>, vector<256x128xf32>, vector<4x128xf32> -> vector<4x128xf32>
    %c1_71 = arith.constant 1 : index
    %c0_72 = arith.constant 0 : index
    %c0_73 = arith.constant 0 : index
    %85 = vector.load %arg9[%c1_71, %c0_72, %c0_73] : memref<2x256x128xf32, #tpu.memory_space<vmem>>, vector<1x256x128xf32>
    %86 = vector.shape_cast %85 : vector<1x256x128xf32> to vector<256x128xf32>
    %cst_74 = arith.constant dense<0.000000e+00> : vector<4x128xf32>
    %87 = tpu.matmul %81, %86, %cst_74 {dimension_numbers = #tpu.dot_dimension_numbers<[1], [0], [0], [1], [0, 0, 1, 1], [], []>} : vector<4x256xf32>, vector<256x128xf32>, vector<4x128xf32> -> vector<4x128xf32>
    %88 = arith.maximumf %84, %87 : vector<4x128xf32>
    %89 = arith.truncf %88 : vector<4x128xf32> to vector<4x128xbf16>
    %90 = vector.extract_strided_slice %89 {offsets = [0, 0], sizes = [1, 128], strides = [1, 1]} : vector<4x128xbf16> to vector<1x128xbf16>
    %c0_75 = arith.constant 0 : index
    %c0_76 = arith.constant 0 : index
    %c0_77 = arith.constant 0 : index
    %91 = vector.load %arg10[%c0_75, %c0_76, %c0_77] : memref<4x128x256xbf16, #tpu.memory_space<vmem>>, vector<1x128x256xbf16>
    %92 = vector.shape_cast %91 : vector<1x128x256xbf16> to vector<128x256xbf16>
    %cst_78 = arith.constant dense<0.000000e+00> : vector<1x256xf32>
    %93 = tpu.matmul %90, %92, %cst_78 {dimension_numbers = #tpu.dot_dimension_numbers<[1], [0], [0], [1], [0, 0, 1, 1], [], []>} : vector<1x128xbf16>, vector<128x256xbf16>, vector<1x256xf32> -> vector<1x256xf32>
    %94 = vector.extract_strided_slice %89 {offsets = [1, 0], sizes = [1, 128], strides = [1, 1]} : vector<4x128xbf16> to vector<1x128xbf16>
    %c1_79 = arith.constant 1 : index
    %c0_80 = arith.constant 0 : index
    %c0_81 = arith.constant 0 : index
    %95 = vector.load %arg10[%c1_79, %c0_80, %c0_81] : memref<4x128x256xbf16, #tpu.memory_space<vmem>>, vector<1x128x256xbf16>
    %96 = vector.shape_cast %95 : vector<1x128x256xbf16> to vector<128x256xbf16>
    %cst_82 = arith.constant dense<0.000000e+00> : vector<1x256xf32>
    %97 = tpu.matmul %94, %96, %cst_82 {dimension_numbers = #tpu.dot_dimension_numbers<[1], [0], [0], [1], [0, 0, 1, 1], [], []>} : vector<1x128xbf16>, vector<128x256xbf16>, vector<1x256xf32> -> vector<1x256xf32>
    %98 = arith.addf %93, %97 : vector<1x256xf32>
    %99 = vector.extract_strided_slice %89 {offsets = [2, 0], sizes = [1, 128], strides = [1, 1]} : vector<4x128xbf16> to vector<1x128xbf16>
    %c2_83 = arith.constant 2 : index
    %c0_84 = arith.constant 0 : index
    %c0_85 = arith.constant 0 : index
    %100 = vector.load %arg10[%c2_83, %c0_84, %c0_85] : memref<4x128x256xbf16, #tpu.memory_space<vmem>>, vector<1x128x256xbf16>
    %101 = vector.shape_cast %100 : vector<1x128x256xbf16> to vector<128x256xbf16>
    %cst_86 = arith.constant dense<0.000000e+00> : vector<1x256xf32>
    %102 = tpu.matmul %99, %101, %cst_86 {dimension_numbers = #tpu.dot_dimension_numbers<[1], [0], [0], [1], [0, 0, 1, 1], [], []>} : vector<1x128xbf16>, vector<128x256xbf16>, vector<1x256xf32> -> vector<1x256xf32>
    %103 = arith.addf %98, %102 : vector<1x256xf32>
    %104 = vector.extract_strided_slice %89 {offsets = [3, 0], sizes = [1, 128], strides = [1, 1]} : vector<4x128xbf16> to vector<1x128xbf16>
    %c3_87 = arith.constant 3 : index
    %c0_88 = arith.constant 0 : index
    %c0_89 = arith.constant 0 : index
    %105 = vector.load %arg10[%c3_87, %c0_88, %c0_89] : memref<4x128x256xbf16, #tpu.memory_space<vmem>>, vector<1x128x256xbf16>
    %106 = vector.shape_cast %105 : vector<1x128x256xbf16> to vector<128x256xbf16>
    %cst_90 = arith.constant dense<0.000000e+00> : vector<1x256xf32>
    %107 = tpu.matmul %104, %106, %cst_90 {dimension_numbers = #tpu.dot_dimension_numbers<[1], [0], [0], [1], [0, 0, 1, 1], [], []>} : vector<1x128xbf16>, vector<128x256xbf16>, vector<1x256xf32> -> vector<1x256xf32>
    %108 = arith.addf %103, %107 : vector<1x256xf32>
    %c0_91 = arith.constant 0 : index
    %c0_92 = arith.constant 0 : index
    %109 = vector.load %arg11[%c0_91, %c0_92] : memref<1x256xf32, #tpu.memory_space<vmem>>, vector<1x256xf32>
    %110 = arith.addf %108, %109 : vector<1x256xf32>
    %cst_93 = arith.constant 0.000000e+00 : f32
    %111 = vector.broadcast %cst_93 : f32 to vector<1x256xf32>
    %112 = arith.maximumf %110, %111 : vector<1x256xf32>
    %c0_94 = arith.constant 0 : index
    %c0_95 = arith.constant 0 : index
    %113 = vector.load %arg12[%c0_94, %c0_95] : memref<256x2xf32, #tpu.memory_space<vmem>>, vector<256x2xf32>
    %cst_96 = arith.constant dense<0.000000e+00> : vector<1x2xf32>
    %114 = tpu.matmul %112, %113, %cst_96 {dimension_numbers = #tpu.dot_dimension_numbers<[1], [0], [0], [1], [0, 0, 1, 1], [], []>} : vector<1x256xf32>, vector<256x2xf32>, vector<1x2xf32> -> vector<1x2xf32>
    %c0_97 = arith.constant 0 : index
    %c0_98 = arith.constant 0 : index
    %115 = vector.load %arg13[%c0_97, %c0_98] : memref<1x2xf32, #tpu.memory_space<vmem>>, vector<1x2xf32>
    %116 = arith.addf %114, %115 : vector<1x2xf32>
    %c0_99 = arith.constant 0 : index
    %c0_100 = arith.constant 0 : index
    %c0_101 = arith.constant 0 : index
    %117 = vector.load %arg14[%c0_99, %c0_100, %c0_101] : memref<1x1x2xf32, #tpu.memory_space<vmem>>, vector<1x1x2xf32>
    %118 = vector.shape_cast %117 : vector<1x1x2xf32> to vector<1x2xf32>
    %119 = vector.shape_cast %116 : vector<1x2xf32> to vector<1x1x2xf32>
    tpu.vector_store %arg14[%c0_99, %c0_100, %c0_101], %119 {strides = array<i32>} : memref<1x1x2xf32, #tpu.memory_space<vmem>>, vector<1x1x2xf32>,
    return
  }
  func.func @transform_0(%arg0: i32) -> (i32, i32, i32) {
    %c0_i32 = arith.constant 0 : i32
    %c0_i32_0 = arith.constant 0 : i32
    %c0_i32_1 = arith.constant 0 : i32
    return %arg0, %c0_i32, %c0_i32_0 : i32, i32, i32
  }
  func.func @transform_1(%arg0: i32) -> (i32, i32, i32) {
    %c0_i32 = arith.constant 0 : i32
    %c0_i32_0 = arith.constant 0 : i32
    %c0_i32_1 = arith.constant 0 : i32
    %c0_i32_2 = arith.constant 0 : i32
    return %c0_i32, %c0_i32_0, %c0_i32_1 : i32, i32, i32
  }
  func.func @transform_2(%arg0: i32) -> (i32, i32) {
    %c0_i32 = arith.constant 0 : i32
    %c0_i32_0 = arith.constant 0 : i32
    %c0_i32_1 = arith.constant 0 : i32
    return %c0_i32, %c0_i32_0 : i32, i32
  }
  func.func @transform_3(%arg0: i32) -> (i32, i32, i32) {
    %c0_i32 = arith.constant 0 : i32
    %c0_i32_0 = arith.constant 0 : i32
    %c0_i32_1 = arith.constant 0 : i32
    %c0_i32_2 = arith.constant 0 : i32
    return %c0_i32, %c0_i32_0, %c0_i32_1 : i32, i32, i32
  }
  func.func @transform_4(%arg0: i32) -> (i32, i32, i32) {
    %c0_i32 = arith.constant 0 : i32
    %c0_i32_0 = arith.constant 0 : i32
    %c0_i32_1 = arith.constant 0 : i32
    %c0_i32_2 = arith.constant 0 : i32
    return %c0_i32, %c0_i32_0, %c0_i32_1 : i32, i32, i32
  }
  func.func @transform_5(%arg0: i32) -> (i32, i32, i32) {
    %c0_i32 = arith.constant 0 : i32
    %c0_i32_0 = arith.constant 0 : i32
    %c0_i32_1 = arith.constant 0 : i32
    %c0_i32_2 = arith.constant 0 : i32
    return %c0_i32, %c0_i32_0, %c0_i32_1 : i32, i32, i32
  }
  func.func @transform_6(%arg0: i32) -> (i32, i32) {
    %c0_i32 = arith.constant 0 : i32
    %c0_i32_0 = arith.constant 0 : i32
    %c0_i32_1 = arith.constant 0 : i32
    return %c0_i32, %c0_i32_0 : i32, i32
  }
  func.func @transform_7(%arg0: i32) -> (i32, i32, i32) {
    %c0_i32 = arith.constant 0 : i32
    %c0_i32_0 = arith.constant 0 : i32
    %c0_i32_1 = arith.constant 0 : i32
    %c0_i32_2 = arith.constant 0 : i32
    return %c0_i32, %c0_i32_0, %c0_i32_1 : i32, i32, i32
  }
  func.func @transform_8(%arg0: i32) -> (i32, i32, i32) {
    %c0_i32 = arith.constant 0 : i32
    %c0_i32_0 = arith.constant 0 : i32
    %c0_i32_1 = arith.constant 0 : i32
    %c0_i32_2 = arith.constant 0 : i32
    return %c0_i32, %c0_i32_0, %c0_i32_1 : i32, i32, i32
  }
  func.func @transform_9(%arg0: i32) -> (i32, i32, i32) {
    %c0_i32 = arith.constant 0 : i32
    %c0_i32_0 = arith.constant 0 : i32
    %c0_i32_1 = arith.constant 0 : i32
    %c0_i32_2 = arith.constant 0 : i32
    return %c0_i32, %c0_i32_0, %c0_i32_1 : i32, i32, i32
  }
  func.func @transform_10(%arg0: i32) -> (i32, i32) {
    %c0_i32 = arith.constant 0 : i32
    %c0_i32_0 = arith.constant 0 : i32
    %c0_i32_1 = arith.constant 0 : i32
    return %c0_i32, %c0_i32_0 : i32, i32
  }
  func.func @transform_11(%arg0: i32) -> (i32, i32) {
    %c0_i32 = arith.constant 0 : i32
    %c0_i32_0 = arith.constant 0 : i32
    %c0_i32_1 = arith.constant 0 : i32
    return %c0_i32, %c0_i32_0 : i32, i32
  }
  func.func @transform_12(%arg0: i32) -> (i32, i32) {
    %c0_i32 = arith.constant 0 : i32
    %c0_i32_0 = arith.constant 0 : i32
    %c0_i32_1 = arith.constant 0 : i32
    return %c0_i32, %c0_i32_0 : i32, i32
  }
  func.func @transform_13(%arg0: i32) -> (i32, i32, i32) {
    %c0_i32 = arith.constant 0 : i32
    %c0_i32_0 = arith.constant 0 : i32
    %c0_i32_1 = arith.constant 0 : i32
    return %arg0, %c0_i32, %c0_i32_0 : i32, i32, i32
  }
}

</mosaic_0001>

<llo_original>
// kernel: cnn1_forward.1
$region0: #{cnn1_forward.1}
  #allocation0 [shape = 'u32[]', space=smem, size = 0x4, offset = 0x4, fixed_abs, tag = 'smem constant byte address 0x4 - core index']
  #allocation1 [shape = 'u32[144,128]{1,0:T(1,128)}', space=vmem, size = 0x12000, scoped, tag = 'internal scratch']
  %s0 = inlined_call_operand.vmem [shape: f32[2,20,16], index: 0, kind: input, shape index: {}]
  %s1 = inlined_call_operand.vmem [shape: f32[5,16,256], index: 1, kind: input, shape index: {}]
  %s2 = inlined_call_operand.vmem [shape: f32[1,256], index: 2, kind: input, shape index: {}]
  %s3 = inlined_call_operand.vmem [shape: f32[2,12,16], index: 3, kind: input, shape index: {}]
  %s4 = inlined_call_operand.hbm [shape: f32[2,256,128], index: 4, kind: input, shape index: {}]
  %s5 = inlined_call_operand.hbm [shape: bf16[5,128,256], index: 5, kind: input, shape index: {}]
  %s6 = inlined_call_operand.vmem [shape: f32[1,256], index: 6, kind: input, shape index: {}]
  %s7 = inlined_call_operand.vmem [shape: f32[2,4,8], index: 7, kind: input, shape index: {}]
  %s8 = inlined_call_operand.hbm [shape: f32[2,256,128], index: 8, kind: input, shape index: {}]
  %s9 = inlined_call_operand.hbm [shape: bf16[4,128,256], index: 9, kind: input, shape index: {}]
  %s10 = inlined_call_operand.vmem [shape: f32[1,256], index: 10, kind: input, shape index: {}]
  %s11 = inlined_call_operand.vmem [shape: f32[256,2], index: 11, kind: input, shape index: {}]
  %s12 = inlined_call_operand.vmem [shape: f32[1,2], index: 12, kind: input, shape index: {}]
  %s13 = inlined_call_operand.hbm [shape: f32[2,1,2], index: 13, kind: output, shape index: {}]
  %s14 = sld [smem:[#allocation0]]
  $region101: #{cnn1_forward.1} parent=0
    _
  %s16 = ssub.s32 1, %s14
  %s17 = scalar_select 0, %s16, %s14
  $region1: #{cnn1_forward.1} parent=0
    #allocation2 [shape = 'u8[262144]{0}', space=vmem, size = 0x40000, scoped, tag = 'input window, operand 4, single buffered']
    #allocation3 [shape = 's32[2]{0}', space=sflag, size = 0x8, scoped, tag = 'scoped memory for cnn1_forward.1']
    #allocation4 [shape = 's32[2]{0}', space=sflag, size = 0x8, scoped, tag = 'scoped memory for cnn1_forward.1']
    #allocation5 [shape = 'u8[327680]{0}', space=vmem, size = 0x50000, scoped, tag = 'input window, operand 5, single buffered']
    #allocation6 [shape = 's32[1]{0}', space=sflag, size = 0x4, scoped, tag = 'scoped memory for cnn1_forward.1']
    #allocation7 [shape = 'u8[262144]{0}', space=vmem, size = 0x40000, scoped, tag = 'input window, operand 8, single buffered']
    #allocation8 [shape = 'u8[262144]{0}', space=vmem, size = 0x40000, scoped, tag = 'input window, operand 9, single buffered']
    #allocation9 [shape = 's32[1]{0}', space=sflag, size = 0x4, scoped, tag = 'scoped memory for cnn1_forward.1']
    #allocation10 [shape = 'u8[1024]{0}', space=vmem, size = 0x400, scoped, tag = 'output window, operand 0']
    %18 = vsyncpa [#allocation3], 0
    %19 = vsyncpa [#allocation6], 0
    %20 = vsyncpa [#allocation9], 0
    %21 = vsyncpa [#allocation4], 0
    %s22 = scalar_lea.sflag [#allocation4], 1
    %23 = vsyncpa %s22, 0
    loop: start=0, step=1, limit=4
    $region2: #{cnn1_forward.1} parent=1 // loop_pre_header
      _
    $region3: #{cnn1_forward.1} parent=1 // loop_header
      %s25 = sphi 0, %s29
      %p26 = scmp.ge.s32.totalorder %s25, 4
      %s35 = sphi 0, %s37
      %s38 = sphi 0, %s35
      %s39 = sphi 0, %s38
      %s55 = sphi 0, %s39
      %s59 = sphi 0, %s59
      %s61 = sphi 0, %s59
      %s62 = sphi 0, %s61
      %s76 = sphi 0, %s62
      %s80 = sphi 0, %s80
      %s82 = sphi 0, %s80
      %s83 = sphi 0, %s82
      %s97 = sphi 0, %s83
      %s101 = sphi 0, %s101
      %s103 = sphi 0, %s101
      %s104 = sphi 0, %s103
      %s118 = sphi 0, %s104
      %s122 = sphi 0, %s122
      %s124 = sphi 0, %s122
      %s125 = sphi 0, %s124
      %s139 = sphi 0, %s125
      %s143 = sphi 0, %s143
      %s145 = sphi 0, %s143
      %s146 = sphi 0, %s145
      %s160 = sphi 0, %s146
      %s164 = sphi 0, %s164
      %s166 = sphi 0, %s164
      %s167 = sphi 0, %s166
      %s181 = sphi 0, %s167
      %s185 = sphi 0, %s185
      %s187 = sphi 0, %s185
      %s188 = sphi 0, %s187
      %s202 = sphi 0, %s188
      %s206 = sphi 0, %s206
      %s208 = sphi 0, %s206
      %s209 = sphi 0, %s208
      %s223 = sphi 0, %s209
      %s227 = sphi 0, %s227
      %s229 = sphi 0, %s227
      %s230 = sphi 0, %s229
      %s244 = sphi 0, %s230
      %s248 = sphi 0, %s248
      %s250 = sphi 0, %s248
      %s251 = sphi 0, %s250
      %s265 = sphi 0, %s251
      %s269 = sphi 0, %s269
      %s271 = sphi 0, %s269
      %s272 = sphi 0, %s271
      %s286 = sphi 0, %s272
      %s290 = sphi 0, %s290
      %s292 = sphi 0, %s290
      %s293 = sphi 0, %s292
      %s307 = sphi 0, %s293
      %s313 = sphi 0, %s315
      %s316 = sphi 0, %s313
      %s317 = sphi 0, %s316
      %s333 = sphi 0, %s317
    $region4: #{cnn1_forward.1} parent=1 // loop_header_branch
      %28 = sbr.rel (%p26) target = $region8
    $region5: #{cnn1_forward.1} parent=1 // loop_body
      %s30 = ssub.s32 %s25, 1
      %s31 = ssub.s32 %s25, 2
      %s32 = sadd.s32 %s25, 1
      %s33 = ssub.s32 %s25, %s32
      %p34 = scmp.eq.s32.totalorder %s33, 0
      %s36 = sadd.s32 %s35, 1
      %s37 = scalar_select %p34, %s35, %s36
      %p40 = pneg %p34
      %p41 = scmp.eq.s32.totalorder %s25, 1
      %p42 = por %p40, %p41
      %p43 = scmp.ne.s32.totalorder %s35, %s38
      %p44 = scmp.eq.s32.totalorder %s25, 0
      %p45 = por %p43, %p44
      %p46 = scmp.ne.s32.totalorder %s35, %s38
      %p47 = scmp.eq.s32.totalorder %s30, 1
      %p48 = por %p46, %p47
      %p49 = scmp.ne.s32.totalorder %s38, %s39
      %p50 = scmp.eq.s32.totalorder %s30, 0
      %p51 = por %p49, %p50
      %p52 = scmp.ne.s32.totalorder %s38, %s39
      %p53 = scmp.eq.s32.totalorder %s31, 1
      %p54 = por %p52, %p53
      %p56 = scmp.ne.s32.totalorder %s39, %s55
      %p57 = scmp.eq.s32.totalorder %s31, 0
      %p58 = por %p56, %p57
      %s60 = sadd.s32 %s59, 1
      %p63 = scmp.eq.s32.totalorder %s25, 1
      %p64 = scmp.ne.s32.totalorder %s59, %s61
      %p65 = scmp.eq.s32.totalorder %s25, 0
      %p66 = por %p64, %p65
      %p67 = scmp.ne.s32.totalorder %s59, %s61
      %p68 = scmp.eq.s32.totalorder %s30, 1
      %p69 = por %p67, %p68
      %p70 = scmp.ne.s32.totalorder %s61, %s62
      %p71 = scmp.eq.s32.totalorder %s30, 0
      %p72 = por %p70, %p71
      %p73 = scmp.ne.s32.totalorder %s61, %s62
      %p74 = scmp.eq.s32.totalorder %s31, 1
      %p75 = por %p73, %p74
      %p77 = scmp.ne.s32.totalorder %s62, %s76
      %p78 = scmp.eq.s32.totalorder %s31, 0
      %p79 = por %p77, %p78
      %s81 = sadd.s32 %s80, 1
      %p84 = scmp.eq.s32.totalorder %s25, 1
      %p85 = scmp.ne.s32.totalorder %s80, %s82
      %p86 = scmp.eq.s32.totalorder %s25, 0
      %p87 = por %p85, %p86
      %p88 = scmp.ne.s32.totalorder %s80, %s82
      %p89 = scmp.eq.s32.totalorder %s30, 1
      %p90 = por %p88, %p89
      %p91 = scmp.ne.s32.totalorder %s82, %s83
      %p92 = scmp.eq.s32.totalorder %s30, 0
      %p93 = por %p91, %p92
      %p94 = scmp.ne.s32.totalorder %s82, %s83
      %p95 = scmp.eq.s32.totalorder %s31, 1
      %p96 = por %p94, %p95
      %p98 = scmp.ne.s32.totalorder %s83, %s97
      %p99 = scmp.eq.s32.totalorder %s31, 0
      %p100 = por %p98, %p99
      %s102 = sadd.s32 %s101, 1
      %p105 = scmp.eq.s32.totalorder %s25, 1
      %p106 = scmp.ne.s32.totalorder %s101, %s103
      %p107 = scmp.eq.s32.totalorder %s25, 0
      %p108 = por %p106, %p107
      %p109 = scmp.ne.s32.totalorder %s101, %s103
      %p110 = scmp.eq.s32.totalorder %s30, 1
      %p111 = por %p109, %p110
      %p112 = scmp.ne.s32.totalorder %s103, %s104
      %p113 = scmp.eq.s32.totalorder %s30, 0
      %p114 = por %p112, %p113
      %p115 = scmp.ne.s32.totalorder %s103, %s104
      %p116 = scmp.eq.s32.totalorder %s31, 1
      %p117 = por %p115, %p116
      %p119 = scmp.ne.s32.totalorder %s104, %s118
      %p120 = scmp.eq.s32.totalorder %s31, 0
      %p121 = por %p119, %p120
      %s123 = sadd.s32 %s122, 1
      %p126 = scmp.eq.s32.totalorder %s25, 1
      %p127 = scmp.ne.s32.totalorder %s122, %s124
      %p128 = scmp.eq.s32.totalorder %s25, 0
      %p129 = por %p127, %p128
      %p130 = scmp.ne.s32.totalorder %s122, %s124
      %p131 = scmp.eq.s32.totalorder %s30, 1
      %p132 = por %p130, %p131
      %p133 = scmp.ne.s32.totalorder %s124, %s125
      %p134 = scmp.eq.s32.totalorder %s30, 0
      %p135 = por %p133, %p134
      %p136 = scmp.ne.s32.totalorder %s124, %s125
      %p137 = scmp.eq.s32.totalorder %s31, 1
      %p138 = por %p136, %p137
      %p140 = scmp.ne.s32.totalorder %s125, %s139
      %p141 = scmp.eq.s32.totalorder %s31, 0
      %p142 = por %p140, %p141
      %s144 = sadd.s32 %s143, 1
      %p147 = scmp.eq.s32.totalorder %s25, 1
      %p148 = scmp.ne.s32.totalorder %s143, %s145
      %p149 = scmp.eq.s32.totalorder %s25, 0
      %p150 = por %p148, %p149
      %p151 = scmp.ne.s32.totalorder %s143, %s145
      %p152 = scmp.eq.s32.totalorder %s30, 1
      %p153 = por %p151, %p152
      %p154 = scmp.ne.s32.totalorder %s145, %s146
      %p155 = scmp.eq.s32.totalorder %s30, 0
      %p156 = por %p154, %p155
      %p157 = scmp.ne.s32.totalorder %s145, %s146
      %p158 = scmp.eq.s32.totalorder %s31, 1
      %p159 = por %p157, %p158
      %p161 = scmp.ne.s32.totalorder %s146, %s160
      %p162 = scmp.eq.s32.totalorder %s31, 0
      %p163 = por %p161, %p162
      %s165 = sadd.s32 %s164, 1
      %p168 = scmp.eq.s32.totalorder %s25, 1
      %p169 = scmp.ne.s32.totalorder %s164, %s166
      %p170 = scmp.eq.s32.totalorder %s25, 0
      %p171 = por %p169, %p170
      %p172 = scmp.ne.s32.totalorder %s164, %s166
      %p173 = scmp.eq.s32.totalorder %s30, 1
      %p174 = por %p172, %p173
      %p175 = scmp.ne.s32.totalorder %s166, %s167
      %p176 = scmp.eq.s32.totalorder %s30, 0
      %p177 = por %p175, %p176
      %p178 = scmp.ne.s32.totalorder %s166, %s167
      %p179 = scmp.eq.s32.totalorder %s31, 1
      %p180 = por %p178, %p179
      %p182 = scmp.ne.s32.totalorder %s167, %s181
      %p183 = scmp.eq.s32.totalorder %s31, 0
      %p184 = por %p182, %p183
      %s186 = sadd.s32 %s185, 1
      %p189 = scmp.eq.s32.totalorder %s25, 1
      %p190 = scmp.ne.s32.totalorder %s185, %s187
      %p191 = scmp.eq.s32.totalorder %s25, 0
      %p192 = por %p190, %p191
      %p193 = scmp.ne.s32.totalorder %s185, %s187
      %p194 = scmp.eq.s32.totalorder %s30, 1
      %p195 = por %p193, %p194
      %p196 = scmp.ne.s32.totalorder %s187, %s188
      %p197 = scmp.eq.s32.totalorder %s30, 0
      %p198 = por %p196, %p197
      %p199 = scmp.ne.s32.totalorder %s187, %s188
      %p200 = scmp.eq.s32.totalorder %s31, 1
      %p201 = por %p199, %p200
      %p203 = scmp.ne.s32.totalorder %s188, %s202
      %p204 = scmp.eq.s32.totalorder %s31, 0
      %p205 = por %p203, %p204
      %s207 = sadd.s32 %s206, 1
      %p210 = scmp.eq.s32.totalorder %s25, 1
      %p211 = scmp.ne.s32.totalorder %s206, %s208
      %p212 = scmp.eq.s32.totalorder %s25, 0
      %p213 = por %p211, %p212
      %p214 = scmp.ne.s32.totalorder %s206, %s208
      %p215 = scmp.eq.s32.totalorder %s30, 1
      %p216 = por %p214, %p215
      %p217 = scmp.ne.s32.totalorder %s208, %s209
      %p218 = scmp.eq.s32.totalorder %s30, 0
      %p219 = por %p217, %p218
      %p220 = scmp.ne.s32.totalorder %s208, %s209
      %p221 = scmp.eq.s32.totalorder %s31, 1
      %p222 = por %p220, %p221
      %p224 = scmp.ne.s32.totalorder %s209, %s223
      %p225 = scmp.eq.s32.totalorder %s31, 0
      %p226 = por %p224, %p225
      %s228 = sadd.s32 %s227, 1
      %p231 = scmp.eq.s32.totalorder %s25, 1
      %p232 = scmp.ne.s32.totalorder %s227, %s229
      %p233 = scmp.eq.s32.totalorder %s25, 0
      %p234 = por %p232, %p233
      %p235 = scmp.ne.s32.totalorder %s227, %s229
      %p236 = scmp.eq.s32.totalorder %s30, 1
      %p237 = por %p235, %p236
      %p238 = scmp.ne.s32.totalorder %s229, %s230
      %p239 = scmp.eq.s32.totalorder %s30, 0
      %p240 = por %p238, %p239
      %p241 = scmp.ne.s32.totalorder %s229, %s230
      %p242 = scmp.eq.s32.totalorder %s31, 1
      %p243 = por %p241, %p242
      %p245 = scmp.ne.s32.totalorder %s230, %s244
      %p246 = scmp.eq.s32.totalorder %s31, 0
      %p247 = por %p245, %p246
      %s249 = sadd.s32 %s248, 1
      %p252 = scmp.eq.s32.totalorder %s25, 1
      %p253 = scmp.ne.s32.totalorder %s248, %s250
      %p254 = scmp.eq.s32.totalorder %s25, 0
      %p255 = por %p253, %p254
      %p256 = scmp.ne.s32.totalorder %s248, %s250
      %p257 = scmp.eq.s32.totalorder %s30, 1
      %p258 = por %p256, %p257
      %p259 = scmp.ne.s32.totalorder %s250, %s251
      %p260 = scmp.eq.s32.totalorder %s30, 0
      %p261 = por %p259, %p260
      %p262 = scmp.ne.s32.totalorder %s250, %s251
      %p263 = scmp.eq.s32.totalorder %s31, 1
      %p264 = por %p262, %p263
      %p266 = scmp.ne.s32.totalorder %s251, %s265
      %p267 = scmp.eq.s32.totalorder %s31, 0
      %p268 = por %p266, %p267
      %s270 = sadd.s32 %s269, 1
      %p273 = scmp.eq.s32.totalorder %s25, 1
      %p274 = scmp.ne.s32.totalorder %s269, %s271
      %p275 = scmp.eq.s32.totalorder %s25, 0
      %p276 = por %p274, %p275
      %p277 = scmp.ne.s32.totalorder %s269, %s271
      %p278 = scmp.eq.s32.totalorder %s30, 1
      %p279 = por %p277, %p278
      %p280 = scmp.ne.s32.totalorder %s271, %s272
      %p281 = scmp.eq.s32.totalorder %s30, 0
      %p282 = por %p280, %p281
      %p283 = scmp.ne.s32.totalorder %s271, %s272
      %p284 = scmp.eq.s32.totalorder %s31, 1
      %p285 = por %p283, %p284
      %p287 = scmp.ne.s32.totalorder %s272, %s286
      %p288 = scmp.eq.s32.totalorder %s31, 0
      %p289 = por %p287, %p288
      %s291 = sadd.s32 %s290, 1
      %p294 = scmp.eq.s32.totalorder %s25, 1
      %p295 = scmp.ne.s32.totalorder %s290, %s292
      %p296 = scmp.eq.s32.totalorder %s25, 0
      %p297 = por %p295, %p296
      %p298 = scmp.ne.s32.totalorder %s290, %s292
      %p299 = scmp.eq.s32.totalorder %s30, 1
      %p300 = por %p298, %p299
      %p301 = scmp.ne.s32.totalorder %s292, %s293
      %p302 = scmp.eq.s32.totalorder %s30, 0
      %p303 = por %p301, %p302
      %p304 = scmp.ne.s32.totalorder %s292, %s293
      %p305 = scmp.eq.s32.totalorder %s31, 1
      %p306 = por %p304, %p305
      %p308 = scmp.ne.s32.totalorder %s293, %s307
      %p309 = scmp.eq.s32.totalorder %s31, 0
      %p310 = por %p308, %p309
      %s311 = ssub.s32 %s25, %s32
      %p312 = scmp.eq.s32.totalorder %s311, 0
      %s314 = sadd.s32 %s313, 1
      %s315 = scalar_select %p312, %s313, %s314
      %p318 = pneg %p312
      %p319 = scmp.eq.s32.totalorder %s25, 1
      %p320 = por %p318, %p319
      %p321 = scmp.ne.s32.totalorder %s313, %s316
      %p322 = scmp.eq.s32.totalorder %s25, 0
      %p323 = por %p321, %p322
      %p324 = scmp.ne.s32.totalorder %s313, %s316
      %p325 = scmp.eq.s32.totalorder %s30, 1
      %p326 = por %p324, %p325
      %p327 = scmp.ne.s32.totalorder %s316, %s317
      %p328 = scmp.eq.s32.totalorder %s30, 0
      %p329 = por %p327, %p328
      %p330 = scmp.ne.s32.totalorder %s316, %s317
      %p331 = scmp.eq.s32.totalorder %s31, 1
      %p332 = por %p330, %p331
      %p334 = scmp.ne.s32.totalorder %s317, %s333
      %p335 = scmp.eq.s32.totalorder %s31, 0
      %p336 = por %p334, %p335
      %p337 = scmp.le.s32.totalorder 1, %s25
      %p338 = scmp.lt.s32.totalorder %s25, 3
      %p339 = pnand %p337, %p338
      %p340 = pneg %p339
      // Predicated region
      $region9: #{cnn1_forward.1} parent=5 // pred_check
        _
      $region10: #{cnn1_forward.1} parent=5 // pred_check_branch
        %342 = sbr.rel (%p339) target = $region12
      $region11: #{cnn1_forward.1} parent=5 // pred_region
        %s343 = ssub.s32 %s25, 1
        // Predicated region
        $region13: #{cnn1_forward.1} parent=11 // pred_check
          %p344 = pneg %p72
        $region14: #{cnn1_forward.1} parent=11 // pred_check_branch
          %346 = sbr.rel (%p344) target = $region16
        $region15: #{cnn1_forward.1} parent=11 // pred_region
          _
        $region16: #{cnn1_forward.1} parent=11 // pred_fallthru
          _
        // Predicated region
        $region17: #{cnn1_forward.1} parent=11 // pred_check
          %p347 = pneg %p93
        $region18: #{cnn1_forward.1} parent=11 // pred_check_branch
          %349 = sbr.rel (%p347) target = $region20
        $region19: #{cnn1_forward.1} parent=11 // pred_region
          _
        $region20: #{cnn1_forward.1} parent=11 // pred_fallthru
          _
        // Predicated region
        $region21: #{cnn1_forward.1} parent=11 // pred_check
          %p350 = pneg %p114
        $region22: #{cnn1_forward.1} parent=11 // pred_check_branch
          %352 = sbr.rel (%p350) target = $region24
        $region23: #{cnn1_forward.1} parent=11 // pred_region
          _
        $region24: #{cnn1_forward.1} parent=11 // pred_fallthru
          _
        // Predicated region
        $region25: #{cnn1_forward.1} parent=11 // pred_check
          %p353 = pneg %p135
        $region26: #{cnn1_forward.1} parent=11 // pred_check_branch
          %355 = sbr.rel (%p353) target = $region28
        $region27: #{cnn1_forward.1} parent=11 // pred_region
          %s357 = ssub.s32 8192, 8192
          %358 = vsyncadd [#allocation3], %s357
          %s359 = sshll.u32 [#allocation2], 4
          %s360 = int_to_ptr.vmem [resolvable:$true] %s359
          %365 = dma.hbm_to_vmem [thread:$0]  %s4, 8192, %s360, [#allocation3], 128, 128, 8
        $region28: #{cnn1_forward.1} parent=11 // pred_fallthru
          _
        // Predicated region
        $region29: #{cnn1_forward.1} parent=11 // pred_check
          %p366 = pneg %p156
        $region30: #{cnn1_forward.1} parent=11 // pred_check_branch
          %368 = sbr.rel (%p366) target = $region32
        $region31: #{cnn1_forward.1} parent=11 // pred_region
          %s370 = ssub.s32 10240, 10240
          %371 = vsyncadd [#allocation6], %s370
          %s372 = sshll.u32 [#allocation5], 4
          %s373 = int_to_ptr.vmem [resolvable:$true] %s372
          %378 = dma.hbm_to_vmem [thread:$0]  %s5, 10240, %s373, [#allocation6], 128, 128, 8
        $region32: #{cnn1_forward.1} parent=11 // pred_fallthru
          _
        // Predicated region
        $region33: #{cnn1_forward.1} parent=11 // pred_check
          %p379 = pneg %p177
        $region34: #{cnn1_forward.1} parent=11 // pred_check_branch
          %381 = sbr.rel (%p379) target = $region36
        $region35: #{cnn1_forward.1} parent=11 // pred_region
          _
        $region36: #{cnn1_forward.1} parent=11 // pred_fallthru
          _
        // Predicated region
        $region37: #{cnn1_forward.1} parent=11 // pred_check
          %p382 = pneg %p198
        $region38: #{cnn1_forward.1} parent=11 // pred_check_branch
          %384 = sbr.rel (%p382) target = $region40
        $region39: #{cnn1_forward.1} parent=11 // pred_region
          _
        $region40: #{cnn1_forward.1} parent=11 // pred_fallthru
          _
        // Predicated region
        $region41: #{cnn1_forward.1} parent=11 // pred_check
          %p385 = pneg %p219
        $region42: #{cnn1_forward.1} parent=11 // pred_check_branch
          %387 = sbr.rel (%p385) target = $region44
        $region43: #{cnn1_forward.1} parent=11 // pred_region
          %s389 = ssub.s32 8192, 8192
          %390 = vsyncadd [#allocation6], %s389
          %s391 = sshll.u32 [#allocation7], 4
          %s392 = int_to_ptr.vmem [resolvable:$true] %s391
          %397 = dma.hbm_to_vmem [thread:$0]  %s8, 8192, %s392, [#allocation6], 128, 128, 8
        $region44: #{cnn1_forward.1} parent=11 // pred_fallthru
          _
        // Predicated region
        $region45: #{cnn1_forward.1} parent=11 // pred_check
          %p398 = pneg %p240
        $region46: #{cnn1_forward.1} parent=11 // pred_check_branch
          %400 = sbr.rel (%p398) target = $region48
        $region47: #{cnn1_forward.1} parent=11 // pred_region
          %s402 = ssub.s32 8192, 8192
          %403 = vsyncadd [#allocation9], %s402
          %s404 = sshll.u32 [#allocation8], 4
          %s405 = int_to_ptr.vmem [resolvable:$true] %s404
          %410 = dma.hbm_to_vmem [thread:$0]  %s9, 8192, %s405, [#allocation9], 128, 128, 8
        $region48: #{cnn1_forward.1} parent=11 // pred_fallthru
          _
        // Predicated region
        $region49: #{cnn1_forward.1} parent=11 // pred_check
          %p411 = pneg %p261
        $region50: #{cnn1_forward.1} parent=11 // pred_check_branch
          %413 = sbr.rel (%p411) target = $region52
        $region51: #{cnn1_forward.1} parent=11 // pred_region
          _
        $region52: #{cnn1_forward.1} parent=11 // pred_fallthru
          _
        // Predicated region
        $region53: #{cnn1_forward.1} parent=11 // pred_check
          %p414 = pneg %p282
        $region54: #{cnn1_forward.1} parent=11 // pred_check_branch
          %416 = sbr.rel (%p414) target = $region56
        $region55: #{cnn1_forward.1} parent=11 // pred_region
          _
        $region56: #{cnn1_forward.1} parent=11 // pred_fallthru
          _
        // Predicated region
        $region57: #{cnn1_forward.1} parent=11 // pred_check
          %p417 = pneg %p303
        $region58: #{cnn1_forward.1} parent=11 // pred_check_branch
          %419 = sbr.rel (%p417) target = $region60
        $region59: #{cnn1_forward.1} parent=11 // pred_region
          _
        $region60: #{cnn1_forward.1} parent=11 // pred_fallthru
          _
      $region12: #{cnn1_forward.1} parent=5 // pred_fallthru
        _
      %p420 = scmp.lt.s32.totalorder %s25, 2
      // Predicated region
      $region61: #{cnn1_forward.1} parent=5 // pred_check
        %p421 = pneg %p420
      $region62: #{cnn1_forward.1} parent=5 // pred_check_branch
        %423 = sbr.rel (%p421) target = $region64
      $region63: #{cnn1_forward.1} parent=5 // pred_region
        // Predicated region
        $region65: #{cnn1_forward.1} parent=63 // pred_check
          %p424 = pneg %p45
        $region66: #{cnn1_forward.1} parent=63 // pred_check_branch
          %426 = sbr.rel (%p424) target = $region68
        $region67: #{cnn1_forward.1} parent=63 // pred_region
          %p427 = scmp.lt.s32.totalorder %s25, 1
          %s428 = scalar_select %p427, %s25, 1
          %s429 = smul.addr %s428, 3
          %s430 = smul.addr %s429, 8
          %s431 = scalar_lea.vmem %s0, %s430
        $region68: #{cnn1_forward.1} parent=63 // pred_fallthru
          _
      $region64: #{cnn1_forward.1} parent=5 // pred_fallthru
        _
      %p432 = scmp.le.s32.totalorder 1, %s25
      %p433 = scmp.lt.s32.totalorder %s25, 3
      %p434 = pnand %p432, %p433
      %p435 = pneg %p434
      // Predicated region
      $region69: #{cnn1_forward.1} parent=5 // pred_check
        _
      $region70: #{cnn1_forward.1} parent=5 // pred_check_branch
        %437 = sbr.rel (%p434) target = $region72
      $region71: #{cnn1_forward.1} parent=5 // pred_region
        %s438 = ssub.s32 %s25, 1
        // Predicated region
        $region73: #{cnn1_forward.1} parent=71 // pred_check
          %p439 = pneg %p135
        $region74: #{cnn1_forward.1} parent=71 // pred_check_branch
          %441 = sbr.rel (%p439) target = $region76
        $region75: #{cnn1_forward.1} parent=71 // pred_region
          %442 = dma.done [#allocation3], 8192
        $region76: #{cnn1_forward.1} parent=71 // pred_fallthru
          _
        // Predicated region
        $region77: #{cnn1_forward.1} parent=71 // pred_check
          %p443 = pneg %p156
        $region78: #{cnn1_forward.1} parent=71 // pred_check_branch
          %445 = sbr.rel (%p443) target = $region80
        $region79: #{cnn1_forward.1} parent=71 // pred_region
          %446 = dma.done [#allocation6], 10240
        $region80: #{cnn1_forward.1} parent=71 // pred_fallthru
          _
        // Predicated region
        $region81: #{cnn1_forward.1} parent=71 // pred_check
          %p447 = pneg %p219
        $region82: #{cnn1_forward.1} parent=71 // pred_check_branch
          %449 = sbr.rel (%p447) target = $region84
        $region83: #{cnn1_forward.1} parent=71 // pred_region
          %450 = dma.done [#allocation6], 8192
        $region84: #{cnn1_forward.1} parent=71 // pred_fallthru
          _
        // Predicated region
        $region85: #{cnn1_forward.1} parent=71 // pred_check
          %p451 = pneg %p240
        $region86: #{cnn1_forward.1} parent=71 // pred_check_branch
          %453 = sbr.rel (%p451) target = $region88
        $region87: #{cnn1_forward.1} parent=71 // pred_region
          %454 = dma.done [#allocation9], 8192
        $region88: #{cnn1_forward.1} parent=71 // pred_fallthru
          _
        %p455 = scmp.lt.s32.totalorder %s30, 1
        %s456 = scalar_select %p455, %s30, 1
        %s457 = smul.addr %s456, 3
        %s458 = smul.addr %s457, 8
        %s459 = scalar_lea.vmem %s0, %s458
        %p460 = pneg %p51
        %p461 = pneg %p48
        %p462 = pneg %p72
        %p463 = pneg %p69
        %p464 = pneg %p93
        %p465 = pneg %p90
        %p466 = pneg %p114
        %p467 = pneg %p111
        %p468 = pneg %p135
        %p469 = pneg %p132
        %p470 = pneg %p156
        %p471 = pneg %p153
        %p472 = pneg %p177
        %p473 = pneg %p174
        %p474 = pneg %p198
        %p475 = pneg %p195
        %p476 = pneg %p219
        %p477 = pneg %p216
        %p478 = pneg %p240
        %p479 = pneg %p237
        %p480 = pneg %p261
        %p481 = pneg %p258
        %p482 = pneg %p282
        %p483 = pneg %p279
        %p484 = pneg %p303
        %p485 = pneg %p300
        %p486 = pneg %p329
        %p487 = pneg %p326
        %s488 = sand.u32 %s316, 1
        %s489 = scalar_lea.sflag [#allocation4], %s488
        %s490 = sand.u32 %s316, 1
        %s491 = scalar_lea.vmem [#allocation10], %s490
        %p492 = scmp.lt.s32.totalorder %s30, 1
        %s493 = scalar_select %p492, %s30, 1
        %s494 = smul.addr %s493, 3
        %s495 = smul.addr %s494, 8
        %s496 = scalar_lea.vmem %s0, %s495
        %v498 = vld [vmem:[%s496] sm:$0xff]
        %v499 = vld [vmem:[%s496 + $0x8] sm:$0xff]
        %v500 = vld [vmem:[%s496 + $0x10] sm:$0xf]
        %v501 = vld [vmem:[%s1] sm:$0xff]
        %v502 = vld [vmem:[%s1 + $0x8] sm:$0xff]
        %v503 = vld [vmem:[%s1 + $0x10] sm:$0xff]
        %v504 = vld [vmem:[%s1 + $0x18] sm:$0xff]
        %s505 = scalar_lea.vmem %s1, 32
        %v506 = vld [vmem:[%s505] sm:$0xff]
        %v507 = vld [vmem:[%s505 + $0x8] sm:$0xff]
        %v508 = vld [vmem:[%s505 + $0x10] sm:$0xff]
        %v509 = vld [vmem:[%s505 + $0x18] sm:$0xff]
        %vm513 = vcmask 1046528
        %v514 = vrot.slane %v498, 1
        %v515 = vrot.slane %v499, 1
        %v516 = vsel %vm513, %v514, %v515
        %v517 = vrot.slane %v500, 1
        %v518 = vsel %vm513, %v515, %v517
        %vm519 = vcmask 130048
        %v520 = vsel %vm519, %v516, 0
        %v522 = vsel %vm519, %v518, 0
        %524 = vmatprep.subr.mxu0 %v507
        %525 = vmatpush1.msra.mxu0 %v506
        %526 = vmatprep.subr.mxu0 %v509
        %527 = vmatpush1.msra.mxu0 %v508
        %528 = vmatprep.subr.mxu0 0.0
        %529 = vmatpush1.msra.mxu0 0.0
        %530 = vmatprep.subr.mxu0 0.0
        %531 = vmatpush1.msra.mxu0 0.0
        %532 = vmatprep.subr.mxu0 0.0
        %533 = vmatpush1.msra.mxu0 0.0
        %534 = vmatprep.subr.mxu0 0.0
        %535 = vmatpush1.msra.mxu0 0.0
        %536 = vmatprep.subr.mxu0 0.0
        %537 = vmatpush1.msra.mxu0 0.0
        %538 = vmatprep.subr.mxu0 0.0
        %539 = vmatpush1.msra.mxu0 0.0
        %540 = vmatprep.subr.mxu0 0.0
        %541 = vmatpush1.msra.mxu0 0.0
        %542 = vmatprep.subr.mxu0 0.0
        %543 = vmatpush1.msra.mxu0 0.0
        %544 = vmatprep.subr.mxu0 0.0
        %545 = vmatpush1.msra.mxu0 0.0
        %546 = vmatprep.subr.mxu0 0.0
        %547 = vmatpush1.msra.mxu0 0.0
        %548 = vmatprep.subr.mxu0 0.0
        %549 = vmatpush1.msra.mxu0 0.0
        %550 = vmatprep.subr.mxu0 0.0
        %551 = vmatpush1.msra.mxu0 0.0
        %552 = vmatprep.subr.mxu0 0.0
        %553 = vmatpush1.msra.mxu0 0.0
        %554 = vmatprep.subr.mxu0 0.0
        %555 = vmatpush1.msra.mxu0 0.0
        %556 = vmatprep.subr.mxu0 0.0
        %557 = vmatpush1.msra.mxu0 0.0
        %558 = vmatprep.subr.mxu0 0.0
        %559 = vmatpush1.msra.mxu0 0.0
        %560 = vmatprep.subr.mxu0 0.0
        %561 = vmatpush1.msra.mxu0 0.0
        %562 = vmatprep.subr.mxu0 0.0
        %563 = vmatpush1.msra.mxu0 0.0
        %564 = vmatprep.subr.mxu0 0.0
        %565 = vmatpush1.msra.mxu0 0.0
        %566 = vmatprep.subr.mxu0 0.0
        %567 = vmatpush1.msra.mxu0 0.0
        %568 = vmatprep.subr.mxu0 0.0
        %569 = vmatpush1.msra.mxu0 0.0
        %570 = vmatprep.subr.mxu0 0.0
        %571 = vmatpush1.msra.mxu0 0.0
        %572 = vmatprep.subr.mxu0 0.0
        %573 = vmatpush1.msra.mxu0 0.0
        %574 = vmatprep.subr.mxu0 0.0
        %575 = vmatpush1.msra.mxu0 0.0
        %576 = vmatprep.subr.mxu0 0.0
        %577 = vmatpush1.msra.mxu0 0.0
        %578 = vmatprep.subr.mxu0 0.0
        %579 = vmatpush1.msra.mxu0 0.0
        %580 = vmatprep.subr.mxu0 0.0
        %581 = vmatpush1.msra.mxu0 0.0
        %582 = vmatprep.subr.mxu0 0.0
        %583 = vmatpush1.msra.mxu0 0.0
        %584 = vmatprep.subr.mxu0 0.0
        %585 = vmatpush1.msra.mxu0 0.0
        %586 = vmatprep.subr.mxu0 0.0
        %587 = vmatpush1.msra.mxu0 0.0
        %588 = vmatprep.mubr.f32.mxu0 0.0
        %589 = vmatmul.mubr.f32.gmra.mrb[0].mxu0 %v520
        %v590 = vpop.f32.mrb[0].mxu0
        %v591 = vadd.f32 0.0, %v590
        %v592 = vpop.f32.mrb[0].mxu0
        %v593 = vadd.f32 0.0, %v592
        %594 = vmatprep.mubr.f32.mxu0 0.0
        %595 = vmatmul.mubr.f32.gmra.mrb[0].mxu0 %v522
        %v596 = vpop.f32.mrb[0].mxu0
        %v597 = vadd.f32 0.0, %v596
        %v598 = vpop.f32.mrb[0].mxu0
        %v599 = vadd.f32 0.0, %v598
        %600 = vdwg.mxu0
        %v601 = vsel %vm519, %v498, 0
        %v603 = vsel %vm519, %v499, 0
        %605 = vmatprep.subr.mxu0 %v502
        %606 = vmatpush1.msra.mxu0 %v501
        %607 = vmatprep.subr.mxu0 %v504
        %608 = vmatpush1.msra.mxu0 %v503
        %609 = vmatprep.subr.mxu0 0.0
        %610 = vmatpush1.msra.mxu0 0.0
        %611 = vmatprep.subr.mxu0 0.0
        %612 = vmatpush1.msra.mxu0 0.0
        %613 = vmatprep.subr.mxu0 0.0
        %614 = vmatpush1.msra.mxu0 0.0
        %615 = vmatprep.subr.mxu0 0.0
        %616 = vmatpush1.msra.mxu0 0.0
        %617 = vmatprep.subr.mxu0 0.0
        %618 = vmatpush1.msra.mxu0 0.0
        %619 = vmatprep.subr.mxu0 0.0
        %620 = vmatpush1.msra.mxu0 0.0
        %621 = vmatprep.subr.mxu0 0.0
        %622 = vmatpush1.msra.mxu0 0.0
        %623 = vmatprep.subr.mxu0 0.0
        %624 = vmatpush1.msra.mxu0 0.0
        %625 = vmatprep.subr.mxu0 0.0
        %626 = vmatpush1.msra.mxu0 0.0
        %627 = vmatprep.subr.mxu0 0.0
        %628 = vmatpush1.msra.mxu0 0.0
        %629 = vmatprep.subr.mxu0 0.0
        %630 = vmatpush1.msra.mxu0 0.0
        %631 = vmatprep.subr.mxu0 0.0
        %632 = vmatpush1.msra.mxu0 0.0
        %633 = vmatprep.subr.mxu0 0.0
        %634 = vmatpush1.msra.mxu0 0.0
        %635 = vmatprep.subr.mxu0 0.0
        %636 = vmatpush1.msra.mxu0 0.0
        %637 = vmatprep.subr.mxu0 0.0
        %638 = vmatpush1.msra.mxu0 0.0
        %639 = vmatprep.subr.mxu0 0.0
        %640 = vmatpush1.msra.mxu0 0.0
        %641 = vmatprep.subr.mxu0 0.0
        %642 = vmatpush1.msra.mxu0 0.0
        %643 = vmatprep.subr.mxu0 0.0
        %644 = vmatpush1.msra.mxu0 0.0
        %645 = vmatprep.subr.mxu0 0.0
        %646 = vmatpush1.msra.mxu0 0.0
        %647 = vmatprep.subr.mxu0 0.0
        %648 = vmatpush1.msra.mxu0 0.0
        %649 = vmatprep.subr.mxu0 0.0
        %650 = vmatpush1.msra.mxu0 0.0
        %651 = vmatprep.subr.mxu0 0.0
        %652 = vmatpush1.msra.mxu0 0.0
        %653 = vmatprep.subr.mxu0 0.0
        %654 = vmatpush1.msra.mxu0 0.0
        %655 = vmatprep.subr.mxu0 0.0
        %656 = vmatpush1.msra.mxu0 0.0
        %657 = vmatprep.subr.mxu0 0.0
        %658 = vmatpush1.msra.mxu0 0.0
        %659 = vmatprep.subr.mxu0 0.0
        %660 = vmatpush1.msra.mxu0 0.0
        %661 = vmatprep.subr.mxu0 0.0
        %662 = vmatpush1.msra.mxu0 0.0
        %663 = vmatprep.subr.mxu0 0.0
        %664 = vmatpush1.msra.mxu0 0.0
        %665 = vmatprep.subr.mxu0 0.0
        %666 = vmatpush1.msra.mxu0 0.0
        %667 = vmatprep.subr.mxu0 0.0
        %668 = vmatpush1.msra.mxu0 0.0
        %669 = vmatprep.mubr.f32.mxu0 0.0
        %670 = vmatmul.mubr.f32.gmra.mrb[0].mxu0 %v601
        %v671 = vpop.f32.mrb[0].mxu0
        %v672 = vadd.f32 %v591, %v671
        %v673 = vpop.f32.mrb[0].mxu0
        %v674 = vadd.f32 %v593, %v673
        %675 = vmatprep.mubr.f32.mxu0 0.0
        %676 = vmatmul.mubr.f32.gmra.mrb[0].mxu0 %v603
        %v677 = vpop.f32.mrb[0].mxu0
        %v678 = vadd.f32 %v597, %v677
        %v679 = vpop.f32.mrb[0].mxu0
        %v680 = vadd.f32 %v599, %v679
        %681 = vdwg.mxu0
        %s682 = scalar_lea.vmem %s1, 64
        %v683 = vld [vmem:[%s682] sm:$0xff]
        %v684 = vld [vmem:[%s682 + $0x8] sm:$0xff]
        %v685 = vld [vmem:[%s682 + $0x10] sm:$0xff]
        %v686 = vld [vmem:[%s682 + $0x18] sm:$0xff]
        %vm687 = vcmask 1045504
        %v688 = vrot.slane %v498, 2
        %v689 = vrot.slane %v499, 2
        %v690 = vsel %vm687, %v688, %v689
        %v691 = vrot.slane %v500, 2
        %v692 = vsel %vm687, %v689, %v691
        %v693 = vsel %vm519, %v690, 0
        %v695 = vsel %vm519, %v692, 0
        %697 = vmatprep.subr.mxu0 %v684
        %698 = vmatpush1.msra.mxu0 %v683
        %699 = vmatprep.subr.mxu0 %v686
        %700 = vmatpush1.msra.mxu0 %v685
        %701 = vmatprep.subr.mxu0 0.0
        %702 = vmatpush1.msra.mxu0 0.0
        %703 = vmatprep.subr.mxu0 0.0
        %704 = vmatpush1.msra.mxu0 0.0
        %705 = vmatprep.subr.mxu0 0.0
        %706 = vmatpush1.msra.mxu0 0.0
        %707 = vmatprep.subr.mxu0 0.0
        %708 = vmatpush1.msra.mxu0 0.0
        %709 = vmatprep.subr.mxu0 0.0
        %710 = vmatpush1.msra.mxu0 0.0
        %711 = vmatprep.subr.mxu0 0.0
        %712 = vmatpush1.msra.mxu0 0.0
        %713 = vmatprep.subr.mxu0 0.0
        %714 = vmatpush1.msra.mxu0 0.0
        %715 = vmatprep.subr.mxu0 0.0
        %716 = vmatpush1.msra.mxu0 0.0
        %717 = vmatprep.subr.mxu0 0.0
        %718 = vmatpush1.msra.mxu0 0.0
        %719 = vmatprep.subr.mxu0 0.0
        %720 = vmatpush1.msra.mxu0 0.0
        %721 = vmatprep.subr.mxu0 0.0
        %722 = vmatpush1.msra.mxu0 0.0
        %723 = vmatprep.subr.mxu0 0.0
        %724 = vmatpush1.msra.mxu0 0.0
        %725 = vmatprep.subr.mxu0 0.0
        %726 = vmatpush1.msra.mxu0 0.0
        %727 = vmatprep.subr.mxu0 0.0
        %728 = vmatpush1.msra.mxu0 0.0
        %729 = vmatprep.subr.mxu0 0.0
        %730 = vmatpush1.msra.mxu0 0.0
        %731 = vmatprep.subr.mxu0 0.0
        %732 = vmatpush1.msra.mxu0 0.0
        %733 = vmatprep.subr.mxu0 0.0
        %734 = vmatpush1.msra.mxu0 0.0
        %735 = vmatprep.subr.mxu0 0.0
        %736 = vmatpush1.msra.mxu0 0.0
        %737 = vmatprep.subr.mxu0 0.0
        %738 = vmatpush1.msra.mxu0 0.0
        %739 = vmatprep.subr.mxu0 0.0
        %740 = vmatpush1.msra.mxu0 0.0
        %741 = vmatprep.subr.mxu0 0.0
        %742 = vmatpush1.msra.mxu0 0.0
        %743 = vmatprep.subr.mxu0 0.0
        %744 = vmatpush1.msra.mxu0 0.0
        %745 = vmatprep.subr.mxu0 0.0
        %746 = vmatpush1.msra.mxu0 0.0
        %747 = vmatprep.subr.mxu0 0.0
        %748 = vmatpush1.msra.mxu0 0.0
        %749 = vmatprep.subr.mxu0 0.0
        %750 = vmatpush1.msra.mxu0 0.0
        %751 = vmatprep.subr.mxu0 0.0
        %752 = vmatpush1.msra.mxu0 0.0
        %753 = vmatprep.subr.mxu0 0.0
        %754 = vmatpush1.msra.mxu0 0.0
        %755 = vmatprep.subr.mxu0 0.0
        %756 = vmatpush1.msra.mxu0 0.0
        %757 = vmatprep.subr.mxu0 0.0
        %758 = vmatpush1.msra.mxu0 0.0
        %759 = vmatprep.subr.mxu0 0.0
        %760 = vmatpush1.msra.mxu0 0.0
        %761 = vmatprep.mubr.f32.mxu0 0.0
        %762 = vmatmul.mubr.f32.gmra.mrb[0].mxu0 %v693
        %v763 = vpop.f32.mrb[0].mxu0
        %v764 = vadd.f32 0.0, %v763
        %v765 = vpop.f32.mrb[0].mxu0
        %v766 = vadd.f32 0.0, %v765
        %767 = vmatprep.mubr.f32.mxu0 0.0
        %768 = vmatmul.mubr.f32.gmra.mrb[0].mxu0 %v695
        %v769 = vpop.f32.mrb[0].mxu0
        %v770 = vadd.f32 0.0, %v769
        %v771 = vpop.f32.mrb[0].mxu0
        %v772 = vadd.f32 0.0, %v771
        %773 = vdwg.mxu0
        %v774 = vadd.f32 %v672, %v764
        %v775 = vadd.f32 %v674, %v766
        %v776 = vadd.f32 %v678, %v770
        %v777 = vadd.f32 %v680, %v772
        %s778 = scalar_lea.vmem %s1, 96
        %v779 = vld [vmem:[%s778] sm:$0xff]
        %v780 = vld [vmem:[%s778 + $0x8] sm:$0xff]
        %v781 = vld [vmem:[%s778 + $0x10] sm:$0xff]
        %v782 = vld [vmem:[%s778 + $0x18] sm:$0xff]
        %vm783 = vcmask 1044480
        %v784 = vrot.slane %v498, 3
        %v785 = vrot.slane %v499, 3
        %v786 = vsel %vm783, %v784, %v785
        %v787 = vrot.slane %v500, 3
        %v788 = vsel %vm783, %v785, %v787
        %v789 = vsel %vm519, %v786, 0
        %v791 = vsel %vm519, %v788, 0
        %793 = vmatprep.subr.mxu0 %v780
        %794 = vmatpush1.msra.mxu0 %v779
        %795 = vmatprep.subr.mxu0 %v782
        %796 = vmatpush1.msra.mxu0 %v781
        %797 = vmatprep.subr.mxu0 0.0
        %798 = vmatpush1.msra.mxu0 0.0
        %799 = vmatprep.subr.mxu0 0.0
        %800 = vmatpush1.msra.mxu0 0.0
        %801 = vmatprep.subr.mxu0 0.0
        %802 = vmatpush1.msra.mxu0 0.0
        %803 = vmatprep.subr.mxu0 0.0
        %804 = vmatpush1.msra.mxu0 0.0
        %805 = vmatprep.subr.mxu0 0.0
        %806 = vmatpush1.msra.mxu0 0.0
        %807 = vmatprep.subr.mxu0 0.0
        %808 = vmatpush1.msra.mxu0 0.0
        %809 = vmatprep.subr.mxu0 0.0
        %810 = vmatpush1.msra.mxu0 0.0
        %811 = vmatprep.subr.mxu0 0.0
        %812 = vmatpush1.msra.mxu0 0.0
        %813 = vmatprep.subr.mxu0 0.0
        %814 = vmatpush1.msra.mxu0 0.0
        %815 = vmatprep.subr.mxu0 0.0
        %816 = vmatpush1.msra.mxu0 0.0
        %817 = vmatprep.subr.mxu0 0.0
        %818 = vmatpush1.msra.mxu0 0.0
        %819 = vmatprep.subr.mxu0 0.0
        %820 = vmatpush1.msra.mxu0 0.0
        %821 = vmatprep.subr.mxu0 0.0
        %822 = vmatpush1.msra.mxu0 0.0
        %823 = vmatprep.subr.mxu0 0.0
        %824 = vmatpush1.msra.mxu0 0.0
        %825 = vmatprep.subr.mxu0 0.0
        %826 = vmatpush1.msra.mxu0 0.0
        %827 = vmatprep.subr.mxu0 0.0
        %828 = vmatpush1.msra.mxu0 0.0
        %829 = vmatprep.subr.mxu0 0.0
        %830 = vmatpush1.msra.mxu0 0.0
        %831 = vmatprep.subr.mxu0 0.0
        %832 = vmatpush1.msra.mxu0 0.0
        %833 = vmatprep.subr.mxu0 0.0
        %834 = vmatpush1.msra.mxu0 0.0
        %835 = vmatprep.subr.mxu0 0.0
        %836 = vmatpush1.msra.mxu0 0.0
        %837 = vmatprep.subr.mxu0 0.0
        %838 = vmatpush1.msra.mxu0 0.0
        %839 = vmatprep.subr.mxu0 0.0
        %840 = vmatpush1.msra.mxu0 0.0
        %841 = vmatprep.subr.mxu0 0.0
        %842 = vmatpush1.msra.mxu0 0.0
        %843 = vmatprep.subr.mxu0 0.0
        %844 = vmatpush1.msra.mxu0 0.0
        %845 = vmatprep.subr.mxu0 0.0
        %846 = vmatpush1.msra.mxu0 0.0
        %847 = vmatprep.subr.mxu0 0.0
        %848 = vmatpush1.msra.mxu0 0.0
        %849 = vmatprep.subr.mxu0 0.0
        %850 = vmatpush1.msra.mxu0 0.0
        %851 = vmatprep.subr.mxu0 0.0
        %852 = vmatpush1.msra.mxu0 0.0
        %853 = vmatprep.subr.mxu0 0.0
        %854 = vmatpush1.msra.mxu0 0.0
        %855 = vmatprep.subr.mxu0 0.0
        %856 = vmatpush1.msra.mxu0 0.0
        %857 = vmatprep.mubr.f32.mxu0 0.0
        %858 = vmatmul.mubr.f32.gmra.mrb[0].mxu0 %v789
        %v859 = vpop.f32.mrb[0].mxu0
        %v860 = vadd.f32 0.0, %v859
        %v861 = vpop.f32.mrb[0].mxu0
        %v862 = vadd.f32 0.0, %v861
        %863 = vmatprep.mubr.f32.mxu0 0.0
        %864 = vmatmul.mubr.f32.gmra.mrb[0].mxu0 %v791
        %v865 = vpop.f32.mrb[0].mxu0
        %v866 = vadd.f32 0.0, %v865
        %v867 = vpop.f32.mrb[0].mxu0
        %v868 = vadd.f32 0.0, %v867
        %869 = vdwg.mxu0
        %v870 = vadd.f32 %v774, %v860
        %v871 = vadd.f32 %v775, %v862
        %v872 = vadd.f32 %v776, %v866
        %v873 = vadd.f32 %v777, %v868
        %s874 = scalar_lea.vmem %s1, 128
        %v875 = vld [vmem:[%s874] sm:$0xff]
        %v876 = vld [vmem:[%s874 + $0x8] sm:$0xff]
        %v877 = vld [vmem:[%s874 + $0x10] sm:$0xff]
        %v878 = vld [vmem:[%s874 + $0x18] sm:$0xff]
        %vm879 = vcmask 1043456
        %v880 = vrot.slane %v498, 4
        %v881 = vrot.slane %v499, 4
        %v882 = vsel %vm879, %v880, %v881
        %v883 = vrot.slane %v500, 4
        %v884 = vsel %vm879, %v881, %v883
        %v885 = vsel %vm519, %v882, 0
        %v887 = vsel %vm519, %v884, 0
        %889 = vmatprep.subr.mxu0 %v876
        %890 = vmatpush1.msra.mxu0 %v875
        %891 = vmatprep.subr.mxu0 %v878
        %892 = vmatpush1.msra.mxu0 %v877
        %893 = vmatprep.subr.mxu0 0.0
        %894 = vmatpush1.msra.mxu0 0.0
        %895 = vmatprep.subr.mxu0 0.0
        %896 = vmatpush1.msra.mxu0 0.0
        %897 = vmatprep.subr.mxu0 0.0
        %898 = vmatpush1.msra.mxu0 0.0
        %899 = vmatprep.subr.mxu0 0.0
        %900 = vmatpush1.msra.mxu0 0.0
        %901 = vmatprep.subr.mxu0 0.0
        %902 = vmatpush1.msra.mxu0 0.0
        %903 = vmatprep.subr.mxu0 0.0
        %904 = vmatpush1.msra.mxu0 0.0
        %905 = vmatprep.subr.mxu0 0.0
        %906 = vmatpush1.msra.mxu0 0.0
        %907 = vmatprep.subr.mxu0 0.0
        %908 = vmatpush1.msra.mxu0 0.0
        %909 = vmatprep.subr.mxu0 0.0
        %910 = vmatpush1.msra.mxu0 0.0
        %911 = vmatprep.subr.mxu0 0.0
        %912 = vmatpush1.msra.mxu0 0.0
        %913 = vmatprep.subr.mxu0 0.0
        %914 = vmatpush1.msra.mxu0 0.0
        %915 = vmatprep.subr.mxu0 0.0
        %916 = vmatpush1.msra.mxu0 0.0
        %917 = vmatprep.subr.mxu0 0.0
        %918 = vmatpush1.msra.mxu0 0.0
        %919 = vmatprep.subr.mxu0 0.0
        %920 = vmatpush1.msra.mxu0 0.0
        %921 = vmatprep.subr.mxu0 0.0
        %922 = vmatpush1.msra.mxu0 0.0
        %923 = vmatprep.subr.mxu0 0.0
        %924 = vmatpush1.msra.mxu0 0.0
        %925 = vmatprep.subr.mxu0 0.0
        %926 = vmatpush1.msra.mxu0 0.0
        %927 = vmatprep.subr.mxu0 0.0
        %928 = vmatpush1.msra.mxu0 0.0
        %929 = vmatprep.subr.mxu0 0.0
        %930 = vmatpush1.msra.mxu0 0.0
        %931 = vmatprep.subr.mxu0 0.0
        %932 = vmatpush1.msra.mxu0 0.0
        %933 = vmatprep.subr.mxu0 0.0
        %934 = vmatpush1.msra.mxu0 0.0
        %935 = vmatprep.subr.mxu0 0.0
        %936 = vmatpush1.msra.mxu0 0.0
        %937 = vmatprep.subr.mxu0 0.0
        %938 = vmatpush1.msra.mxu0 0.0
        %939 = vmatprep.subr.mxu0 0.0
        %940 = vmatpush1.msra.mxu0 0.0
        %941 = vmatprep.subr.mxu0 0.0
        %942 = vmatpush1.msra.mxu0 0.0
        %943 = vmatprep.subr.mxu0 0.0
        %944 = vmatpush1.msra.mxu0 0.0
        %945 = vmatprep.subr.mxu0 0.0
        %946 = vmatpush1.msra.mxu0 0.0
        %947 = vmatprep.subr.mxu0 0.0
        %948 = vmatpush1.msra.mxu0 0.0
        %949 = vmatprep.subr.mxu0 0.0
        %950 = vmatpush1.msra.mxu0 0.0
        %951 = vmatprep.subr.mxu0 0.0
        %952 = vmatpush1.msra.mxu0 0.0
        %953 = vmatprep.mubr.f32.mxu0 0.0
        %954 = vmatmul.mubr.f32.gmra.mrb[0].mxu0 %v885
        %v955 = vpop.f32.mrb[0].mxu0
        %v956 = vadd.f32 0.0, %v955
        %v957 = vpop.f32.mrb[0].mxu0
        %v958 = vadd.f32 0.0, %v957
        %959 = vmatprep.mubr.f32.mxu0 0.0
        %960 = vmatmul.mubr.f32.gmra.mrb[0].mxu0 %v887
        %v961 = vpop.f32.mrb[0].mxu0
        %v962 = vadd.f32 0.0, %v961
        %v963 = vpop.f32.mrb[0].mxu0
        %v964 = vadd.f32 0.0, %v963
        %965 = vdwg.mxu0
        %v966 = vadd.f32 %v870, %v956
        %v967 = vadd.f32 %v871, %v958
        %v968 = vadd.f32 %v872, %v962
        %v969 = vadd.f32 %v873, %v964
        %v970 = vld [vmem:[%s2] sm:$0x3]
        %v972 = vlaneseq
        %v973 = vshrl.u32 %v972, 7
        %v974 = vsub.s32 0, %v973
        %v975 = vrot.slane %v970, %v974
        %v976 = vlaneseq
        %v977 = vshrl.u32 %v976, 7
        %v978 = vsub.s32 1, %v977
        %v979 = vrot.slane %v970, %v978
        %v982 = vadd.f32 %v966, %v975
        %v983 = vadd.f32 %v967, %v979
        %v984 = vadd.f32 %v968, %v975
        %v985 = vadd.f32 %v969, %v979
        %v986 = vmax.f32 %v982, 0.0
        %v987 = vmax.f32 %v983, 0.0
        %v988 = vmax.f32 %v984, 0.0
        %v989 = vmax.f32 %v985, 0.0
        %v990 = vld [vmem:[%s3] sm:$0xff]
        %v991 = vld [vmem:[%s3 + $0x8] sm:$0xf]
        %v993 = vsel %vm519, %v990, 0
        %v996 = vsel %vm519, %v991, 0
        %998 = vmatprep.subr.mxu0 %v987
        %999 = vmatpush1.msra.mxu0 %v986
        %1000 = vmatprep.subr.mxu0 %v989
        %1001 = vmatpush1.msra.mxu0 %v988
        %1002 = vmatprep.subr.mxu0 0.0
        %1003 = vmatpush1.msra.mxu0 0.0
        %1004 = vmatprep.subr.mxu0 0.0
        %1005 = vmatpush1.msra.mxu0 0.0
        %1006 = vmatprep.subr.mxu0 0.0
        %1007 = vmatpush1.msra.mxu0 0.0
        %1008 = vmatprep.subr.mxu0 0.0
        %1009 = vmatpush1.msra.mxu0 0.0
        %1010 = vmatprep.subr.mxu0 0.0
        %1011 = vmatpush1.msra.mxu0 0.0
        %1012 = vmatprep.subr.mxu0 0.0
        %1013 = vmatpush1.msra.mxu0 0.0
        %1014 = vmatprep.subr.mxu0 0.0
        %1015 = vmatpush1.msra.mxu0 0.0
        %1016 = vmatprep.subr.mxu0 0.0
        %1017 = vmatpush1.msra.mxu0 0.0
        %1018 = vmatprep.subr.mxu0 0.0
        %1019 = vmatpush1.msra.mxu0 0.0
        %1020 = vmatprep.subr.mxu0 0.0
        %1021 = vmatpush1.msra.mxu0 0.0
        %1022 = vmatprep.subr.mxu0 0.0
        %1023 = vmatpush1.msra.mxu0 0.0
        %1024 = vmatprep.subr.mxu0 0.0
        %1025 = vmatpush1.msra.mxu0 0.0
        %1026 = vmatprep.subr.mxu0 0.0
        %1027 = vmatpush1.msra.mxu0 0.0
        %1028 = vmatprep.subr.mxu0 0.0
        %1029 = vmatpush1.msra.mxu0 0.0
        %1030 = vmatprep.subr.mxu0 0.0
        %1031 = vmatpush1.msra.mxu0 0.0
        %1032 = vmatprep.subr.mxu0 0.0
        %1033 = vmatpush1.msra.mxu0 0.0
        %1034 = vmatprep.subr.mxu0 0.0
        %1035 = vmatpush1.msra.mxu0 0.0
        %1036 = vmatprep.subr.mxu0 0.0
        %1037 = vmatpush1.msra.mxu0 0.0
        %1038 = vmatprep.subr.mxu0 0.0
        %1039 = vmatpush1.msra.mxu0 0.0
        %1040 = vmatprep.subr.mxu0 0.0
        %1041 = vmatpush1.msra.mxu0 0.0
        %1042 = vmatprep.subr.mxu0 0.0
        %1043 = vmatpush1.msra.mxu0 0.0
        %1044 = vmatprep.subr.mxu0 0.0
        %1045 = vmatpush1.msra.mxu0 0.0
        %1046 = vmatprep.subr.mxu0 0.0
        %1047 = vmatpush1.msra.mxu0 0.0
        %1048 = vmatprep.subr.mxu0 0.0
        %1049 = vmatpush1.msra.mxu0 0.0
        %1050 = vmatprep.subr.mxu0 0.0
        %1051 = vmatpush1.msra.mxu0 0.0
        %1052 = vmatprep.subr.mxu0 0.0
        %1053 = vmatpush1.msra.mxu0 0.0
        %1054 = vmatprep.subr.mxu0 0.0
        %1055 = vmatpush1.msra.mxu0 0.0
        %1056 = vmatprep.subr.mxu0 0.0
        %1057 = vmatpush1.msra.mxu0 0.0
        %1058 = vmatprep.subr.mxu0 0.0
        %1059 = vmatpush1.msra.mxu0 0.0
        %1060 = vmatprep.subr.mxu0 0.0
        %1061 = vmatpush1.msra.mxu0 0.0
        %1062 = vmatprep.mubr.f32.mxu0 0.0
        %1063 = vmatmul.mubr.f32.gmra.mrb[0].mxu0 %v993
        %v1064 = vpop.f32.mrb[0].mxu0
        %v1065 = vadd.f32 0.0, %v1064
        %v1066 = vpop.f32.mrb[0].mxu0
        %v1067 = vadd.f32 0.0, %v1066
        %1068 = vmatprep.mubr.f32.mxu0 0.0
        %1069 = vmatmul.mubr.f32.gmra.mrb[0].mxu0 %v996
        %v1070 = vpop.f32.mrb[0].mxu0
        %v1071 = vadd.f32 0.0, %v1070
        %v1072 = vpop.f32.mrb[0].mxu0
        %v1073 = vadd.f32 0.0, %v1072
        %1074 = vdwg.mxu0
        %s1075 = scalar_lea.vmem %s3, 16
        %v1076 = vld [vmem:[%s1075] sm:$0xff]
        %v1077 = vld [vmem:[%s1075 + $0x8] sm:$0xf]
        %v1079 = vsel %vm519, %v1076, 0
        %v1082 = vsel %vm519, %v1077, 0
        %1084 = vmatprep.subr.mxu0 %v987
        %1085 = vmatpush1.msra.mxu0 %v986
        %1086 = vmatprep.subr.mxu0 %v989
        %1087 = vmatpush1.msra.mxu0 %v988
        %1088 = vmatprep.subr.mxu0 0.0
        %1089 = vmatpush1.msra.mxu0 0.0
        %1090 = vmatprep.subr.mxu0 0.0
        %1091 = vmatpush1.msra.mxu0 0.0
        %1092 = vmatprep.subr.mxu0 0.0
        %1093 = vmatpush1.msra.mxu0 0.0
        %1094 = vmatprep.subr.mxu0 0.0
        %1095 = vmatpush1.msra.mxu0 0.0
        %1096 = vmatprep.subr.mxu0 0.0
        %1097 = vmatpush1.msra.mxu0 0.0
        %1098 = vmatprep.subr.mxu0 0.0
        %1099 = vmatpush1.msra.mxu0 0.0
        %1100 = vmatprep.subr.mxu0 0.0
        %1101 = vmatpush1.msra.mxu0 0.0
        %1102 = vmatprep.subr.mxu0 0.0
        %1103 = vmatpush1.msra.mxu0 0.0
        %1104 = vmatprep.subr.mxu0 0.0
        %1105 = vmatpush1.msra.mxu0 0.0
        %1106 = vmatprep.subr.mxu0 0.0
        %1107 = vmatpush1.msra.mxu0 0.0
        %1108 = vmatprep.subr.mxu0 0.0
        %1109 = vmatpush1.msra.mxu0 0.0
        %1110 = vmatprep.subr.mxu0 0.0
        %1111 = vmatpush1.msra.mxu0 0.0
        %1112 = vmatprep.subr.mxu0 0.0
        %1113 = vmatpush1.msra.mxu0 0.0
        %1114 = vmatprep.subr.mxu0 0.0
        %1115 = vmatpush1.msra.mxu0 0.0
        %1116 = vmatprep.subr.mxu0 0.0
        %1117 = vmatpush1.msra.mxu0 0.0
        %1118 = vmatprep.subr.mxu0 0.0
        %1119 = vmatpush1.msra.mxu0 0.0
        %1120 = vmatprep.subr.mxu0 0.0
        %1121 = vmatpush1.msra.mxu0 0.0
        %1122 = vmatprep.subr.mxu0 0.0
        %1123 = vmatpush1.msra.mxu0 0.0
        %1124 = vmatprep.subr.mxu0 0.0
        %1125 = vmatpush1.msra.mxu0 0.0
        %1126 = vmatprep.subr.mxu0 0.0
        %1127 = vmatpush1.msra.mxu0 0.0
        %1128 = vmatprep.subr.mxu0 0.0
        %1129 = vmatpush1.msra.mxu0 0.0
        %1130 = vmatprep.subr.mxu0 0.0
        %1131 = vmatpush1.msra.mxu0 0.0
        %1132 = vmatprep.subr.mxu0 0.0
        %1133 = vmatpush1.msra.mxu0 0.0
        %1134 = vmatprep.subr.mxu0 0.0
        %1135 = vmatpush1.msra.mxu0 0.0
        %1136 = vmatprep.subr.mxu0 0.0
        %1137 = vmatpush1.msra.mxu0 0.0
        %1138 = vmatprep.subr.mxu0 0.0
        %1139 = vmatpush1.msra.mxu0 0.0
        %1140 = vmatprep.subr.mxu0 0.0
        %1141 = vmatpush1.msra.mxu0 0.0
        %1142 = vmatprep.subr.mxu0 0.0
        %1143 = vmatpush1.msra.mxu0 0.0
        %1144 = vmatprep.subr.mxu0 0.0
        %1145 = vmatpush1.msra.mxu0 0.0
        %1146 = vmatprep.subr.mxu0 0.0
        %1147 = vmatpush1.msra.mxu0 0.0
        %1148 = vmatprep.mubr.f32.mxu0 0.0
        %1149 = vmatmul.mubr.f32.gmra.mrb[0].mxu0 %v1079
        %v1150 = vpop.f32.mrb[0].mxu0
        %v1151 = vadd.f32 0.0, %v1150
        %v1152 = vpop.f32.mrb[0].mxu0
        %v1153 = vadd.f32 0.0, %v1152
        %1154 = vmatprep.mubr.f32.mxu0 0.0
        %1155 = vmatmul.mubr.f32.gmra.mrb[0].mxu0 %v1082
        %v1156 = vpop.f32.mrb[0].mxu0
        %v1157 = vadd.f32 0.0, %v1156
        %v1158 = vpop.f32.mrb[0].mxu0
        %v1159 = vadd.f32 0.0, %v1158
        %1160 = vdwg.mxu0
        %v1161 = vmax.f32 %v1065, %v1151
        %v1162 = vmax.f32 %v1067, %v1153
        %v1163 = vmax.f32 %v1071, %v1157
        %v1164 = vmax.f32 %v1073, %v1159
        %v1165 = vld [vmem:[#allocation2] sm:$0xff]
        %v1166 = vld [vmem:[#allocation2 + $0x8] sm:$0xff]
        %v1167 = vld [vmem:[#allocation2 + $0x10] sm:$0xff]
        %v1168 = vld [vmem:[#allocation2 + $0x18] sm:$0xff]
        %v1169 = vld [vmem:[#allocation2 + $0x20] sm:$0xff]
        %v1170 = vld [vmem:[#allocation2 + $0x28] sm:$0xff]
        %v1171 = vld [vmem:[#allocation2 + $0x30] sm:$0xff]
        %v1172 = vld [vmem:[#allocation2 + $0x38] sm:$0xff]
        %v1173 = vld [vmem:[#allocation2 + $0x40] sm:$0xff]
        %v1174 = vld [vmem:[#allocation2 + $0x48] sm:$0xff]
        %v1175 = vld [vmem:[#allocation2 + $0x50] sm:$0xff]
        %v1176 = vld [vmem:[#allocation2 + $0x58] sm:$0xff]
        %v1177 = vld [vmem:[#allocation2 + $0x60] sm:$0xff]
        %v1178 = vld [vmem:[#allocation2 + $0x68] sm:$0xff]
        %v1179 = vld [vmem:[#allocation2 + $0x70] sm:$0xff]
        %v1180 = vld [vmem:[#allocation2 + $0x78] sm:$0xff]
        %v1181 = vld [vmem:[#allocation2 + $0x80] sm:$0xff]
        %v1182 = vld [vmem:[#allocation2 + $0x88] sm:$0xff]
        %v1183 = vld [vmem:[#allocation2 + $0x90] sm:$0xff]
        %v1184 = vld [vmem:[#allocation2 + $0x98] sm:$0xff]
        %v1185 = vld [vmem:[#allocation2 + $0xa0] sm:$0xff]
        %v1186 = vld [vmem:[#allocation2 + $0xa8] sm:$0xff]
        %v1187 = vld [vmem:[#allocation2 + $0xb0] sm:$0xff]
        %v1188 = vld [vmem:[#allocation2 + $0xb8] sm:$0xff]
        %v1189 = vld [vmem:[#allocation2 + $0xc0] sm:$0xff]
        %v1190 = vld [vmem:[#allocation2 + $0xc8] sm:$0xff]
        %v1191 = vld [vmem:[#allocation2 + $0xd0] sm:$0xff]
        %v1192 = vld [vmem:[#allocation2 + $0xd8] sm:$0xff]
        %v1193 = vld [vmem:[#allocation2 + $0xe0] sm:$0xff]
        %v1194 = vld [vmem:[#allocation2 + $0xe8] sm:$0xff]
        %v1195 = vld [vmem:[#allocation2 + $0xf0] sm:$0xff]
        %v1196 = vld [vmem:[#allocation2 + $0xf8] sm:$0xff]
        %1197 = vmatprep.subr.mxu0 0.0
        %1198 = vmatpush1.msra.mxu0 %v1165
        %1199 = vmatprep.subr.mxu0 0.0
        %1200 = vmatpush1.msra.mxu0 %v1166
        %1201 = vmatprep.subr.mxu0 0.0
        %1202 = vmatpush1.msra.mxu0 %v1167
        %1203 = vmatprep.subr.mxu0 0.0
        %1204 = vmatpush1.msra.mxu0 %v1168
        %1205 = vmatprep.subr.mxu0 0.0
        %1206 = vmatpush1.msra.mxu0 %v1169
        %1207 = vmatprep.subr.mxu0 0.0
        %1208 = vmatpush1.msra.mxu0 %v1170
        %1209 = vmatprep.subr.mxu0 0.0
        %1210 = vmatpush1.msra.mxu0 %v1171
        %1211 = vmatprep.subr.mxu0 0.0
        %1212 = vmatpush1.msra.mxu0 %v1172
        %1213 = vmatprep.subr.mxu0 0.0
        %1214 = vmatpush1.msra.mxu0 %v1173
        %1215 = vmatprep.subr.mxu0 0.0
        %1216 = vmatpush1.msra.mxu0 %v1174
        %1217 = vmatprep.subr.mxu0 0.0
        %1218 = vmatpush1.msra.mxu0 %v1175
        %1219 = vmatprep.subr.mxu0 0.0
        %1220 = vmatpush1.msra.mxu0 %v1176
        %1221 = vmatprep.subr.mxu0 0.0
        %1222 = vmatpush1.msra.mxu0 %v1177
        %1223 = vmatprep.subr.mxu0 0.0
        %1224 = vmatpush1.msra.mxu0 %v1178
        %1225 = vmatprep.subr.mxu0 0.0
        %1226 = vmatpush1.msra.mxu0 %v1179
        %1227 = vmatprep.subr.mxu0 0.0
        %1228 = vmatpush1.msra.mxu0 %v1180
        %1229 = vmatprep.subr.mxu0 0.0
        %1230 = vmatpush1.msra.mxu0 %v1181
        %1231 = vmatprep.subr.mxu0 0.0
        %1232 = vmatpush1.msra.mxu0 %v1182
        %1233 = vmatprep.subr.mxu0 0.0
        %1234 = vmatpush1.msra.mxu0 %v1183
        %1235 = vmatprep.subr.mxu0 0.0
        %1236 = vmatpush1.msra.mxu0 %v1184
        %1237 = vmatprep.subr.mxu0 0.0
        %1238 = vmatpush1.msra.mxu0 %v1185
        %1239 = vmatprep.subr.mxu0 0.0
        %1240 = vmatpush1.msra.mxu0 %v1186
        %1241 = vmatprep.subr.mxu0 0.0
        %1242 = vmatpush1.msra.mxu0 %v1187
        %1243 = vmatprep.subr.mxu0 0.0
        %1244 = vmatpush1.msra.mxu0 %v1188
        %1245 = vmatprep.subr.mxu0 0.0
        %1246 = vmatpush1.msra.mxu0 %v1189
        %1247 = vmatprep.subr.mxu0 0.0
        %1248 = vmatpush1.msra.mxu0 %v1190
        %1249 = vmatprep.subr.mxu0 0.0
        %1250 = vmatpush1.msra.mxu0 %v1191
        %1251 = vmatprep.subr.mxu0 0.0
        %1252 = vmatpush1.msra.mxu0 %v1192
        %1253 = vmatprep.subr.mxu0 0.0
        %1254 = vmatpush1.msra.mxu0 %v1193
        %1255 = vmatprep.subr.mxu0 0.0
        %1256 = vmatpush1.msra.mxu0 %v1194
        %1257 = vmatprep.subr.mxu0 0.0
        %1258 = vmatpush1.msra.mxu0 %v1195
        %1259 = vmatprep.subr.mxu0 0.0
        %1260 = vmatpush1.msra.mxu0 %v1196
        %1261 = vmatprep.mubr.f32.mxu0 %v1162
        %1262 = vmatmul.mubr.f32.gmra.mrb[0].mxu0 %v1161
        %v1263 = vpop.f32.mrb[0].mxu0
        %v1264 = vadd.f32 0.0, %v1263
        %v1265 = vpop.f32.mrb[0].mxu0
        %1266 = vmatprep.mubr.f32.mxu0 %v1164
        %1267 = vmatmul.mubr.f32.gmra.mrb[0].mxu0 %v1163
        %v1268 = vpop.f32.mrb[0].mxu0
        %v1269 = vadd.f32 0.0, %v1268
        %v1270 = vpop.f32.mrb[0].mxu0
        %1271 = vdwg.mxu0
        %s1272 = scalar_lea.vmem [#allocation2], 256
        %v1273 = vld [vmem:[%s1272] sm:$0xff]
        %v1274 = vld [vmem:[%s1272 + $0x8] sm:$0xff]
        %v1275 = vld [vmem:[%s1272 + $0x10] sm:$0xff]
        %v1276 = vld [vmem:[%s1272 + $0x18] sm:$0xff]
        %v1277 = vld [vmem:[%s1272 + $0x20] sm:$0xff]
        %v1278 = vld [vmem:[%s1272 + $0x28] sm:$0xff]
        %v1279 = vld [vmem:[%s1272 + $0x30] sm:$0xff]
        %v1280 = vld [vmem:[%s1272 + $0x38] sm:$0xff]
        %v1281 = vld [vmem:[%s1272 + $0x40] sm:$0xff]
        %v1282 = vld [vmem:[%s1272 + $0x48] sm:$0xff]
        %v1283 = vld [vmem:[%s1272 + $0x50] sm:$0xff]
        %v1284 = vld [vmem:[%s1272 + $0x58] sm:$0xff]
        %v1285 = vld [vmem:[%s1272 + $0x60] sm:$0xff]
        %v1286 = vld [vmem:[%s1272 + $0x68] sm:$0xff]
        %v1287 = vld [vmem:[%s1272 + $0x70] sm:$0xff]
        %v1288 = vld [vmem:[%s1272 + $0x78] sm:$0xff]
        %v1289 = vld [vmem:[%s1272 + $0x80] sm:$0xff]
        %v1290 = vld [vmem:[%s1272 + $0x88] sm:$0xff]
        %v1291 = vld [vmem:[%s1272 + $0x90] sm:$0xff]
        %v1292 = vld [vmem:[%s1272 + $0x98] sm:$0xff]
        %v1293 = vld [vmem:[%s1272 + $0xa0] sm:$0xff]
        %v1294 = vld [vmem:[%s1272 + $0xa8] sm:$0xff]
        %v1295 = vld [vmem:[%s1272 + $0xb0] sm:$0xff]
        %v1296 = vld [vmem:[%s1272 + $0xb8] sm:$0xff]
        %v1297 = vld [vmem:[%s1272 + $0xc0] sm:$0xff]
        %v1298 = vld [vmem:[%s1272 + $0xc8] sm:$0xff]
        %v1299 = vld [vmem:[%s1272 + $0xd0] sm:$0xff]
        %v1300 = vld [vmem:[%s1272 + $0xd8] sm:$0xff]
        %v1301 = vld [vmem:[%s1272 + $0xe0] sm:$0xff]
        %v1302 = vld [vmem:[%s1272 + $0xe8] sm:$0xff]
        %v1303 = vld [vmem:[%s1272 + $0xf0] sm:$0xff]
        %v1304 = vld [vmem:[%s1272 + $0xf8] sm:$0xff]
        %1305 = vmatprep.subr.mxu0 0.0
        %1306 = vmatpush1.msra.mxu0 %v1273
        %1307 = vmatprep.subr.mxu0 0.0
        %1308 = vmatpush1.msra.mxu0 %v1274
        %1309 = vmatprep.subr.mxu0 0.0
        %1310 = vmatpush1.msra.mxu0 %v1275
        %1311 = vmatprep.subr.mxu0 0.0
        %1312 = vmatpush1.msra.mxu0 %v1276
        %1313 = vmatprep.subr.mxu0 0.0
        %1314 = vmatpush1.msra.mxu0 %v1277
        %1315 = vmatprep.subr.mxu0 0.0
        %1316 = vmatpush1.msra.mxu0 %v1278
        %1317 = vmatprep.subr.mxu0 0.0
        %1318 = vmatpush1.msra.mxu0 %v1279
        %1319 = vmatprep.subr.mxu0 0.0
        %1320 = vmatpush1.msra.mxu0 %v1280
        %1321 = vmatprep.subr.mxu0 0.0
        %1322 = vmatpush1.msra.mxu0 %v1281
        %1323 = vmatprep.subr.mxu0 0.0
        %1324 = vmatpush1.msra.mxu0 %v1282
        %1325 = vmatprep.subr.mxu0 0.0
        %1326 = vmatpush1.msra.mxu0 %v1283
        %1327 = vmatprep.subr.mxu0 0.0
        %1328 = vmatpush1.msra.mxu0 %v1284
        %1329 = vmatprep.subr.mxu0 0.0
        %1330 = vmatpush1.msra.mxu0 %v1285
        %1331 = vmatprep.subr.mxu0 0.0
        %1332 = vmatpush1.msra.mxu0 %v1286
        %1333 = vmatprep.subr.mxu0 0.0
        %1334 = vmatpush1.msra.mxu0 %v1287
        %1335 = vmatprep.subr.mxu0 0.0
        %1336 = vmatpush1.msra.mxu0 %v1288
        %1337 = vmatprep.subr.mxu0 0.0
        %1338 = vmatpush1.msra.mxu0 %v1289
        %1339 = vmatprep.subr.mxu0 0.0
        %1340 = vmatpush1.msra.mxu0 %v1290
        %1341 = vmatprep.subr.mxu0 0.0
        %1342 = vmatpush1.msra.mxu0 %v1291
        %1343 = vmatprep.subr.mxu0 0.0
        %1344 = vmatpush1.msra.mxu0 %v1292
        %1345 = vmatprep.subr.mxu0 0.0
        %1346 = vmatpush1.msra.mxu0 %v1293
        %1347 = vmatprep.subr.mxu0 0.0
        %1348 = vmatpush1.msra.mxu0 %v1294
        %1349 = vmatprep.subr.mxu0 0.0
        %1350 = vmatpush1.msra.mxu0 %v1295
        %1351 = vmatprep.subr.mxu0 0.0
        %1352 = vmatpush1.msra.mxu0 %v1296
        %1353 = vmatprep.subr.mxu0 0.0
        %1354 = vmatpush1.msra.mxu0 %v1297
        %1355 = vmatprep.subr.mxu0 0.0
        %1356 = vmatpush1.msra.mxu0 %v1298
        %1357 = vmatprep.subr.mxu0 0.0
        %1358 = vmatpush1.msra.mxu0 %v1299
        %1359 = vmatprep.subr.mxu0 0.0
        %1360 = vmatpush1.msra.mxu0 %v1300
        %1361 = vmatprep.subr.mxu0 0.0
        %1362 = vmatpush1.msra.mxu0 %v1301
        %1363 = vmatprep.subr.mxu0 0.0
        %1364 = vmatpush1.msra.mxu0 %v1302
        %1365 = vmatprep.subr.mxu0 0.0
        %1366 = vmatpush1.msra.mxu0 %v1303
        %1367 = vmatprep.subr.mxu0 0.0
        %1368 = vmatpush1.msra.mxu0 %v1304
        %1369 = vmatprep.mubr.f32.mxu0 %v1162
        %1370 = vmatmul.mubr.f32.gmra.mrb[0].mxu0 %v1161
        %v1371 = vpop.f32.mrb[0].mxu0
        %v1372 = vadd.f32 0.0, %v1371
        %v1373 = vpop.f32.mrb[0].mxu0
        %1374 = vmatprep.mubr.f32.mxu0 %v1164
        %1375 = vmatmul.mubr.f32.gmra.mrb[0].mxu0 %v1163
        %v1376 = vpop.f32.mrb[0].mxu0
        %v1377 = vadd.f32 0.0, %v1376
        %v1378 = vpop.f32.mrb[0].mxu0
        %1379 = vdwg.mxu0
        %v1380 = vmax.f32 %v1264, %v1372
        %v1381 = vmax.f32 %v1269, %v1377
        %v1382 = vpack.c.bf16 %v1381, %v1380
        %v1383 = vld [vmem:[#allocation5] sm:$0xff]
        %v1384 = vld [vmem:[#allocation5 + $0x8] sm:$0xff]
        %v1385 = vld [vmem:[#allocation5 + $0x10] sm:$0xff]
        %v1386 = vld [vmem:[#allocation5 + $0x18] sm:$0xff]
        %v1387 = vld [vmem:[#allocation5 + $0x20] sm:$0xff]
        %v1388 = vld [vmem:[#allocation5 + $0x28] sm:$0xff]
        %v1389 = vld [vmem:[#allocation5 + $0x30] sm:$0xff]
        %v1390 = vld [vmem:[#allocation5 + $0x38] sm:$0xff]
        %v1391 = vld [vmem:[#allocation5 + $0x40] sm:$0xff]
        %v1392 = vld [vmem:[#allocation5 + $0x48] sm:$0xff]
        %v1393 = vld [vmem:[#allocation5 + $0x50] sm:$0xff]
        %v1394 = vld [vmem:[#allocation5 + $0x58] sm:$0xff]
        %v1395 = vld [vmem:[#allocation5 + $0x60] sm:$0xff]
        %v1396 = vld [vmem:[#allocation5 + $0x68] sm:$0xff]
        %v1397 = vld [vmem:[#allocation5 + $0x70] sm:$0xff]
        %v1398 = vld [vmem:[#allocation5 + $0x78] sm:$0xff]
        %s1399 = scalar_lea.vmem [#allocation5], 128
        %v1400 = vld [vmem:[%s1399] sm:$0xff]
        %v1401 = vld [vmem:[%s1399 + $0x8] sm:$0xff]
        %v1402 = vld [vmem:[%s1399 + $0x10] sm:$0xff]
        %v1403 = vld [vmem:[%s1399 + $0x18] sm:$0xff]
        %v1404 = vld [vmem:[%s1399 + $0x20] sm:$0xff]
        %v1405 = vld [vmem:[%s1399 + $0x28] sm:$0xff]
        %v1406 = vld [vmem:[%s1399 + $0x30] sm:$0xff]
        %v1407 = vld [vmem:[%s1399 + $0x38] sm:$0xff]
        %v1408 = vld [vmem:[%s1399 + $0x40] sm:$0xff]
        %v1409 = vld [vmem:[%s1399 + $0x48] sm:$0xff]
        %v1410 = vld [vmem:[%s1399 + $0x50] sm:$0xff]
        %v1411 = vld [vmem:[%s1399 + $0x58] sm:$0xff]
        %v1412 = vld [vmem:[%s1399 + $0x60] sm:$0xff]
        %v1413 = vld [vmem:[%s1399 + $0x68] sm:$0xff]
        %v1414 = vld [vmem:[%s1399 + $0x70] sm:$0xff]
        %v1415 = vld [vmem:[%s1399 + $0x78] sm:$0xff]
        %v1417 = vshrl.u32 %v1382, 16
        %v1419 = vshll.u32 %v1382, 16
        %v1421 = vrot.slane %v1419, 1
        %v1422 = vor.u32 %v1417, %v1421
        %v1440 = vunpack.c.l.b16 %v1400
        %v1441 = vunpack.c.h.b16 %v1400
        %v1442 = vunpack.c.l.b16 %v1401
        %v1443 = vunpack.c.h.b16 %v1401
        %v1444 = vunpack.c.l.b16 %v1402
        %v1445 = vunpack.c.h.b16 %v1402
        %v1446 = vunpack.c.l.b16 %v1403
        %v1447 = vunpack.c.h.b16 %v1403
        %v1448 = vunpack.c.l.b16 %v1404
        %v1449 = vunpack.c.h.b16 %v1404
        %v1450 = vunpack.c.l.b16 %v1405
        %v1451 = vunpack.c.h.b16 %v1405
        %v1452 = vunpack.c.l.b16 %v1406
        %v1453 = vunpack.c.h.b16 %v1406
        %v1454 = vunpack.c.l.b16 %v1407
        %v1455 = vunpack.c.h.b16 %v1407
        %v1456 = vunpack.c.l.b16 %v1408
        %v1457 = vunpack.c.h.b16 %v1408
        %v1458 = vunpack.c.l.b16 %v1409
        %v1459 = vunpack.c.h.b16 %v1409
        %v1460 = vunpack.c.l.b16 %v1410
        %v1461 = vunpack.c.h.b16 %v1410
        %v1462 = vunpack.c.l.b16 %v1411
        %v1463 = vunpack.c.h.b16 %v1411
        %v1464 = vunpack.c.l.b16 %v1412
        %v1465 = vunpack.c.h.b16 %v1412
        %v1466 = vunpack.c.l.b16 %v1413
        %v1467 = vunpack.c.h.b16 %v1413
        %v1468 = vunpack.c.l.b16 %v1414
        %v1469 = vunpack.c.h.b16 %v1414
        %v1470 = vunpack.c.l.b16 %v1415
        %v1471 = vunpack.c.h.b16 %v1415
        %v1472 = vpack.c.b16 %v1442, %v1440
        %v1473 = vpack.c.b16 %v1443, %v1441
        %v1474 = vpack.c.b16 %v1446, %v1444
        %v1475 = vpack.c.b16 %v1447, %v1445
        %v1476 = vpack.c.b16 %v1450, %v1448
        %v1477 = vpack.c.b16 %v1451, %v1449
        %v1478 = vpack.c.b16 %v1454, %v1452
        %v1479 = vpack.c.b16 %v1455, %v1453
        %v1480 = vpack.c.b16 %v1458, %v1456
        %v1481 = vpack.c.b16 %v1459, %v1457
        %v1482 = vpack.c.b16 %v1462, %v1460
        %v1483 = vpack.c.b16 %v1463, %v1461
        %v1484 = vpack.c.b16 %v1466, %v1464
        %v1485 = vpack.c.b16 %v1467, %v1465
        %v1486 = vpack.c.b16 %v1470, %v1468
        %v1487 = vpack.c.b16 %v1471, %v1469
        %1504 = vmatprep.subr.bf16.mxu0 %v1473
        %1505 = vmatpush1.bf16.msra.mxu0 %v1472
        %1506 = vmatprep.subr.bf16.mxu0 %v1475
        %1507 = vmatpush1.bf16.msra.mxu0 %v1474
        %1508 = vmatprep.subr.bf16.mxu0 %v1477
        %1509 = vmatpush1.bf16.msra.mxu0 %v1476
        %1510 = vmatprep.subr.bf16.mxu0 %v1479
        %1511 = vmatpush1.bf16.msra.mxu0 %v1478
        %1512 = vmatprep.subr.bf16.mxu0 %v1481
        %1513 = vmatpush1.bf16.msra.mxu0 %v1480
        %1514 = vmatprep.subr.bf16.mxu0 %v1483
        %1515 = vmatpush1.bf16.msra.mxu0 %v1482
        %1516 = vmatprep.subr.bf16.mxu0 %v1485
        %1517 = vmatpush1.bf16.msra.mxu0 %v1484
        %1518 = vmatprep.subr.bf16.mxu0 %v1487
        %1519 = vmatpush1.bf16.msra.mxu0 %v1486
        %1520 = vmatprep.subr.bf16.mxu0 0
        %1521 = vmatpush1.bf16.msra.mxu0 0
        %1522 = vmatprep.subr.bf16.mxu0 0
        %1523 = vmatpush1.bf16.msra.mxu0 0
        %1524 = vmatprep.subr.bf16.mxu0 0
        %1525 = vmatpush1.bf16.msra.mxu0 0
        %1526 = vmatprep.subr.bf16.mxu0 0
        %1527 = vmatpush1.bf16.msra.mxu0 0
        %1528 = vmatprep.subr.bf16.mxu0 0
        %1529 = vmatpush1.bf16.msra.mxu0 0
        %1530 = vmatprep.subr.bf16.mxu0 0
        %1531 = vmatpush1.bf16.msra.mxu0 0
        %1532 = vmatprep.subr.bf16.mxu0 0
        %1533 = vmatpush1.bf16.msra.mxu0 0
        %1534 = vmatprep.subr.bf16.mxu0 0
        %1535 = vmatpush1.bf16.msra.mxu0 0
        %1536 = vmatprep.mubr.bf16.mxu0 0
        %1537 = vmatmul.mubr.bf16.gmra.mrb[0].mxu0 %v1422
        %v1538 = vpop.f32.mrb[0].mxu0
        %v1539 = vadd.f32 0.0, %v1538
        %v1540 = vpop.f32.mrb[0].mxu0
        %v1541 = vadd.f32 0.0, %v1540
        %v1542 = vpop.f32.mrb[0].mxu0
        %v1543 = vpop.f32.mrb[0].mxu0
        %1544 = vdwg.mxu0
        %v1561 = vunpack.c.l.b16 %v1383
        %v1562 = vunpack.c.h.b16 %v1383
        %v1563 = vunpack.c.l.b16 %v1384
        %v1564 = vunpack.c.h.b16 %v1384
        %v1565 = vunpack.c.l.b16 %v1385
        %v1566 = vunpack.c.h.b16 %v1385
        %v1567 = vunpack.c.l.b16 %v1386
        %v1568 = vunpack.c.h.b16 %v1386
        %v1569 = vunpack.c.l.b16 %v1387
        %v1570 = vunpack.c.h.b16 %v1387
        %v1571 = vunpack.c.l.b16 %v1388
        %v1572 = vunpack.c.h.b16 %v1388
        %v1573 = vunpack.c.l.b16 %v1389
        %v1574 = vunpack.c.h.b16 %v1389
        %v1575 = vunpack.c.l.b16 %v1390
        %v1576 = vunpack.c.h.b16 %v1390
        %v1577 = vunpack.c.l.b16 %v1391
        %v1578 = vunpack.c.h.b16 %v1391
        %v1579 = vunpack.c.l.b16 %v1392
        %v1580 = vunpack.c.h.b16 %v1392
        %v1581 = vunpack.c.l.b16 %v1393
        %v1582 = vunpack.c.h.b16 %v1393
        %v1583 = vunpack.c.l.b16 %v1394
        %v1584 = vunpack.c.h.b16 %v1394
        %v1585 = vunpack.c.l.b16 %v1395
        %v1586 = vunpack.c.h.b16 %v1395
        %v1587 = vunpack.c.l.b16 %v1396
        %v1588 = vunpack.c.h.b16 %v1396
        %v1589 = vunpack.c.l.b16 %v1397
        %v1590 = vunpack.c.h.b16 %v1397
        %v1591 = vunpack.c.l.b16 %v1398
        %v1592 = vunpack.c.h.b16 %v1398
        %v1593 = vpack.c.b16 %v1563, %v1561
        %v1594 = vpack.c.b16 %v1564, %v1562
        %v1595 = vpack.c.b16 %v1567, %v1565
        %v1596 = vpack.c.b16 %v1568, %v1566
        %v1597 = vpack.c.b16 %v1571, %v1569
        %v1598 = vpack.c.b16 %v1572, %v1570
        %v1599 = vpack.c.b16 %v1575, %v1573
        %v1600 = vpack.c.b16 %v1576, %v1574
        %v1601 = vpack.c.b16 %v1579, %v1577
        %v1602 = vpack.c.b16 %v1580, %v1578
        %v1603 = vpack.c.b16 %v1583, %v1581
        %v1604 = vpack.c.b16 %v1584, %v1582
        %v1605 = vpack.c.b16 %v1587, %v1585
        %v1606 = vpack.c.b16 %v1588, %v1586
        %v1607 = vpack.c.b16 %v1591, %v1589
        %v1608 = vpack.c.b16 %v1592, %v1590
        %1625 = vmatprep.subr.bf16.mxu0 %v1594
        %1626 = vmatpush1.bf16.msra.mxu0 %v1593
        %1627 = vmatprep.subr.bf16.mxu0 %v1596
        %1628 = vmatpush1.bf16.msra.mxu0 %v1595
        %1629 = vmatprep.subr.bf16.mxu0 %v1598
        %1630 = vmatpush1.bf16.msra.mxu0 %v1597
        %1631 = vmatprep.subr.bf16.mxu0 %v1600
        %1632 = vmatpush1.bf16.msra.mxu0 %v1599
        %1633 = vmatprep.subr.bf16.mxu0 %v1602
        %1634 = vmatpush1.bf16.msra.mxu0 %v1601
        %1635 = vmatprep.subr.bf16.mxu0 %v1604
        %1636 = vmatpush1.bf16.msra.mxu0 %v1603
        %1637 = vmatprep.subr.bf16.mxu0 %v1606
        %1638 = vmatpush1.bf16.msra.mxu0 %v1605
        %1639 = vmatprep.subr.bf16.mxu0 %v1608
        %1640 = vmatpush1.bf16.msra.mxu0 %v1607
        %1641 = vmatprep.subr.bf16.mxu0 0
        %1642 = vmatpush1.bf16.msra.mxu0 0
        %1643 = vmatprep.subr.bf16.mxu0 0
        %1644 = vmatpush1.bf16.msra.mxu0 0
        %1645 = vmatprep.subr.bf16.mxu0 0
        %1646 = vmatpush1.bf16.msra.mxu0 0
        %1647 = vmatprep.subr.bf16.mxu0 0
        %1648 = vmatpush1.bf16.msra.mxu0 0
        %1649 = vmatprep.subr.bf16.mxu0 0
        %1650 = vmatpush1.bf16.msra.mxu0 0
        %1651 = vmatprep.subr.bf16.mxu0 0
        %1652 = vmatpush1.bf16.msra.mxu0 0
        %1653 = vmatprep.subr.bf16.mxu0 0
        %1654 = vmatpush1.bf16.msra.mxu0 0
        %1655 = vmatprep.subr.bf16.mxu0 0
        %1656 = vmatpush1.bf16.msra.mxu0 0
        %1657 = vmatprep.mubr.bf16.mxu0 0
        %1658 = vmatmul.mubr.bf16.gmra.mrb[0].mxu0 %v1382
        %v1659 = vpop.f32.mrb[0].mxu0
        %v1660 = vadd.f32 %v1539, %v1659
        %v1661 = vpop.f32.mrb[0].mxu0
        %v1662 = vadd.f32 %v1541, %v1661
        %v1663 = vpop.f32.mrb[0].mxu0
        %v1664 = vpop.f32.mrb[0].mxu0
        %1665 = vdwg.mxu0
        %s1666 = scalar_lea.vmem [#allocation5], 256
        %v1667 = vld [vmem:[%s1666] sm:$0xff]
        %v1668 = vld [vmem:[%s1666 + $0x8] sm:$0xff]
        %v1669 = vld [vmem:[%s1666 + $0x10] sm:$0xff]
        %v1670 = vld [vmem:[%s1666 + $0x18] sm:$0xff]
        %v1671 = vld [vmem:[%s1666 + $0x20] sm:$0xff]
        %v1672 = vld [vmem:[%s1666 + $0x28] sm:$0xff]
        %v1673 = vld [vmem:[%s1666 + $0x30] sm:$0xff]
        %v1674 = vld [vmem:[%s1666 + $0x38] sm:$0xff]
        %v1675 = vld [vmem:[%s1666 + $0x40] sm:$0xff]
        %v1676 = vld [vmem:[%s1666 + $0x48] sm:$0xff]
        %v1677 = vld [vmem:[%s1666 + $0x50] sm:$0xff]
        %v1678 = vld [vmem:[%s1666 + $0x58] sm:$0xff]
        %v1679 = vld [vmem:[%s1666 + $0x60] sm:$0xff]
        %v1680 = vld [vmem:[%s1666 + $0x68] sm:$0xff]
        %v1681 = vld [vmem:[%s1666 + $0x70] sm:$0xff]
        %v1682 = vld [vmem:[%s1666 + $0x78] sm:$0xff]
        %v1684 = vrot.slane %v1382, 1
        %v1702 = vunpack.c.l.b16 %v1667
        %v1703 = vunpack.c.h.b16 %v1667
        %v1704 = vunpack.c.l.b16 %v1668
        %v1705 = vunpack.c.h.b16 %v1668
        %v1706 = vunpack.c.l.b16 %v1669
        %v1707 = vunpack.c.h.b16 %v1669
        %v1708 = vunpack.c.l.b16 %v1670
        %v1709 = vunpack.c.h.b16 %v1670
        %v1710 = vunpack.c.l.b16 %v1671
        %v1711 = vunpack.c.h.b16 %v1671
        %v1712 = vunpack.c.l.b16 %v1672
        %v1713 = vunpack.c.h.b16 %v1672
        %v1714 = vunpack.c.l.b16 %v1673
        %v1715 = vunpack.c.h.b16 %v1673
        %v1716 = vunpack.c.l.b16 %v1674
        %v1717 = vunpack.c.h.b16 %v1674
        %v1718 = vunpack.c.l.b16 %v1675
        %v1719 = vunpack.c.h.b16 %v1675
        %v1720 = vunpack.c.l.b16 %v1676
        %v1721 = vunpack.c.h.b16 %v1676
        %v1722 = vunpack.c.l.b16 %v1677
        %v1723 = vunpack.c.h.b16 %v1677
        %v1724 = vunpack.c.l.b16 %v1678
        %v1725 = vunpack.c.h.b16 %v1678
        %v1726 = vunpack.c.l.b16 %v1679
        %v1727 = vunpack.c.h.b16 %v1679
        %v1728 = vunpack.c.l.b16 %v1680
        %v1729 = vunpack.c.h.b16 %v1680
        %v1730 = vunpack.c.l.b16 %v1681
        %v1731 = vunpack.c.h.b16 %v1681
        %v1732 = vunpack.c.l.b16 %v1682
        %v1733 = vunpack.c.h.b16 %v1682
        %v1734 = vpack.c.b16 %v1704, %v1702
        %v1735 = vpack.c.b16 %v1705, %v1703
        %v1736 = vpack.c.b16 %v1708, %v1706
        %v1737 = vpack.c.b16 %v1709, %v1707
        %v1738 = vpack.c.b16 %v1712, %v1710
        %v1739 = vpack.c.b16 %v1713, %v1711
        %v1740 = vpack.c.b16 %v1716, %v1714
        %v1741 = vpack.c.b16 %v1717, %v1715
        %v1742 = vpack.c.b16 %v1720, %v1718
        %v1743 = vpack.c.b16 %v1721, %v1719
        %v1744 = vpack.c.b16 %v1724, %v1722
        %v1745 = vpack.c.b16 %v1725, %v1723
        %v1746 = vpack.c.b16 %v1728, %v1726
        %v1747 = vpack.c.b16 %v1729, %v1727
        %v1748 = vpack.c.b16 %v1732, %v1730
        %v1749 = vpack.c.b16 %v1733, %v1731
        %1766 = vmatprep.subr.bf16.mxu0 %v1735
        %1767 = vmatpush1.bf16.msra.mxu0 %v1734
        %1768 = vmatprep.subr.bf16.mxu0 %v1737
        %1769 = vmatpush1.bf16.msra.mxu0 %v1736
        %1770 = vmatprep.subr.bf16.mxu0 %v1739
        %1771 = vmatpush1.bf16.msra.mxu0 %v1738
        %1772 = vmatprep.subr.bf16.mxu0 %v1741
        %1773 = vmatpush1.bf16.msra.mxu0 %v1740
        %1774 = vmatprep.subr.bf16.mxu0 %v1743
        %1775 = vmatpush1.bf16.msra.mxu0 %v1742
        %1776 = vmatprep.subr.bf16.mxu0 %v1745
        %1777 = vmatpush1.bf16.msra.mxu0 %v1744
        %1778 = vmatprep.subr.bf16.mxu0 %v1747
        %1779 = vmatpush1.bf16.msra.mxu0 %v1746
        %1780 = vmatprep.subr.bf16.mxu0 %v1749
        %1781 = vmatpush1.bf16.msra.mxu0 %v1748
        %1782 = vmatprep.subr.bf16.mxu0 0
        %1783 = vmatpush1.bf16.msra.mxu0 0
        %1784 = vmatprep.subr.bf16.mxu0 0
        %1785 = vmatpush1.bf16.msra.mxu0 0
        %1786 = vmatprep.subr.bf16.mxu0 0
        %1787 = vmatpush1.bf16.msra.mxu0 0
        %1788 = vmatprep.subr.bf16.mxu0 0
        %1789 = vmatpush1.bf16.msra.mxu0 0
        %1790 = vmatprep.subr.bf16.mxu0 0
        %1791 = vmatpush1.bf16.msra.mxu0 0
        %1792 = vmatprep.subr.bf16.mxu0 0
        %1793 = vmatpush1.bf16.msra.mxu0 0
        %1794 = vmatprep.subr.bf16.mxu0 0
        %1795 = vmatpush1.bf16.msra.mxu0 0
        %1796 = vmatprep.subr.bf16.mxu0 0
        %1797 = vmatpush1.bf16.msra.mxu0 0
        %1798 = vmatprep.mubr.bf16.mxu0 0
        %1799 = vmatmul.mubr.bf16.gmra.mrb[0].mxu0 %v1684
        %v1800 = vpop.f32.mrb[0].mxu0
        %v1801 = vadd.f32 0.0, %v1800
        %v1802 = vpop.f32.mrb[0].mxu0
        %v1803 = vadd.f32 0.0, %v1802
        %v1804 = vpop.f32.mrb[0].mxu0
        %v1805 = vpop.f32.mrb[0].mxu0
        %1806 = vdwg.mxu0
        %v1807 = vadd.f32 %v1660, %v1801
        %v1808 = vadd.f32 %v1662, %v1803
        %s1809 = scalar_lea.vmem [#allocation5], 384
        %v1810 = vld [vmem:[%s1809] sm:$0xff]
        %v1811 = vld [vmem:[%s1809 + $0x8] sm:$0xff]
        %v1812 = vld [vmem:[%s1809 + $0x10] sm:$0xff]
        %v1813 = vld [vmem:[%s1809 + $0x18] sm:$0xff]
        %v1814 = vld [vmem:[%s1809 + $0x20] sm:$0xff]
        %v1815 = vld [vmem:[%s1809 + $0x28] sm:$0xff]
        %v1816 = vld [vmem:[%s1809 + $0x30] sm:$0xff]
        %v1817 = vld [vmem:[%s1809 + $0x38] sm:$0xff]
        %v1818 = vld [vmem:[%s1809 + $0x40] sm:$0xff]
        %v1819 = vld [vmem:[%s1809 + $0x48] sm:$0xff]
        %v1820 = vld [vmem:[%s1809 + $0x50] sm:$0xff]
        %v1821 = vld [vmem:[%s1809 + $0x58] sm:$0xff]
        %v1822 = vld [vmem:[%s1809 + $0x60] sm:$0xff]
        %v1823 = vld [vmem:[%s1809 + $0x68] sm:$0xff]
        %v1824 = vld [vmem:[%s1809 + $0x70] sm:$0xff]
        %v1825 = vld [vmem:[%s1809 + $0x78] sm:$0xff]
        %v1826 = vrot.slane %v1417, 1
        %v1827 = vrot.slane %v1419, 2
        %v1828 = vor.u32 %v1826, %v1827
        %v1846 = vunpack.c.l.b16 %v1810
        %v1847 = vunpack.c.h.b16 %v1810
        %v1848 = vunpack.c.l.b16 %v1811
        %v1849 = vunpack.c.h.b16 %v1811
        %v1850 = vunpack.c.l.b16 %v1812
        %v1851 = vunpack.c.h.b16 %v1812
        %v1852 = vunpack.c.l.b16 %v1813
        %v1853 = vunpack.c.h.b16 %v1813
        %v1854 = vunpack.c.l.b16 %v1814
        %v1855 = vunpack.c.h.b16 %v1814
        %v1856 = vunpack.c.l.b16 %v1815
        %v1857 = vunpack.c.h.b16 %v1815
        %v1858 = vunpack.c.l.b16 %v1816
        %v1859 = vunpack.c.h.b16 %v1816
        %v1860 = vunpack.c.l.b16 %v1817
        %v1861 = vunpack.c.h.b16 %v1817
        %v1862 = vunpack.c.l.b16 %v1818
        %v1863 = vunpack.c.h.b16 %v1818
        %v1864 = vunpack.c.l.b16 %v1819
        %v1865 = vunpack.c.h.b16 %v1819
        %v1866 = vunpack.c.l.b16 %v1820
        %v1867 = vunpack.c.h.b16 %v1820
        %v1868 = vunpack.c.l.b16 %v1821
        %v1869 = vunpack.c.h.b16 %v1821
        %v1870 = vunpack.c.l.b16 %v1822
        %v1871 = vunpack.c.h.b16 %v1822
        %v1872 = vunpack.c.l.b16 %v1823
        %v1873 = vunpack.c.h.b16 %v1823
        %v1874 = vunpack.c.l.b16 %v1824
        %v1875 = vunpack.c.h.b16 %v1824
        %v1876 = vunpack.c.l.b16 %v1825
        %v1877 = vunpack.c.h.b16 %v1825
        %v1878 = vpack.c.b16 %v1848, %v1846
        %v1879 = vpack.c.b16 %v1849, %v1847
        %v1880 = vpack.c.b16 %v1852, %v1850
        %v1881 = vpack.c.b16 %v1853, %v1851
        %v1882 = vpack.c.b16 %v1856, %v1854
        %v1883 = vpack.c.b16 %v1857, %v1855
        %v1884 = vpack.c.b16 %v1860, %v1858
        %v1885 = vpack.c.b16 %v1861, %v1859
        %v1886 = vpack.c.b16 %v1864, %v1862
        %v1887 = vpack.c.b16 %v1865, %v1863
        %v1888 = vpack.c.b16 %v1868, %v1866
        %v1889 = vpack.c.b16 %v1869, %v1867
        %v1890 = vpack.c.b16 %v1872, %v1870
        %v1891 = vpack.c.b16 %v1873, %v1871
        %v1892 = vpack.c.b16 %v1876, %v1874
        %v1893 = vpack.c.b16 %v1877, %v1875
        %1910 = vmatprep.subr.bf16.mxu0 %v1879
        %1911 = vmatpush1.bf16.msra.mxu0 %v1878
        %1912 = vmatprep.subr.bf16.mxu0 %v1881
        %1913 = vmatpush1.bf16.msra.mxu0 %v1880
        %1914 = vmatprep.subr.bf16.mxu0 %v1883
        %1915 = vmatpush1.bf16.msra.mxu0 %v1882
        %1916 = vmatprep.subr.bf16.mxu0 %v1885
        %1917 = vmatpush1.bf16.msra.mxu0 %v1884
        %1918 = vmatprep.subr.bf16.mxu0 %v1887
        %1919 = vmatpush1.bf16.msra.mxu0 %v1886
        %1920 = vmatprep.subr.bf16.mxu0 %v1889
        %1921 = vmatpush1.bf16.msra.mxu0 %v1888
        %1922 = vmatprep.subr.bf16.mxu0 %v1891
        %1923 = vmatpush1.bf16.msra.mxu0 %v1890
        %1924 = vmatprep.subr.bf16.mxu0 %v1893
        %1925 = vmatpush1.bf16.msra.mxu0 %v1892
        %1926 = vmatprep.subr.bf16.mxu0 0
        %1927 = vmatpush1.bf16.msra.mxu0 0
        %1928 = vmatprep.subr.bf16.mxu0 0
        %1929 = vmatpush1.bf16.msra.mxu0 0
        %1930 = vmatprep.subr.bf16.mxu0 0
        %1931 = vmatpush1.bf16.msra.mxu0 0
        %1932 = vmatprep.subr.bf16.mxu0 0
        %1933 = vmatpush1.bf16.msra.mxu0 0
        %1934 = vmatprep.subr.bf16.mxu0 0
        %1935 = vmatpush1.bf16.msra.mxu0 0
        %1936 = vmatprep.subr.bf16.mxu0 0
        %1937 = vmatpush1.bf16.msra.mxu0 0
        %1938 = vmatprep.subr.bf16.mxu0 0
        %1939 = vmatpush1.bf16.msra.mxu0 0
        %1940 = vmatprep.subr.bf16.mxu0 0
        %1941 = vmatpush1.bf16.msra.mxu0 0
        %1942 = vmatprep.mubr.bf16.mxu0 0
        %1943 = vmatmul.mubr.bf16.gmra.mrb[0].mxu0 %v1828
        %v1944 = vpop.f32.mrb[0].mxu0
        %v1945 = vadd.f32 0.0, %v1944
        %v1946 = vpop.f32.mrb[0].mxu0
        %v1947 = vadd.f32 0.0, %v1946
        %v1948 = vpop.f32.mrb[0].mxu0
        %v1949 = vpop.f32.mrb[0].mxu0
        %1950 = vdwg.mxu0
        %v1951 = vadd.f32 %v1807, %v1945
        %v1952 = vadd.f32 %v1808, %v1947
        %s1953 = scalar_lea.vmem [#allocation5], 512
        %v1954 = vld [vmem:[%s1953] sm:$0xff]
        %v1955 = vld [vmem:[%s1953 + $0x8] sm:$0xff]
        %v1956 = vld [vmem:[%s1953 + $0x10] sm:$0xff]
        %v1957 = vld [vmem:[%s1953 + $0x18] sm:$0xff]
        %v1958 = vld [vmem:[%s1953 + $0x20] sm:$0xff]
        %v1959 = vld [vmem:[%s1953 + $0x28] sm:$0xff]
        %v1960 = vld [vmem:[%s1953 + $0x30] sm:$0xff]
        %v1961 = vld [vmem:[%s1953 + $0x38] sm:$0xff]
        %v1962 = vld [vmem:[%s1953 + $0x40] sm:$0xff]
        %v1963 = vld [vmem:[%s1953 + $0x48] sm:$0xff]
        %v1964 = vld [vmem:[%s1953 + $0x50] sm:$0xff]
        %v1965 = vld [vmem:[%s1953 + $0x58] sm:$0xff]
        %v1966 = vld [vmem:[%s1953 + $0x60] sm:$0xff]
        %v1967 = vld [vmem:[%s1953 + $0x68] sm:$0xff]
        %v1968 = vld [vmem:[%s1953 + $0x70] sm:$0xff]
        %v1969 = vld [vmem:[%s1953 + $0x78] sm:$0xff]
        %v1970 = vrot.slane %v1382, 2
        %v1988 = vunpack.c.l.b16 %v1954
        %v1989 = vunpack.c.h.b16 %v1954
        %v1990 = vunpack.c.l.b16 %v1955
        %v1991 = vunpack.c.h.b16 %v1955
        %v1992 = vunpack.c.l.b16 %v1956
        %v1993 = vunpack.c.h.b16 %v1956
        %v1994 = vunpack.c.l.b16 %v1957
        %v1995 = vunpack.c.h.b16 %v1957
        %v1996 = vunpack.c.l.b16 %v1958
        %v1997 = vunpack.c.h.b16 %v1958
        %v1998 = vunpack.c.l.b16 %v1959
        %v1999 = vunpack.c.h.b16 %v1959
        %v2000 = vunpack.c.l.b16 %v1960
        %v2001 = vunpack.c.h.b16 %v1960
        %v2002 = vunpack.c.l.b16 %v1961
        %v2003 = vunpack.c.h.b16 %v1961
        %v2004 = vunpack.c.l.b16 %v1962
        %v2005 = vunpack.c.h.b16 %v1962
        %v2006 = vunpack.c.l.b16 %v1963
        %v2007 = vunpack.c.h.b16 %v1963
        %v2008 = vunpack.c.l.b16 %v1964
        %v2009 = vunpack.c.h.b16 %v1964
        %v2010 = vunpack.c.l.b16 %v1965
        %v2011 = vunpack.c.h.b16 %v1965
        %v2012 = vunpack.c.l.b16 %v1966
        %v2013 = vunpack.c.h.b16 %v1966
        %v2014 = vunpack.c.l.b16 %v1967
        %v2015 = vunpack.c.h.b16 %v1967
        %v2016 = vunpack.c.l.b16 %v1968
        %v2017 = vunpack.c.h.b16 %v1968
        %v2018 = vunpack.c.l.b16 %v1969
        %v2019 = vunpack.c.h.b16 %v1969
        %v2020 = vpack.c.b16 %v1990, %v1988
        %v2021 = vpack.c.b16 %v1991, %v1989
        %v2022 = vpack.c.b16 %v1994, %v1992
        %v2023 = vpack.c.b16 %v1995, %v1993
        %v2024 = vpack.c.b16 %v1998, %v1996
        %v2025 = vpack.c.b16 %v1999, %v1997
        %v2026 = vpack.c.b16 %v2002, %v2000
        %v2027 = vpack.c.b16 %v2003, %v2001
        %v2028 = vpack.c.b16 %v2006, %v2004
        %v2029 = vpack.c.b16 %v2007, %v2005
        %v2030 = vpack.c.b16 %v2010, %v2008
        %v2031 = vpack.c.b16 %v2011, %v2009
        %v2032 = vpack.c.b16 %v2014, %v2012
        %v2033 = vpack.c.b16 %v2015, %v2013
        %v2034 = vpack.c.b16 %v2018, %v2016
        %v2035 = vpack.c.b16 %v2019, %v2017
        %2052 = vmatprep.subr.bf16.mxu0 %v2021
        %2053 = vmatpush1.bf16.msra.mxu0 %v2020
        %2054 = vmatprep.subr.bf16.mxu0 %v2023
        %2055 = vmatpush1.bf16.msra.mxu0 %v2022
        %2056 = vmatprep.subr.bf16.mxu0 %v2025
        %2057 = vmatpush1.bf16.msra.mxu0 %v2024
        %2058 = vmatprep.subr.bf16.mxu0 %v2027
        %2059 = vmatpush1.bf16.msra.mxu0 %v2026
        %2060 = vmatprep.subr.bf16.mxu0 %v2029
        %2061 = vmatpush1.bf16.msra.mxu0 %v2028
        %2062 = vmatprep.subr.bf16.mxu0 %v2031
        %2063 = vmatpush1.bf16.msra.mxu0 %v2030
        %2064 = vmatprep.subr.bf16.mxu0 %v2033
        %2065 = vmatpush1.bf16.msra.mxu0 %v2032
        %2066 = vmatprep.subr.bf16.mxu0 %v2035
        %2067 = vmatpush1.bf16.msra.mxu0 %v2034
        %2068 = vmatprep.subr.bf16.mxu0 0
        %2069 = vmatpush1.bf16.msra.mxu0 0
        %2070 = vmatprep.subr.bf16.mxu0 0
        %2071 = vmatpush1.bf16.msra.mxu0 0
        %2072 = vmatprep.subr.bf16.mxu0 0
        %2073 = vmatpush1.bf16.msra.mxu0 0
        %2074 = vmatprep.subr.bf16.mxu0 0
        %2075 = vmatpush1.bf16.msra.mxu0 0
        %2076 = vmatprep.subr.bf16.mxu0 0
        %2077 = vmatpush1.bf16.msra.mxu0 0
        %2078 = vmatprep.subr.bf16.mxu0 0
        %2079 = vmatpush1.bf16.msra.mxu0 0
        %2080 = vmatprep.subr.bf16.mxu0 0
        %2081 = vmatpush1.bf16.msra.mxu0 0
        %2082 = vmatprep.subr.bf16.mxu0 0
        %2083 = vmatpush1.bf16.msra.mxu0 0
        %2084 = vmatprep.mubr.bf16.mxu0 0
        %2085 = vmatmul.mubr.bf16.gmra.mrb[0].mxu0 %v1970
        %v2086 = vpop.f32.mrb[0].mxu0
        %v2087 = vadd.f32 0.0, %v2086
        %v2088 = vpop.f32.mrb[0].mxu0
        %v2089 = vadd.f32 0.0, %v2088
        %v2090 = vpop.f32.mrb[0].mxu0
        %v2091 = vpop.f32.mrb[0].mxu0
        %2092 = vdwg.mxu0
        %v2093 = vadd.f32 %v1951, %v2087
        %v2094 = vadd.f32 %v1952, %v2089
        %v2095 = vld [vmem:[%s6] sm:$0x3]
        %v2097 = vlaneseq
        %v2098 = vshrl.u32 %v2097, 7
        %v2099 = vsub.s32 0, %v2098
        %v2100 = vrot.slane %v2095, %v2099
        %v2101 = vlaneseq
        %v2102 = vshrl.u32 %v2101, 7
        %v2103 = vsub.s32 1, %v2102
        %v2104 = vrot.slane %v2095, %v2103
        %v2107 = vadd.f32 %v2093, %v2100
        %v2108 = vadd.f32 %v2094, %v2104
        %v2109 = vmax.f32 %v2107, 0.0
        %v2110 = vmax.f32 %v2108, 0.0
        %v2111 = vld [vmem:[%s7] sm:$0xf]
        %vm2112 = vcmask 64512
        %v2114 = vsel %vm2112, %v2111, 0
        %2116 = vmatprep.subr.mxu0 %v2110
        %2117 = vmatpush1.msra.mxu0 %v2109
        %2118 = vmatprep.subr.mxu0 0.0
        %2119 = vmatpush1.msra.mxu0 0.0
        %2120 = vmatprep.subr.mxu0 0.0
        %2121 = vmatpush1.msra.mxu0 0.0
        %2122 = vmatprep.subr.mxu0 0.0
        %2123 = vmatpush1.msra.mxu0 0.0
        %2124 = vmatprep.subr.mxu0 0.0
        %2125 = vmatpush1.msra.mxu0 0.0
        %2126 = vmatprep.subr.mxu0 0.0
        %2127 = vmatpush1.msra.mxu0 0.0
        %2128 = vmatprep.subr.mxu0 0.0
        %2129 = vmatpush1.msra.mxu0 0.0
        %2130 = vmatprep.subr.mxu0 0.0
        %2131 = vmatpush1.msra.mxu0 0.0
        %2132 = vmatprep.subr.mxu0 0.0
        %2133 = vmatpush1.msra.mxu0 0.0
        %2134 = vmatprep.subr.mxu0 0.0
        %2135 = vmatpush1.msra.mxu0 0.0
        %2136 = vmatprep.subr.mxu0 0.0
        %2137 = vmatpush1.msra.mxu0 0.0
        %2138 = vmatprep.subr.mxu0 0.0
        %2139 = vmatpush1.msra.mxu0 0.0
        %2140 = vmatprep.subr.mxu0 0.0
        %2141 = vmatpush1.msra.mxu0 0.0
        %2142 = vmatprep.subr.mxu0 0.0
        %2143 = vmatpush1.msra.mxu0 0.0
        %2144 = vmatprep.subr.mxu0 0.0
        %2145 = vmatpush1.msra.mxu0 0.0
        %2146 = vmatprep.subr.mxu0 0.0
        %2147 = vmatpush1.msra.mxu0 0.0
        %2148 = vmatprep.subr.mxu0 0.0
        %2149 = vmatpush1.msra.mxu0 0.0
        %2150 = vmatprep.subr.mxu0 0.0
        %2151 = vmatpush1.msra.mxu0 0.0
        %2152 = vmatprep.subr.mxu0 0.0
        %2153 = vmatpush1.msra.mxu0 0.0
        %2154 = vmatprep.subr.mxu0 0.0
        %2155 = vmatpush1.msra.mxu0 0.0
        %2156 = vmatprep.subr.mxu0 0.0
        %2157 = vmatpush1.msra.mxu0 0.0
        %2158 = vmatprep.subr.mxu0 0.0
        %2159 = vmatpush1.msra.mxu0 0.0
        %2160 = vmatprep.subr.mxu0 0.0
        %2161 = vmatpush1.msra.mxu0 0.0
        %2162 = vmatprep.subr.mxu0 0.0
        %2163 = vmatpush1.msra.mxu0 0.0
        %2164 = vmatprep.subr.mxu0 0.0
        %2165 = vmatpush1.msra.mxu0 0.0
        %2166 = vmatprep.subr.mxu0 0.0
        %2167 = vmatpush1.msra.mxu0 0.0
        %2168 = vmatprep.subr.mxu0 0.0
        %2169 = vmatpush1.msra.mxu0 0.0
        %2170 = vmatprep.subr.mxu0 0.0
        %2171 = vmatpush1.msra.mxu0 0.0
        %2172 = vmatprep.subr.mxu0 0.0
        %2173 = vmatpush1.msra.mxu0 0.0
        %2174 = vmatprep.subr.mxu0 0.0
        %2175 = vmatpush1.msra.mxu0 0.0
        %2176 = vmatprep.subr.mxu0 0.0
        %2177 = vmatpush1.msra.mxu0 0.0
        %2178 = vmatprep.subr.mxu0 0.0
        %2179 = vmatpush1.msra.mxu0 0.0
        %2180 = vmatprep.mubr.f32.mxu0 0.0
        %2181 = vmatmul.mubr.f32.gmra.mrb[0].mxu0 %v2114
        %v2182 = vpop.f32.mrb[0].mxu0
        %v2183 = vadd.f32 0.0, %v2182
        %v2184 = vpop.f32.mrb[0].mxu0
        %v2185 = vadd.f32 0.0, %v2184
        %2186 = vdwg.mxu0
        %s2187 = scalar_lea.vmem %s7, 4
        %v2188 = vld [vmem:[%s2187] sm:$0xf]
        %v2190 = vsel %vm2112, %v2188, 0
        %2192 = vmatprep.subr.mxu0 %v2110
        %2193 = vmatpush1.msra.mxu0 %v2109
        %2194 = vmatprep.subr.mxu0 0.0
        %2195 = vmatpush1.msra.mxu0 0.0
        %2196 = vmatprep.subr.mxu0 0.0
        %2197 = vmatpush1.msra.mxu0 0.0
        %2198 = vmatprep.subr.mxu0 0.0
        %2199 = vmatpush1.msra.mxu0 0.0
        %2200 = vmatprep.subr.mxu0 0.0
        %2201 = vmatpush1.msra.mxu0 0.0
        %2202 = vmatprep.subr.mxu0 0.0
        %2203 = vmatpush1.msra.mxu0 0.0
        %2204 = vmatprep.subr.mxu0 0.0
        %2205 = vmatpush1.msra.mxu0 0.0
        %2206 = vmatprep.subr.mxu0 0.0
        %2207 = vmatpush1.msra.mxu0 0.0
        %2208 = vmatprep.subr.mxu0 0.0
        %2209 = vmatpush1.msra.mxu0 0.0
        %2210 = vmatprep.subr.mxu0 0.0
        %2211 = vmatpush1.msra.mxu0 0.0
        %2212 = vmatprep.subr.mxu0 0.0
        %2213 = vmatpush1.msra.mxu0 0.0
        %2214 = vmatprep.subr.mxu0 0.0
        %2215 = vmatpush1.msra.mxu0 0.0
        %2216 = vmatprep.subr.mxu0 0.0
        %2217 = vmatpush1.msra.mxu0 0.0
        %2218 = vmatprep.subr.mxu0 0.0
        %2219 = vmatpush1.msra.mxu0 0.0
        %2220 = vmatprep.subr.mxu0 0.0
        %2221 = vmatpush1.msra.mxu0 0.0
        %2222 = vmatprep.subr.mxu0 0.0
        %2223 = vmatpush1.msra.mxu0 0.0
        %2224 = vmatprep.subr.mxu0 0.0
        %2225 = vmatpush1.msra.mxu0 0.0
        %2226 = vmatprep.subr.mxu0 0.0
        %2227 = vmatpush1.msra.mxu0 0.0
        %2228 = vmatprep.subr.mxu0 0.0
        %2229 = vmatpush1.msra.mxu0 0.0
        %2230 = vmatprep.subr.mxu0 0.0
        %2231 = vmatpush1.msra.mxu0 0.0
        %2232 = vmatprep.subr.mxu0 0.0
        %2233 = vmatpush1.msra.mxu0 0.0
        %2234 = vmatprep.subr.mxu0 0.0
        %2235 = vmatpush1.msra.mxu0 0.0
        %2236 = vmatprep.subr.mxu0 0.0
        %2237 = vmatpush1.msra.mxu0 0.0
        %2238 = vmatprep.subr.mxu0 0.0
        %2239 = vmatpush1.msra.mxu0 0.0
        %2240 = vmatprep.subr.mxu0 0.0
        %2241 = vmatpush1.msra.mxu0 0.0
        %2242 = vmatprep.subr.mxu0 0.0
        %2243 = vmatpush1.msra.mxu0 0.0
        %2244 = vmatprep.subr.mxu0 0.0
        %2245 = vmatpush1.msra.mxu0 0.0
        %2246 = vmatprep.subr.mxu0 0.0
        %2247 = vmatpush1.msra.mxu0 0.0
        %2248 = vmatprep.subr.mxu0 0.0
        %2249 = vmatpush1.msra.mxu0 0.0
        %2250 = vmatprep.subr.mxu0 0.0
        %2251 = vmatpush1.msra.mxu0 0.0
        %2252 = vmatprep.subr.mxu0 0.0
        %2253 = vmatpush1.msra.mxu0 0.0
        %2254 = vmatprep.subr.mxu0 0.0
        %2255 = vmatpush1.msra.mxu0 0.0
        %2256 = vmatprep.mubr.f32.mxu0 0.0
        %2257 = vmatmul.mubr.f32.gmra.mrb[0].mxu0 %v2190
        %v2258 = vpop.f32.mrb[0].mxu0
        %v2259 = vadd.f32 0.0, %v2258
        %v2260 = vpop.f32.mrb[0].mxu0
        %v2261 = vadd.f32 0.0, %v2260
        %2262 = vdwg.mxu0
        %v2263 = vmax.f32 %v2183, %v2259
        %v2264 = vmax.f32 %v2185, %v2261
        %v2265 = vld [vmem:[#allocation7] sm:$0xff]
        %v2266 = vld [vmem:[#allocation7 + $0x8] sm:$0xff]
        %v2267 = vld [vmem:[#allocation7 + $0x10] sm:$0xff]
        %v2268 = vld [vmem:[#allocation7 + $0x18] sm:$0xff]
        %v2269 = vld [vmem:[#allocation7 + $0x20] sm:$0xff]
        %v2270 = vld [vmem:[#allocation7 + $0x28] sm:$0xff]
        %v2271 = vld [vmem:[#allocation7 + $0x30] sm:$0xff]
        %v2272 = vld [vmem:[#allocation7 + $0x38] sm:$0xff]
        %v2273 = vld [vmem:[#allocation7 + $0x40] sm:$0xff]
        %v2274 = vld [vmem:[#allocation7 + $0x48] sm:$0xff]
        %v2275 = vld [vmem:[#allocation7 + $0x50] sm:$0xff]
        %v2276 = vld [vmem:[#allocation7 + $0x58] sm:$0xff]
        %v2277 = vld [vmem:[#allocation7 + $0x60] sm:$0xff]
        %v2278 = vld [vmem:[#allocation7 + $0x68] sm:$0xff]
        %v2279 = vld [vmem:[#allocation7 + $0x70] sm:$0xff]
        %v2280 = vld [vmem:[#allocation7 + $0x78] sm:$0xff]
        %v2281 = vld [vmem:[#allocation7 + $0x80] sm:$0xff]
        %v2282 = vld [vmem:[#allocation7 + $0x88] sm:$0xff]
        %v2283 = vld [vmem:[#allocation7 + $0x90] sm:$0xff]
        %v2284 = vld [vmem:[#allocation7 + $0x98] sm:$0xff]
        %v2285 = vld [vmem:[#allocation7 + $0xa0] sm:$0xff]
        %v2286 = vld [vmem:[#allocation7 + $0xa8] sm:$0xff]
        %v2287 = vld [vmem:[#allocation7 + $0xb0] sm:$0xff]
        %v2288 = vld [vmem:[#allocation7 + $0xb8] sm:$0xff]
        %v2289 = vld [vmem:[#allocation7 + $0xc0] sm:$0xff]
        %v2290 = vld [vmem:[#allocation7 + $0xc8] sm:$0xff]
        %v2291 = vld [vmem:[#allocation7 + $0xd0] sm:$0xff]
        %v2292 = vld [vmem:[#allocation7 + $0xd8] sm:$0xff]
        %v2293 = vld [vmem:[#allocation7 + $0xe0] sm:$0xff]
        %v2294 = vld [vmem:[#allocation7 + $0xe8] sm:$0xff]
        %v2295 = vld [vmem:[#allocation7 + $0xf0] sm:$0xff]
        %v2296 = vld [vmem:[#allocation7 + $0xf8] sm:$0xff]
        %2297 = vmatprep.subr.mxu0 0.0
        %2298 = vmatpush1.msra.mxu0 %v2265
        %2299 = vmatprep.subr.mxu0 0.0
        %2300 = vmatpush1.msra.mxu0 %v2266
        %2301 = vmatprep.subr.mxu0 0.0
        %2302 = vmatpush1.msra.mxu0 %v2267
        %2303 = vmatprep.subr.mxu0 0.0
        %2304 = vmatpush1.msra.mxu0 %v2268
        %2305 = vmatprep.subr.mxu0 0.0
        %2306 = vmatpush1.msra.mxu0 %v2269
        %2307 = vmatprep.subr.mxu0 0.0
        %2308 = vmatpush1.msra.mxu0 %v2270
        %2309 = vmatprep.subr.mxu0 0.0
        %2310 = vmatpush1.msra.mxu0 %v2271
        %2311 = vmatprep.subr.mxu0 0.0
        %2312 = vmatpush1.msra.mxu0 %v2272
        %2313 = vmatprep.subr.mxu0 0.0
        %2314 = vmatpush1.msra.mxu0 %v2273
        %2315 = vmatprep.subr.mxu0 0.0
        %2316 = vmatpush1.msra.mxu0 %v2274
        %2317 = vmatprep.subr.mxu0 0.0
        %2318 = vmatpush1.msra.mxu0 %v2275
        %2319 = vmatprep.subr.mxu0 0.0
        %2320 = vmatpush1.msra.mxu0 %v2276
        %2321 = vmatprep.subr.mxu0 0.0
        %2322 = vmatpush1.msra.mxu0 %v2277
        %2323 = vmatprep.subr.mxu0 0.0
        %2324 = vmatpush1.msra.mxu0 %v2278
        %2325 = vmatprep.subr.mxu0 0.0
        %2326 = vmatpush1.msra.mxu0 %v2279
        %2327 = vmatprep.subr.mxu0 0.0
        %2328 = vmatpush1.msra.mxu0 %v2280
        %2329 = vmatprep.subr.mxu0 0.0
        %2330 = vmatpush1.msra.mxu0 %v2281
        %2331 = vmatprep.subr.mxu0 0.0
        %2332 = vmatpush1.msra.mxu0 %v2282
        %2333 = vmatprep.subr.mxu0 0.0
        %2334 = vmatpush1.msra.mxu0 %v2283
        %2335 = vmatprep.subr.mxu0 0.0
        %2336 = vmatpush1.msra.mxu0 %v2284
        %2337 = vmatprep.subr.mxu0 0.0
        %2338 = vmatpush1.msra.mxu0 %v2285
        %2339 = vmatprep.subr.mxu0 0.0
        %2340 = vmatpush1.msra.mxu0 %v2286
        %2341 = vmatprep.subr.mxu0 0.0
        %2342 = vmatpush1.msra.mxu0 %v2287
        %2343 = vmatprep.subr.mxu0 0.0
        %2344 = vmatpush1.msra.mxu0 %v2288
        %2345 = vmatprep.subr.mxu0 0.0
        %2346 = vmatpush1.msra.mxu0 %v2289
        %2347 = vmatprep.subr.mxu0 0.0
        %2348 = vmatpush1.msra.mxu0 %v2290
        %2349 = vmatprep.subr.mxu0 0.0
        %2350 = vmatpush1.msra.mxu0 %v2291
        %2351 = vmatprep.subr.mxu0 0.0
        %2352 = vmatpush1.msra.mxu0 %v2292
        %2353 = vmatprep.subr.mxu0 0.0
        %2354 = vmatpush1.msra.mxu0 %v2293
        %2355 = vmatprep.subr.mxu0 0.0
        %2356 = vmatpush1.msra.mxu0 %v2294
        %2357 = vmatprep.subr.mxu0 0.0
        %2358 = vmatpush1.msra.mxu0 %v2295
        %2359 = vmatprep.subr.mxu0 0.0
        %2360 = vmatpush1.msra.mxu0 %v2296
        %2361 = vmatprep.mubr.f32.mxu0 %v2264
        %2362 = vmatmul.mubr.f32.gmra.mrb[0].mxu0 %v2263
        %v2363 = vpop.f32.mrb[0].mxu0
        %v2364 = vadd.f32 0.0, %v2363
        %v2365 = vpop.f32.mrb[0].mxu0
        %2366 = vdwg.mxu0
        %s2367 = scalar_lea.vmem [#allocation7], 256
        %v2368 = vld [vmem:[%s2367] sm:$0xff]
        %v2369 = vld [vmem:[%s2367 + $0x8] sm:$0xff]
        %v2370 = vld [vmem:[%s2367 + $0x10] sm:$0xff]
        %v2371 = vld [vmem:[%s2367 + $0x18] sm:$0xff]
        %v2372 = vld [vmem:[%s2367 + $0x20] sm:$0xff]
        %v2373 = vld [vmem:[%s2367 + $0x28] sm:$0xff]
        %v2374 = vld [vmem:[%s2367 + $0x30] sm:$0xff]
        %v2375 = vld [vmem:[%s2367 + $0x38] sm:$0xff]
        %v2376 = vld [vmem:[%s2367 + $0x40] sm:$0xff]
        %v2377 = vld [vmem:[%s2367 + $0x48] sm:$0xff]
        %v2378 = vld [vmem:[%s2367 + $0x50] sm:$0xff]
        %v2379 = vld [vmem:[%s2367 + $0x58] sm:$0xff]
        %v2380 = vld [vmem:[%s2367 + $0x60] sm:$0xff]
        %v2381 = vld [vmem:[%s2367 + $0x68] sm:$0xff]
        %v2382 = vld [vmem:[%s2367 + $0x70] sm:$0xff]
        %v2383 = vld [vmem:[%s2367 + $0x78] sm:$0xff]
        %v2384 = vld [vmem:[%s2367 + $0x80] sm:$0xff]
        %v2385 = vld [vmem:[%s2367 + $0x88] sm:$0xff]
        %v2386 = vld [vmem:[%s2367 + $0x90] sm:$0xff]
        %v2387 = vld [vmem:[%s2367 + $0x98] sm:$0xff]
        %v2388 = vld [vmem:[%s2367 + $0xa0] sm:$0xff]
        %v2389 = vld [vmem:[%s2367 + $0xa8] sm:$0xff]
        %v2390 = vld [vmem:[%s2367 + $0xb0] sm:$0xff]
        %v2391 = vld [vmem:[%s2367 + $0xb8] sm:$0xff]
        %v2392 = vld [vmem:[%s2367 + $0xc0] sm:$0xff]
        %v2393 = vld [vmem:[%s2367 + $0xc8] sm:$0xff]
        %v2394 = vld [vmem:[%s2367 + $0xd0] sm:$0xff]
        %v2395 = vld [vmem:[%s2367 + $0xd8] sm:$0xff]
        %v2396 = vld [vmem:[%s2367 + $0xe0] sm:$0xff]
        %v2397 = vld [vmem:[%s2367 + $0xe8] sm:$0xff]
        %v2398 = vld [vmem:[%s2367 + $0xf0] sm:$0xff]
        %v2399 = vld [vmem:[%s2367 + $0xf8] sm:$0xff]
        %2400 = vmatprep.subr.mxu0 0.0
        %2401 = vmatpush1.msra.mxu0 %v2368
        %2402 = vmatprep.subr.mxu0 0.0
        %2403 = vmatpush1.msra.mxu0 %v2369
        %2404 = vmatprep.subr.mxu0 0.0
        %2405 = vmatpush1.msra.mxu0 %v2370
        %2406 = vmatprep.subr.mxu0 0.0
        %2407 = vmatpush1.msra.mxu0 %v2371
        %2408 = vmatprep.subr.mxu0 0.0
        %2409 = vmatpush1.msra.mxu0 %v2372
        %2410 = vmatprep.subr.mxu0 0.0
        %2411 = vmatpush1.msra.mxu0 %v2373
        %2412 = vmatprep.subr.mxu0 0.0
        %2413 = vmatpush1.msra.mxu0 %v2374
        %2414 = vmatprep.subr.mxu0 0.0
        %2415 = vmatpush1.msra.mxu0 %v2375
        %2416 = vmatprep.subr.mxu0 0.0
        %2417 = vmatpush1.msra.mxu0 %v2376
        %2418 = vmatprep.subr.mxu0 0.0
        %2419 = vmatpush1.msra.mxu0 %v2377
        %2420 = vmatprep.subr.mxu0 0.0
        %2421 = vmatpush1.msra.mxu0 %v2378
        %2422 = vmatprep.subr.mxu0 0.0
        %2423 = vmatpush1.msra.mxu0 %v2379
        %2424 = vmatprep.subr.mxu0 0.0
        %2425 = vmatpush1.msra.mxu0 %v2380
        %2426 = vmatprep.subr.mxu0 0.0
        %2427 = vmatpush1.msra.mxu0 %v2381
        %2428 = vmatprep.subr.mxu0 0.0
        %2429 = vmatpush1.msra.mxu0 %v2382
        %2430 = vmatprep.subr.mxu0 0.0
        %2431 = vmatpush1.msra.mxu0 %v2383
        %2432 = vmatprep.subr.mxu0 0.0
        %2433 = vmatpush1.msra.mxu0 %v2384
        %2434 = vmatprep.subr.mxu0 0.0
        %2435 = vmatpush1.msra.mxu0 %v2385
        %2436 = vmatprep.subr.mxu0 0.0
        %2437 = vmatpush1.msra.mxu0 %v2386
        %2438 = vmatprep.subr.mxu0 0.0
        %2439 = vmatpush1.msra.mxu0 %v2387
        %2440 = vmatprep.subr.mxu0 0.0
        %2441 = vmatpush1.msra.mxu0 %v2388
        %2442 = vmatprep.subr.mxu0 0.0
        %2443 = vmatpush1.msra.mxu0 %v2389
        %2444 = vmatprep.subr.mxu0 0.0
        %2445 = vmatpush1.msra.mxu0 %v2390
        %2446 = vmatprep.subr.mxu0 0.0
        %2447 = vmatpush1.msra.mxu0 %v2391
        %2448 = vmatprep.subr.mxu0 0.0
        %2449 = vmatpush1.msra.mxu0 %v2392
        %2450 = vmatprep.subr.mxu0 0.0
        %2451 = vmatpush1.msra.mxu0 %v2393
        %2452 = vmatprep.subr.mxu0 0.0
        %2453 = vmatpush1.msra.mxu0 %v2394
        %2454 = vmatprep.subr.mxu0 0.0
        %2455 = vmatpush1.msra.mxu0 %v2395
        %2456 = vmatprep.subr.mxu0 0.0
        %2457 = vmatpush1.msra.mxu0 %v2396
        %2458 = vmatprep.subr.mxu0 0.0
        %2459 = vmatpush1.msra.mxu0 %v2397
        %2460 = vmatprep.subr.mxu0 0.0
        %2461 = vmatpush1.msra.mxu0 %v2398
        %2462 = vmatprep.subr.mxu0 0.0
        %2463 = vmatpush1.msra.mxu0 %v2399
        %2464 = vmatprep.mubr.f32.mxu0 %v2264
        %2465 = vmatmul.mubr.f32.gmra.mrb[0].mxu0 %v2263
        %v2466 = vpop.f32.mrb[0].mxu0
        %v2467 = vadd.f32 0.0, %v2466
        %v2468 = vpop.f32.mrb[0].mxu0
        %2469 = vdwg.mxu0
        %v2470 = vmax.f32 %v2364, %v2467
        %v2471 = vpack.c.bf16 %v2470, %v2470
        %v2472 = vld [vmem:[#allocation8] sm:$0xff]
        %v2473 = vld [vmem:[#allocation8 + $0x8] sm:$0xff]
        %v2474 = vld [vmem:[#allocation8 + $0x10] sm:$0xff]
        %v2475 = vld [vmem:[#allocation8 + $0x18] sm:$0xff]
        %v2476 = vld [vmem:[#allocation8 + $0x20] sm:$0xff]
        %v2477 = vld [vmem:[#allocation8 + $0x28] sm:$0xff]
        %v2478 = vld [vmem:[#allocation8 + $0x30] sm:$0xff]
        %v2479 = vld [vmem:[#allocation8 + $0x38] sm:$0xff]
        %v2480 = vld [vmem:[#allocation8 + $0x40] sm:$0xff]
        %v2481 = vld [vmem:[#allocation8 + $0x48] sm:$0xff]
        %v2482 = vld [vmem:[#allocation8 + $0x50] sm:$0xff]
        %v2483 = vld [vmem:[#allocation8 + $0x58] sm:$0xff]
        %v2484 = vld [vmem:[#allocation8 + $0x60] sm:$0xff]
        %v2485 = vld [vmem:[#allocation8 + $0x68] sm:$0xff]
        %v2486 = vld [vmem:[#allocation8 + $0x70] sm:$0xff]
        %v2487 = vld [vmem:[#allocation8 + $0x78] sm:$0xff]
        %s2488 = scalar_lea.vmem [#allocation8], 128
        %v2489 = vld [vmem:[%s2488] sm:$0xff]
        %v2490 = vld [vmem:[%s2488 + $0x8] sm:$0xff]
        %v2491 = vld [vmem:[%s2488 + $0x10] sm:$0xff]
        %v2492 = vld [vmem:[%s2488 + $0x18] sm:$0xff]
        %v2493 = vld [vmem:[%s2488 + $0x20] sm:$0xff]
        %v2494 = vld [vmem:[%s2488 + $0x28] sm:$0xff]
        %v2495 = vld [vmem:[%s2488 + $0x30] sm:$0xff]
        %v2496 = vld [vmem:[%s2488 + $0x38] sm:$0xff]
        %v2497 = vld [vmem:[%s2488 + $0x40] sm:$0xff]
        %v2498 = vld [vmem:[%s2488 + $0x48] sm:$0xff]
        %v2499 = vld [vmem:[%s2488 + $0x50] sm:$0xff]
        %v2500 = vld [vmem:[%s2488 + $0x58] sm:$0xff]
        %v2501 = vld [vmem:[%s2488 + $0x60] sm:$0xff]
        %v2502 = vld [vmem:[%s2488 + $0x68] sm:$0xff]
        %v2503 = vld [vmem:[%s2488 + $0x70] sm:$0xff]
        %v2504 = vld [vmem:[%s2488 + $0x78] sm:$0xff]
        %v2506 = vshrl.u32 %v2471, 16
        %v2525 = vunpack.c.l.b16 %v2489
        %v2526 = vunpack.c.h.b16 %v2489
        %v2527 = vunpack.c.l.b16 %v2490
        %v2528 = vunpack.c.h.b16 %v2490
        %v2529 = vunpack.c.l.b16 %v2491
        %v2530 = vunpack.c.h.b16 %v2491
        %v2531 = vunpack.c.l.b16 %v2492
        %v2532 = vunpack.c.h.b16 %v2492
        %v2533 = vunpack.c.l.b16 %v2493
        %v2534 = vunpack.c.h.b16 %v2493
        %v2535 = vunpack.c.l.b16 %v2494
        %v2536 = vunpack.c.h.b16 %v2494
        %v2537 = vunpack.c.l.b16 %v2495
        %v2538 = vunpack.c.h.b16 %v2495
        %v2539 = vunpack.c.l.b16 %v2496
        %v2540 = vunpack.c.h.b16 %v2496
        %v2541 = vunpack.c.l.b16 %v2497
        %v2542 = vunpack.c.h.b16 %v2497
        %v2543 = vunpack.c.l.b16 %v2498
        %v2544 = vunpack.c.h.b16 %v2498
        %v2545 = vunpack.c.l.b16 %v2499
        %v2546 = vunpack.c.h.b16 %v2499
        %v2547 = vunpack.c.l.b16 %v2500
        %v2548 = vunpack.c.h.b16 %v2500
        %v2549 = vunpack.c.l.b16 %v2501
        %v2550 = vunpack.c.h.b16 %v2501
        %v2551 = vunpack.c.l.b16 %v2502
        %v2552 = vunpack.c.h.b16 %v2502
        %v2553 = vunpack.c.l.b16 %v2503
        %v2554 = vunpack.c.h.b16 %v2503
        %v2555 = vunpack.c.l.b16 %v2504
        %v2556 = vunpack.c.h.b16 %v2504
        %v2557 = vpack.c.b16 %v2527, %v2525
        %v2558 = vpack.c.b16 %v2528, %v2526
        %v2559 = vpack.c.b16 %v2531, %v2529
        %v2560 = vpack.c.b16 %v2532, %v2530
        %v2561 = vpack.c.b16 %v2535, %v2533
        %v2562 = vpack.c.b16 %v2536, %v2534
        %v2563 = vpack.c.b16 %v2539, %v2537
        %v2564 = vpack.c.b16 %v2540, %v2538
        %v2565 = vpack.c.b16 %v2543, %v2541
        %v2566 = vpack.c.b16 %v2544, %v2542
        %v2567 = vpack.c.b16 %v2547, %v2545
        %v2568 = vpack.c.b16 %v2548, %v2546
        %v2569 = vpack.c.b16 %v2551, %v2549
        %v2570 = vpack.c.b16 %v2552, %v2550
        %v2571 = vpack.c.b16 %v2555, %v2553
        %v2572 = vpack.c.b16 %v2556, %v2554
        %2589 = vmatprep.subr.bf16.mxu0 %v2558
        %2590 = vmatpush1.bf16.msra.mxu0 %v2557
        %2591 = vmatprep.subr.bf16.mxu0 %v2560
        %2592 = vmatpush1.bf16.msra.mxu0 %v2559
        %2593 = vmatprep.subr.bf16.mxu0 %v2562
        %2594 = vmatpush1.bf16.msra.mxu0 %v2561
        %2595 = vmatprep.subr.bf16.mxu0 %v2564
        %2596 = vmatpush1.bf16.msra.mxu0 %v2563
        %2597 = vmatprep.subr.bf16.mxu0 %v2566
        %2598 = vmatpush1.bf16.msra.mxu0 %v2565
        %2599 = vmatprep.subr.bf16.mxu0 %v2568
        %2600 = vmatpush1.bf16.msra.mxu0 %v2567
        %2601 = vmatprep.subr.bf16.mxu0 %v2570
        %2602 = vmatpush1.bf16.msra.mxu0 %v2569
        %2603 = vmatprep.subr.bf16.mxu0 %v2572
        %2604 = vmatpush1.bf16.msra.mxu0 %v2571
        %2605 = vmatprep.subr.bf16.mxu0 0
        %2606 = vmatpush1.bf16.msra.mxu0 0
        %2607 = vmatprep.subr.bf16.mxu0 0
        %2608 = vmatpush1.bf16.msra.mxu0 0
        %2609 = vmatprep.subr.bf16.mxu0 0
        %2610 = vmatpush1.bf16.msra.mxu0 0
        %2611 = vmatprep.subr.bf16.mxu0 0
        %2612 = vmatpush1.bf16.msra.mxu0 0
        %2613 = vmatprep.subr.bf16.mxu0 0
        %2614 = vmatpush1.bf16.msra.mxu0 0
        %2615 = vmatprep.subr.bf16.mxu0 0
        %2616 = vmatpush1.bf16.msra.mxu0 0
        %2617 = vmatprep.subr.bf16.mxu0 0
        %2618 = vmatpush1.bf16.msra.mxu0 0
        %2619 = vmatprep.subr.bf16.mxu0 0
        %2620 = vmatpush1.bf16.msra.mxu0 0
        %2621 = vmatprep.mubr.bf16.mxu0 0
        %2622 = vmatmul.mubr.bf16.gmra.mrb[0].mxu0 %v2506
        %v2623 = vpop.f32.mrb[0].mxu0
        %v2624 = vadd.f32 0.0, %v2623
        %v2625 = vpop.f32.mrb[0].mxu0
        %v2626 = vadd.f32 0.0, %v2625
        %v2627 = vpop.f32.mrb[0].mxu0
        %v2628 = vpop.f32.mrb[0].mxu0
        %2629 = vdwg.mxu0
        %v2646 = vunpack.c.l.b16 %v2472
        %v2647 = vunpack.c.h.b16 %v2472
        %v2648 = vunpack.c.l.b16 %v2473
        %v2649 = vunpack.c.h.b16 %v2473
        %v2650 = vunpack.c.l.b16 %v2474
        %v2651 = vunpack.c.h.b16 %v2474
        %v2652 = vunpack.c.l.b16 %v2475
        %v2653 = vunpack.c.h.b16 %v2475
        %v2654 = vunpack.c.l.b16 %v2476
        %v2655 = vunpack.c.h.b16 %v2476
        %v2656 = vunpack.c.l.b16 %v2477
        %v2657 = vunpack.c.h.b16 %v2477
        %v2658 = vunpack.c.l.b16 %v2478
        %v2659 = vunpack.c.h.b16 %v2478
        %v2660 = vunpack.c.l.b16 %v2479
        %v2661 = vunpack.c.h.b16 %v2479
        %v2662 = vunpack.c.l.b16 %v2480
        %v2663 = vunpack.c.h.b16 %v2480
        %v2664 = vunpack.c.l.b16 %v2481
        %v2665 = vunpack.c.h.b16 %v2481
        %v2666 = vunpack.c.l.b16 %v2482
        %v2667 = vunpack.c.h.b16 %v2482
        %v2668 = vunpack.c.l.b16 %v2483
        %v2669 = vunpack.c.h.b16 %v2483
        %v2670 = vunpack.c.l.b16 %v2484
        %v2671 = vunpack.c.h.b16 %v2484
        %v2672 = vunpack.c.l.b16 %v2485
        %v2673 = vunpack.c.h.b16 %v2485
        %v2674 = vunpack.c.l.b16 %v2486
        %v2675 = vunpack.c.h.b16 %v2486
        %v2676 = vunpack.c.l.b16 %v2487
        %v2677 = vunpack.c.h.b16 %v2487
        %v2678 = vpack.c.b16 %v2648, %v2646
        %v2679 = vpack.c.b16 %v2649, %v2647
        %v2680 = vpack.c.b16 %v2652, %v2650
        %v2681 = vpack.c.b16 %v2653, %v2651
        %v2682 = vpack.c.b16 %v2656, %v2654
        %v2683 = vpack.c.b16 %v2657, %v2655
        %v2684 = vpack.c.b16 %v2660, %v2658
        %v2685 = vpack.c.b16 %v2661, %v2659
        %v2686 = vpack.c.b16 %v2664, %v2662
        %v2687 = vpack.c.b16 %v2665, %v2663
        %v2688 = vpack.c.b16 %v2668, %v2666
        %v2689 = vpack.c.b16 %v2669, %v2667
        %v2690 = vpack.c.b16 %v2672, %v2670
        %v2691 = vpack.c.b16 %v2673, %v2671
        %v2692 = vpack.c.b16 %v2676, %v2674
        %v2693 = vpack.c.b16 %v2677, %v2675
        %2710 = vmatprep.subr.bf16.mxu0 %v2679
        %2711 = vmatpush1.bf16.msra.mxu0 %v2678
        %2712 = vmatprep.subr.bf16.mxu0 %v2681
        %2713 = vmatpush1.bf16.msra.mxu0 %v2680
        %2714 = vmatprep.subr.bf16.mxu0 %v2683
        %2715 = vmatpush1.bf16.msra.mxu0 %v2682
        %2716 = vmatprep.subr.bf16.mxu0 %v2685
        %2717 = vmatpush1.bf16.msra.mxu0 %v2684
        %2718 = vmatprep.subr.bf16.mxu0 %v2687
        %2719 = vmatpush1.bf16.msra.mxu0 %v2686
        %2720 = vmatprep.subr.bf16.mxu0 %v2689
        %2721 = vmatpush1.bf16.msra.mxu0 %v2688
        %2722 = vmatprep.subr.bf16.mxu0 %v2691
        %2723 = vmatpush1.bf16.msra.mxu0 %v2690
        %2724 = vmatprep.subr.bf16.mxu0 %v2693
        %2725 = vmatpush1.bf16.msra.mxu0 %v2692
        %2726 = vmatprep.subr.bf16.mxu0 0
        %2727 = vmatpush1.bf16.msra.mxu0 0
        %2728 = vmatprep.subr.bf16.mxu0 0
        %2729 = vmatpush1.bf16.msra.mxu0 0
        %2730 = vmatprep.subr.bf16.mxu0 0
        %2731 = vmatpush1.bf16.msra.mxu0 0
        %2732 = vmatprep.subr.bf16.mxu0 0
        %2733 = vmatpush1.bf16.msra.mxu0 0
        %2734 = vmatprep.subr.bf16.mxu0 0
        %2735 = vmatpush1.bf16.msra.mxu0 0
        %2736 = vmatprep.subr.bf16.mxu0 0
        %2737 = vmatpush1.bf16.msra.mxu0 0
        %2738 = vmatprep.subr.bf16.mxu0 0
        %2739 = vmatpush1.bf16.msra.mxu0 0
        %2740 = vmatprep.subr.bf16.mxu0 0
        %2741 = vmatpush1.bf16.msra.mxu0 0
        %2742 = vmatprep.mubr.bf16.mxu0 0
        %2743 = vmatmul.mubr.bf16.gmra.mrb[0].mxu0 %v2471
        %v2744 = vpop.f32.mrb[0].mxu0
        %v2745 = vadd.f32 %v2624, %v2744
        %v2746 = vpop.f32.mrb[0].mxu0
        %v2747 = vadd.f32 %v2626, %v2746
        %v2748 = vpop.f32.mrb[0].mxu0
        %v2749 = vpop.f32.mrb[0].mxu0
        %2750 = vdwg.mxu0
        %s2751 = scalar_lea.vmem [#allocation8], 256
        %v2752 = vld [vmem:[%s2751] sm:$0xff]
        %v2753 = vld [vmem:[%s2751 + $0x8] sm:$0xff]
        %v2754 = vld [vmem:[%s2751 + $0x10] sm:$0xff]
        %v2755 = vld [vmem:[%s2751 + $0x18] sm:$0xff]
        %v2756 = vld [vmem:[%s2751 + $0x20] sm:$0xff]
        %v2757 = vld [vmem:[%s2751 + $0x28] sm:$0xff]
        %v2758 = vld [vmem:[%s2751 + $0x30] sm:$0xff]
        %v2759 = vld [vmem:[%s2751 + $0x38] sm:$0xff]
        %v2760 = vld [vmem:[%s2751 + $0x40] sm:$0xff]
        %v2761 = vld [vmem:[%s2751 + $0x48] sm:$0xff]
        %v2762 = vld [vmem:[%s2751 + $0x50] sm:$0xff]
        %v2763 = vld [vmem:[%s2751 + $0x58] sm:$0xff]
        %v2764 = vld [vmem:[%s2751 + $0x60] sm:$0xff]
        %v2765 = vld [vmem:[%s2751 + $0x68] sm:$0xff]
        %v2766 = vld [vmem:[%s2751 + $0x70] sm:$0xff]
        %v2767 = vld [vmem:[%s2751 + $0x78] sm:$0xff]
        %v2769 = vrot.slane %v2471, 1
        %v2787 = vunpack.c.l.b16 %v2752
        %v2788 = vunpack.c.h.b16 %v2752
        %v2789 = vunpack.c.l.b16 %v2753
        %v2790 = vunpack.c.h.b16 %v2753
        %v2791 = vunpack.c.l.b16 %v2754
        %v2792 = vunpack.c.h.b16 %v2754
        %v2793 = vunpack.c.l.b16 %v2755
        %v2794 = vunpack.c.h.b16 %v2755
        %v2795 = vunpack.c.l.b16 %v2756
        %v2796 = vunpack.c.h.b16 %v2756
        %v2797 = vunpack.c.l.b16 %v2757
        %v2798 = vunpack.c.h.b16 %v2757
        %v2799 = vunpack.c.l.b16 %v2758
        %v2800 = vunpack.c.h.b16 %v2758
        %v2801 = vunpack.c.l.b16 %v2759
        %v2802 = vunpack.c.h.b16 %v2759
        %v2803 = vunpack.c.l.b16 %v2760
        %v2804 = vunpack.c.h.b16 %v2760
        %v2805 = vunpack.c.l.b16 %v2761
        %v2806 = vunpack.c.h.b16 %v2761
        %v2807 = vunpack.c.l.b16 %v2762
        %v2808 = vunpack.c.h.b16 %v2762
        %v2809 = vunpack.c.l.b16 %v2763
        %v2810 = vunpack.c.h.b16 %v2763
        %v2811 = vunpack.c.l.b16 %v2764
        %v2812 = vunpack.c.h.b16 %v2764
        %v2813 = vunpack.c.l.b16 %v2765
        %v2814 = vunpack.c.h.b16 %v2765
        %v2815 = vunpack.c.l.b16 %v2766
        %v2816 = vunpack.c.h.b16 %v2766
        %v2817 = vunpack.c.l.b16 %v2767
        %v2818 = vunpack.c.h.b16 %v2767
        %v2819 = vpack.c.b16 %v2789, %v2787
        %v2820 = vpack.c.b16 %v2790, %v2788
        %v2821 = vpack.c.b16 %v2793, %v2791
        %v2822 = vpack.c.b16 %v2794, %v2792
        %v2823 = vpack.c.b16 %v2797, %v2795
        %v2824 = vpack.c.b16 %v2798, %v2796
        %v2825 = vpack.c.b16 %v2801, %v2799
        %v2826 = vpack.c.b16 %v2802, %v2800
        %v2827 = vpack.c.b16 %v2805, %v2803
        %v2828 = vpack.c.b16 %v2806, %v2804
        %v2829 = vpack.c.b16 %v2809, %v2807
        %v2830 = vpack.c.b16 %v2810, %v2808
        %v2831 = vpack.c.b16 %v2813, %v2811
        %v2832 = vpack.c.b16 %v2814, %v2812
        %v2833 = vpack.c.b16 %v2817, %v2815
        %v2834 = vpack.c.b16 %v2818, %v2816
        %2851 = vmatprep.subr.bf16.mxu0 %v2820
        %2852 = vmatpush1.bf16.msra.mxu0 %v2819
        %2853 = vmatprep.subr.bf16.mxu0 %v2822
        %2854 = vmatpush1.bf16.msra.mxu0 %v2821
        %2855 = vmatprep.subr.bf16.mxu0 %v2824
        %2856 = vmatpush1.bf16.msra.mxu0 %v2823
        %2857 = vmatprep.subr.bf16.mxu0 %v2826
        %2858 = vmatpush1.bf16.msra.mxu0 %v2825
        %2859 = vmatprep.subr.bf16.mxu0 %v2828
        %2860 = vmatpush1.bf16.msra.mxu0 %v2827
        %2861 = vmatprep.subr.bf16.mxu0 %v2830
        %2862 = vmatpush1.bf16.msra.mxu0 %v2829
        %2863 = vmatprep.subr.bf16.mxu0 %v2832
        %2864 = vmatpush1.bf16.msra.mxu0 %v2831
        %2865 = vmatprep.subr.bf16.mxu0 %v2834
        %2866 = vmatpush1.bf16.msra.mxu0 %v2833
        %2867 = vmatprep.subr.bf16.mxu0 0
        %2868 = vmatpush1.bf16.msra.mxu0 0
        %2869 = vmatprep.subr.bf16.mxu0 0
        %2870 = vmatpush1.bf16.msra.mxu0 0
        %2871 = vmatprep.subr.bf16.mxu0 0
        %2872 = vmatpush1.bf16.msra.mxu0 0
        %2873 = vmatprep.subr.bf16.mxu0 0
        %2874 = vmatpush1.bf16.msra.mxu0 0
        %2875 = vmatprep.subr.bf16.mxu0 0
        %2876 = vmatpush1.bf16.msra.mxu0 0
        %2877 = vmatprep.subr.bf16.mxu0 0
        %2878 = vmatpush1.bf16.msra.mxu0 0
        %2879 = vmatprep.subr.bf16.mxu0 0
        %2880 = vmatpush1.bf16.msra.mxu0 0
        %2881 = vmatprep.subr.bf16.mxu0 0
        %2882 = vmatpush1.bf16.msra.mxu0 0
        %2883 = vmatprep.mubr.bf16.mxu0 0
        %2884 = vmatmul.mubr.bf16.gmra.mrb[0].mxu0 %v2769
        %v2885 = vpop.f32.mrb[0].mxu0
        %v2886 = vadd.f32 0.0, %v2885
        %v2887 = vpop.f32.mrb[0].mxu0
        %v2888 = vadd.f32 0.0, %v2887
        %v2889 = vpop.f32.mrb[0].mxu0
        %v2890 = vpop.f32.mrb[0].mxu0
        %2891 = vdwg.mxu0
        %v2892 = vadd.f32 %v2745, %v2886
        %v2893 = vadd.f32 %v2747, %v2888
        %s2894 = scalar_lea.vmem [#allocation8], 384
        %v2895 = vld [vmem:[%s2894] sm:$0xff]
        %v2896 = vld [vmem:[%s2894 + $0x8] sm:$0xff]
        %v2897 = vld [vmem:[%s2894 + $0x10] sm:$0xff]
        %v2898 = vld [vmem:[%s2894 + $0x18] sm:$0xff]
        %v2899 = vld [vmem:[%s2894 + $0x20] sm:$0xff]
        %v2900 = vld [vmem:[%s2894 + $0x28] sm:$0xff]
        %v2901 = vld [vmem:[%s2894 + $0x30] sm:$0xff]
        %v2902 = vld [vmem:[%s2894 + $0x38] sm:$0xff]
        %v2903 = vld [vmem:[%s2894 + $0x40] sm:$0xff]
        %v2904 = vld [vmem:[%s2894 + $0x48] sm:$0xff]
        %v2905 = vld [vmem:[%s2894 + $0x50] sm:$0xff]
        %v2906 = vld [vmem:[%s2894 + $0x58] sm:$0xff]
        %v2907 = vld [vmem:[%s2894 + $0x60] sm:$0xff]
        %v2908 = vld [vmem:[%s2894 + $0x68] sm:$0xff]
        %v2909 = vld [vmem:[%s2894 + $0x70] sm:$0xff]
        %v2910 = vld [vmem:[%s2894 + $0x78] sm:$0xff]
        %v2911 = vrot.slane %v2506, 1
        %v2929 = vunpack.c.l.b16 %v2895
        %v2930 = vunpack.c.h.b16 %v2895
        %v2931 = vunpack.c.l.b16 %v2896
        %v2932 = vunpack.c.h.b16 %v2896
        %v2933 = vunpack.c.l.b16 %v2897
        %v2934 = vunpack.c.h.b16 %v2897
        %v2935 = vunpack.c.l.b16 %v2898
        %v2936 = vunpack.c.h.b16 %v2898
        %v2937 = vunpack.c.l.b16 %v2899
        %v2938 = vunpack.c.h.b16 %v2899
        %v2939 = vunpack.c.l.b16 %v2900
        %v2940 = vunpack.c.h.b16 %v2900
        %v2941 = vunpack.c.l.b16 %v2901
        %v2942 = vunpack.c.h.b16 %v2901
        %v2943 = vunpack.c.l.b16 %v2902
        %v2944 = vunpack.c.h.b16 %v2902
        %v2945 = vunpack.c.l.b16 %v2903
        %v2946 = vunpack.c.h.b16 %v2903
        %v2947 = vunpack.c.l.b16 %v2904
        %v2948 = vunpack.c.h.b16 %v2904
        %v2949 = vunpack.c.l.b16 %v2905
        %v2950 = vunpack.c.h.b16 %v2905
        %v2951 = vunpack.c.l.b16 %v2906
        %v2952 = vunpack.c.h.b16 %v2906
        %v2953 = vunpack.c.l.b16 %v2907
        %v2954 = vunpack.c.h.b16 %v2907
        %v2955 = vunpack.c.l.b16 %v2908
        %v2956 = vunpack.c.h.b16 %v2908
        %v2957 = vunpack.c.l.b16 %v2909
        %v2958 = vunpack.c.h.b16 %v2909
        %v2959 = vunpack.c.l.b16 %v2910
        %v2960 = vunpack.c.h.b16 %v2910
        %v2961 = vpack.c.b16 %v2931, %v2929
        %v2962 = vpack.c.b16 %v2932, %v2930
        %v2963 = vpack.c.b16 %v2935, %v2933
        %v2964 = vpack.c.b16 %v2936, %v2934
        %v2965 = vpack.c.b16 %v2939, %v2937
        %v2966 = vpack.c.b16 %v2940, %v2938
        %v2967 = vpack.c.b16 %v2943, %v2941
        %v2968 = vpack.c.b16 %v2944, %v2942
        %v2969 = vpack.c.b16 %v2947, %v2945
        %v2970 = vpack.c.b16 %v2948, %v2946
        %v2971 = vpack.c.b16 %v2951, %v2949
        %v2972 = vpack.c.b16 %v2952, %v2950
        %v2973 = vpack.c.b16 %v2955, %v2953
        %v2974 = vpack.c.b16 %v2956, %v2954
        %v2975 = vpack.c.b16 %v2959, %v2957
        %v2976 = vpack.c.b16 %v2960, %v2958
        %2993 = vmatprep.subr.bf16.mxu0 %v2962
        %2994 = vmatpush1.bf16.msra.mxu0 %v2961
        %2995 = vmatprep.subr.bf16.mxu0 %v2964
        %2996 = vmatpush1.bf16.msra.mxu0 %v2963
        %2997 = vmatprep.subr.bf16.mxu0 %v2966
        %2998 = vmatpush1.bf16.msra.mxu0 %v2965
        %2999 = vmatprep.subr.bf16.mxu0 %v2968
        %3000 = vmatpush1.bf16.msra.mxu0 %v2967
        %3001 = vmatprep.subr.bf16.mxu0 %v2970
        %3002 = vmatpush1.bf16.msra.mxu0 %v2969
        %3003 = vmatprep.subr.bf16.mxu0 %v2972
        %3004 = vmatpush1.bf16.msra.mxu0 %v2971
        %3005 = vmatprep.subr.bf16.mxu0 %v2974
        %3006 = vmatpush1.bf16.msra.mxu0 %v2973
        %3007 = vmatprep.subr.bf16.mxu0 %v2976
        %3008 = vmatpush1.bf16.msra.mxu0 %v2975
        %3009 = vmatprep.subr.bf16.mxu0 0
        %3010 = vmatpush1.bf16.msra.mxu0 0
        %3011 = vmatprep.subr.bf16.mxu0 0
        %3012 = vmatpush1.bf16.msra.mxu0 0
        %3013 = vmatprep.subr.bf16.mxu0 0
        %3014 = vmatpush1.bf16.msra.mxu0 0
        %3015 = vmatprep.subr.bf16.mxu0 0
        %3016 = vmatpush1.bf16.msra.mxu0 0
        %3017 = vmatprep.subr.bf16.mxu0 0
        %3018 = vmatpush1.bf16.msra.mxu0 0
        %3019 = vmatprep.subr.bf16.mxu0 0
        %3020 = vmatpush1.bf16.msra.mxu0 0
        %3021 = vmatprep.subr.bf16.mxu0 0
        %3022 = vmatpush1.bf16.msra.mxu0 0
        %3023 = vmatprep.subr.bf16.mxu0 0
        %3024 = vmatpush1.bf16.msra.mxu0 0
        %3025 = vmatprep.mubr.bf16.mxu0 0
        %3026 = vmatmul.mubr.bf16.gmra.mrb[0].mxu0 %v2911
        %v3027 = vpop.f32.mrb[0].mxu0
        %v3028 = vadd.f32 0.0, %v3027
        %v3029 = vpop.f32.mrb[0].mxu0
        %v3030 = vadd.f32 0.0, %v3029
        %v3031 = vpop.f32.mrb[0].mxu0
        %v3032 = vpop.f32.mrb[0].mxu0
        %3033 = vdwg.mxu0
        %v3034 = vadd.f32 %v2892, %v3028
        %v3035 = vadd.f32 %v2893, %v3030
        %v3036 = vld [vmem:[%s10] sm:$0x3]
        %v3038 = vlaneseq
        %v3039 = vshrl.u32 %v3038, 7
        %v3040 = vsub.s32 0, %v3039
        %v3041 = vrot.slane %v3036, %v3040
        %v3042 = vlaneseq
        %v3043 = vshrl.u32 %v3042, 7
        %v3044 = vsub.s32 1, %v3043
        %v3045 = vrot.slane %v3036, %v3044
        %v3048 = vadd.f32 %v3034, %v3041
        %v3049 = vadd.f32 %v3035, %v3045
        %v3050 = vmax.f32 %v3048, 0.0
        %v3051 = vmax.f32 %v3049, 0.0
        %v3052 = vld [vmem:[%s11] sm:$0xff]
        %v3053 = vld [vmem:[%s11 + $0x8] sm:$0xff]
        %v3054 = vld [vmem:[%s11 + $0x10] sm:$0xff]
        %v3055 = vld [vmem:[%s11 + $0x18] sm:$0xff]
        %v3056 = vld [vmem:[%s11 + $0x20] sm:$0xff]
        %v3057 = vld [vmem:[%s11 + $0x28] sm:$0xff]
        %v3058 = vld [vmem:[%s11 + $0x30] sm:$0xff]
        %v3059 = vld [vmem:[%s11 + $0x38] sm:$0xff]
        %v3060 = vld [vmem:[%s11 + $0x40] sm:$0xff]
        %v3061 = vld [vmem:[%s11 + $0x48] sm:$0xff]
        %v3062 = vld [vmem:[%s11 + $0x50] sm:$0xff]
        %v3063 = vld [vmem:[%s11 + $0x58] sm:$0xff]
        %v3064 = vld [vmem:[%s11 + $0x60] sm:$0xff]
        %v3065 = vld [vmem:[%s11 + $0x68] sm:$0xff]
        %v3066 = vld [vmem:[%s11 + $0x70] sm:$0xff]
        %v3067 = vld [vmem:[%s11 + $0x78] sm:$0xff]
        %v3068 = vld [vmem:[%s11 + $0x80] sm:$0xff]
        %v3069 = vld [vmem:[%s11 + $0x88] sm:$0xff]
        %v3070 = vld [vmem:[%s11 + $0x90] sm:$0xff]
        %v3071 = vld [vmem:[%s11 + $0x98] sm:$0xff]
        %v3072 = vld [vmem:[%s11 + $0xa0] sm:$0xff]
        %v3073 = vld [vmem:[%s11 + $0xa8] sm:$0xff]
        %v3074 = vld [vmem:[%s11 + $0xb0] sm:$0xff]
        %v3075 = vld [vmem:[%s11 + $0xb8] sm:$0xff]
        %v3076 = vld [vmem:[%s11 + $0xc0] sm:$0xff]
        %v3077 = vld [vmem:[%s11 + $0xc8] sm:$0xff]
        %v3078 = vld [vmem:[%s11 + $0xd0] sm:$0xff]
        %v3079 = vld [vmem:[%s11 + $0xd8] sm:$0xff]
        %v3080 = vld [vmem:[%s11 + $0xe0] sm:$0xff]
        %v3081 = vld [vmem:[%s11 + $0xe8] sm:$0xff]
        %v3082 = vld [vmem:[%s11 + $0xf0] sm:$0xff]
        %v3083 = vld [vmem:[%s11 + $0xf8] sm:$0xff]
        %v3084 = vld [vmem:[%s12] sm:$0x1]
        %3085 = vmatprep.subr.mxu0 0.0
        %3086 = vmatpush1.msra.mxu0 %v3052
        %3087 = vmatprep.subr.mxu0 0.0
        %3088 = vmatpush1.msra.mxu0 %v3053
        %3089 = vmatprep.subr.mxu0 0.0
        %3090 = vmatpush1.msra.mxu0 %v3054
        %3091 = vmatprep.subr.mxu0 0.0
        %3092 = vmatpush1.msra.mxu0 %v3055
        %3093 = vmatprep.subr.mxu0 0.0
        %3094 = vmatpush1.msra.mxu0 %v3056
        %3095 = vmatprep.subr.mxu0 0.0
        %3096 = vmatpush1.msra.mxu0 %v3057
        %3097 = vmatprep.subr.mxu0 0.0
        %3098 = vmatpush1.msra.mxu0 %v3058
        %3099 = vmatprep.subr.mxu0 0.0
        %3100 = vmatpush1.msra.mxu0 %v3059
        %3101 = vmatprep.subr.mxu0 0.0
        %3102 = vmatpush1.msra.mxu0 %v3060
        %3103 = vmatprep.subr.mxu0 0.0
        %3104 = vmatpush1.msra.mxu0 %v3061
        %3105 = vmatprep.subr.mxu0 0.0
        %3106 = vmatpush1.msra.mxu0 %v3062
        %3107 = vmatprep.subr.mxu0 0.0
        %3108 = vmatpush1.msra.mxu0 %v3063
        %3109 = vmatprep.subr.mxu0 0.0
        %3110 = vmatpush1.msra.mxu0 %v3064
        %3111 = vmatprep.subr.mxu0 0.0
        %3112 = vmatpush1.msra.mxu0 %v3065
        %3113 = vmatprep.subr.mxu0 0.0
        %3114 = vmatpush1.msra.mxu0 %v3066
        %3115 = vmatprep.subr.mxu0 0.0
        %3116 = vmatpush1.msra.mxu0 %v3067
        %3117 = vmatprep.subr.mxu0 0.0
        %3118 = vmatpush1.msra.mxu0 %v3068
        %3119 = vmatprep.subr.mxu0 0.0
        %3120 = vmatpush1.msra.mxu0 %v3069
        %3121 = vmatprep.subr.mxu0 0.0
        %3122 = vmatpush1.msra.mxu0 %v3070
        %3123 = vmatprep.subr.mxu0 0.0
        %3124 = vmatpush1.msra.mxu0 %v3071
        %3125 = vmatprep.subr.mxu0 0.0
        %3126 = vmatpush1.msra.mxu0 %v3072
        %3127 = vmatprep.subr.mxu0 0.0
        %3128 = vmatpush1.msra.mxu0 %v3073
        %3129 = vmatprep.subr.mxu0 0.0
        %3130 = vmatpush1.msra.mxu0 %v3074
        %3131 = vmatprep.subr.mxu0 0.0
        %3132 = vmatpush1.msra.mxu0 %v3075
        %3133 = vmatprep.subr.mxu0 0.0
        %3134 = vmatpush1.msra.mxu0 %v3076
        %3135 = vmatprep.subr.mxu0 0.0
        %3136 = vmatpush1.msra.mxu0 %v3077
        %3137 = vmatprep.subr.mxu0 0.0
        %3138 = vmatpush1.msra.mxu0 %v3078
        %3139 = vmatprep.subr.mxu0 0.0
        %3140 = vmatpush1.msra.mxu0 %v3079
        %3141 = vmatprep.subr.mxu0 0.0
        %3142 = vmatpush1.msra.mxu0 %v3080
        %3143 = vmatprep.subr.mxu0 0.0
        %3144 = vmatpush1.msra.mxu0 %v3081
        %3145 = vmatprep.subr.mxu0 0.0
        %3146 = vmatpush1.msra.mxu0 %v3082
        %3147 = vmatprep.subr.mxu0 0.0
        %3148 = vmatpush1.msra.mxu0 %v3083
        %3149 = vmatprep.mubr.f32.mxu0 %v3051
        %3150 = vmatmul.mubr.f32.gmra.mrb[0].mxu0 %v3050
        %v3151 = vpop.f32.mrb[0].mxu0
        %v3152 = vadd.f32 %v3084, %v3151
        %v3153 = vpop.f32.mrb[0].mxu0
        %3154 = vdwg.mxu0
        %vm3155 = vcmask 8192
        %3156 = vst.msk [vmem:[%s491] sm:$0x1] %vm3155, %v3152
        %s3157 = sand.u32 %s316, 1
        %s3158 = scalar_lea.sflag [#allocation4], %s3157
        %s3159 = sand.u32 %s316, 1
        %s3160 = scalar_lea.vmem [#allocation10], %s3159
        // Predicated region
        $region89: #{cnn1_forward.1} parent=71 // pred_check
          %p3161 = pneg %p326
        $region90: #{cnn1_forward.1} parent=71 // pred_check_branch
          %3163 = sbr.rel (%p3161) target = $region92
        $region91: #{cnn1_forward.1} parent=71 // pred_region
          %s3165 = ssub.s32 16, 16
          %3166 = vsyncadd %s3158, %s3165
          %s3167 = smul.addr %s30, 16
          %s3168 = scalar_lea.hbm %s13, %s3167
          %s3170 = sshll.u32 %s3160, 4
          %s3171 = int_to_ptr.vmem [resolvable:$true] %s3170
          %3173 = dma.vmem_to_hbm [thread:$0]  %s3171, 16, %s3168, %s3158
        $region92: #{cnn1_forward.1} parent=71 // pred_fallthru
          _
      $region72: #{cnn1_forward.1} parent=5 // pred_fallthru
        _
      %p3174 = scmp.le.s32.totalorder 2, %s25
      // Predicated region
      $region93: #{cnn1_forward.1} parent=5 // pred_check
        %p3175 = pneg %p3174
      $region94: #{cnn1_forward.1} parent=5 // pred_check_branch
        %3177 = sbr.rel (%p3175) target = $region96
      $region95: #{cnn1_forward.1} parent=5 // pred_region
        %s3178 = ssub.s32 %s25, 2
        // Predicated region
        $region97: #{cnn1_forward.1} parent=95 // pred_check
          %p3179 = pneg %p332
        $region98: #{cnn1_forward.1} parent=95 // pred_check_branch
          %3181 = sbr.rel (%p3179) target = $region100
        $region99: #{cnn1_forward.1} parent=95 // pred_region
          %s3182 = sand.u32 %s317, 1
          %s3183 = scalar_lea.sflag [#allocation4], %s3182
          %s3184 = sand.u32 %s317, 1
          %s3185 = scalar_lea.vmem [#allocation10], %s3184
          %3186 = dma.done %s3183, 16
        $region100: #{cnn1_forward.1} parent=95 // pred_fallthru
          _
      $region96: #{cnn1_forward.1} parent=5 // pred_fallthru
        _
    $region6: #{cnn1_forward.1} parent=1 // loop_footer
      %s29 = sadd.s32 1, %s25
    $region7: #{cnn1_forward.1} parent=1 // loop_footer_branch
      %24 = sbr.rel target = $region3
    $region8: #{cnn1_forward.1} parent=1 // loop_exit
      _
    %3187 = vsyncpa [#allocation3], 1
    %s3188 = scalar_lea.sflag [#allocation3], 1
    %3189 = vsyncpa %s3188, 1
    %3190 = vsyncpa [#allocation6], 1
    %3191 = vsyncpa [#allocation9], 1
    %3192 = vsyncpa [#allocation4], 1
    %s3193 = scalar_lea.sflag [#allocation4], 1
    %3194 = vsyncpa %s3193, 1

</llo_original>
